<compile_context>
chip_gen: v6e
topology: v6e:2x2x1
jax: 0.10.0
libtpu: 0.0.40
codegen_flags: <defaults>
</compile_context>

<pallas_src>
import jax
import jax.numpy as jnp
from jax.experimental import pallas as pl
from jax.experimental.pallas import tpu as pltpu


def _zero_pad_hw(v, dtype):
    """Functional 1-pixel spatial zero-pad of an (H, W, C) value.

    Built with concatenations along the two non-lane axes: no padded scratch buffer,
    no per-step halo zeroing, no cross-grid-iteration state.
    """
    H, W, C = v.shape
    v = v.astype(dtype)
    zrow = jnp.zeros((1, W, C), dtype)
    v = jnp.concatenate([zrow, v, zrow], axis=0)          # (H+2, W,   C)
    zcol = jnp.zeros((H + 2, 1, C), dtype)
    return jnp.concatenate([zcol, v, zcol], axis=1)       # (H+2, W+2, C)


def _conv3x3_relu(src, w_ref, b_ref, compute_dtype):
    """3x3 'SAME' conv + bias + ReLU as ONE im2col matmul.

    src   : (H, W, C) value
    w_ref : (9*C, Cout) ref  -- HWIO weights flattened over (kh, kw, C)
    b_ref : (1, Cout) ref    -- float32
    returns (H*W, Cout) float32
    """
    H, W, C = src.shape
    p = _zero_pad_hw(src, compute_dtype)                  # (H+2, W+2, C)
    # im2col: the 9 shifted taps concatenated on the lane axis -> single K=9*C matmul
    # (tap order (kh, kw, c) matches w.reshape(9*C, Cout) row-major flattening).
    taps = [p[dy:dy + H, dx:dx + W, :] for dy in range(3) for dx in range(3)]
    col = jnp.concatenate(taps, axis=-1).reshape(H * W, 9 * C)
    acc = jnp.dot(col, w_ref[...], preferred_element_type=jnp.float32)
    # bias + ReLU kept in float32 (v5e has no bf16 VPU path).
    return jnp.maximum(acc + b_ref[...], 0.0)


def inconv_kernel(x_ref, w1_ref, b1_ref, w2_ref, b2_ref, o_ref):
    _, H, W, Cin = x_ref.shape
    Cout = b1_ref.shape[-1]
    cdt = x_ref.dtype            # MXU operand dtype (f32 default; bf16 on v6e/v7x)

    h1 = _conv3x3_relu(x_ref[0], w1_ref, b1_ref, cdt)                  # (H*W, Cout)
    h2 = _conv3x3_relu(h1.reshape(H, W, Cout), w2_ref, b2_ref, cdt)    # (H*W, Cout)

    # Lane-dense store: present the result as (H, W*Cout) (=128 lanes here) instead of
    # a Cout=8-lane-wide block -> unmasked vst + dense writeback DMA rows.
    h2_3d = h2.reshape(H, W, Cout)
    dense = jnp.concatenate([h2_3d[:, x, :] for x in range(W)], axis=-1)  # (H, W*Cout)
    o_ref[...] = dense[None].astype(o_ref.dtype)


def inconv_forward(x_nchw, w1, b1, w2, b2, *, compute_dtype=jnp.float32):
    """Pallas-backed InConv.forward. Input/output are NCHW like PyTorch.

    w1: (3, 3, Cin, Cout) HWIO, w2: (3, 3, Cout, Cout) HWIO, b1/b2: (1, Cout).
    compute_dtype: pass jnp.bfloat16 on v6e/v7x to halve operand HBM/VMEM traffic
    (accumulation and element-wise math stay in float32).
    """
    N, Cin, H, W = x_nchw.shape
    Cout = w1.shape[-1]

    x = jnp.transpose(x_nchw, (0, 2, 3, 1)).astype(compute_dtype)   # NCHW -> NHWC
    w1f = w1.reshape(9 * Cin, Cout).astype(compute_dtype)
    w2f = w2.reshape(9 * Cout, Cout).astype(compute_dtype)
    b1f = b1.reshape(1, Cout).astype(jnp.float32)
    b2f = b2.reshape(1, Cout).astype(jnp.float32)

    # One image per grid step: M = H*W (=256) matmul rows per step, grid length N >= 2
    # so the parallel axis shards across v7x's two TensorCores.
    # TODO(synk): for production U-Net sizes (large H/W/C) tile over H with a 1-row
    #             halo via the index_map so the double-buffered working set fits
    #             v7x's 64 MiB VMEM.
    out = pl.pallas_call(
        inconv_kernel,
        out_shape=jax.ShapeDtypeStruct((N, H, W * Cout), jnp.float32),
        grid_spec=pltpu.PrefetchScalarGridSpec(
            num_scalar_prefetch=0,
            grid=(N,),
            in_specs=[
                pl.BlockSpec((1, H, W, Cin), lambda n: (n, 0, 0, 0)),
                pl.BlockSpec((9 * Cin, Cout), lambda n: (0, 0)),     # grid-invariant
                pl.BlockSpec((1, Cout), lambda n: (0, 0)),           # grid-invariant
                pl.BlockSpec((9 * Cout, Cout), lambda n: (0, 0)),    # grid-invariant
                pl.BlockSpec((1, Cout), lambda n: (0, 0)),           # grid-invariant
            ],
            out_specs=pl.BlockSpec((1, H, W * Cout), lambda n: (n, 0, 0)),
        ),
        compiler_params=pltpu.CompilerParams(
            dimension_semantics=("parallel",),
            vmem_limit_bytes=32 * 1024 * 1024,
        ),
    )(x, w1f, b1f, w2f, b2f)

    out = out.reshape(N, H, W, Cout)              # undo lane packing (free in XLA)
    return jnp.transpose(out, (0, 3, 1, 2))       # NHWC -> NCHW


def inconv_reference(x_nchw, w1, b1, w2, b2):
    """Pure-JAX reference (same semantics as the PyTorch module)."""
    x = jnp.transpose(x_nchw, (0, 2, 3, 1)).astype(jnp.float32)
    dn = ('NHWC', 'HWIO', 'NHWC')
    y = jax.lax.conv_general_dilated(x, w1, (1, 1), 'SAME', dimension_numbers=dn)
    y = jnp.maximum(y + b1.reshape(1, 1, 1, -1), 0.0)
    y = jax.lax.conv_general_dilated(y, w2, (1, 1), 'SAME', dimension_numbers=dn)
    y = jnp.maximum(y + b2.reshape(1, 1, 1, -1), 0.0)
    return jnp.transpose(y, (0, 3, 1, 2))


if __name__ == "__main__":
    # InConv(in_channels=4, out_channels=8, norm_layer=identity)
    N, Cin, H, W = 2, 4, 16, 16
    Cout = 8

    key = jax.random.PRNGKey(0)
    kx, kw1, kb1, kw2, kb2 = jax.random.split(key, 5)

    x = jax.random.normal(kx, (N, Cin, H, W), dtype=jnp.float32)
    w1 = 0.1 * jax.random.normal(kw1, (3, 3, Cin, Cout), dtype=jnp.float32)   # HWIO
    b1 = 0.1 * jax.random.normal(kb1, (1, Cout), dtype=jnp.float32)
    w2 = 0.1 * jax.random.normal(kw2, (3, 3, Cout, Cout), dtype=jnp.float32)  # HWIO
    b2 = 0.1 * jax.random.normal(kb2, (1, Cout), dtype=jnp.float32)

    out = inconv_forward(x, w1, b1, w2, b2)
    out = jax.block_until_ready(out)

    ref = inconv_reference(x, w1, b1, w2, b2)
    assert out.shape == (N, Cout, H, W), out.shape
    assert jnp.allclose(out, ref, atol=1e-4, rtol=1e-4), float(jnp.abs(out - ref).max())

    print("KERNEL_OK")
</pallas_src>

<mosaic_0001>
module attributes {stable_mosaic.version = 11 : i64} {
  func.func @inconv_kernel(%arg0: i32, %arg1: memref<1x16x16x4xf32, #tpu.memory_space<vmem>>, %arg2: memref<36x8xf32, #tpu.memory_space<vmem>>, %arg3: memref<1x8xf32, #tpu.memory_space<vmem>>, %arg4: memref<72x8xf32, #tpu.memory_space<vmem>>, %arg5: memref<1x8xf32, #tpu.memory_space<vmem>>, %arg6: memref<1x16x128xf32, #tpu.memory_space<vmem>>) attributes {dimension_semantics = [#tpu.dimension_semantics<parallel>], iteration_bounds = array<i64: 2>, scalar_prefetch = 0 : i64, scratch_operands = 0 : i64, tpu.core_type = #tpu.core_type<tc>, window_params = [{transform_indices = @transform_0, window_bounds = array<i64: 1, 16, 16, 4>}, {pipeline_mode = #tpu.pipeline_mode<synchronous>, transform_indices = @transform_1, window_bounds = array<i64: 36, 8>}, {pipeline_mode = #tpu.pipeline_mode<synchronous>, transform_indices = @transform_2, window_bounds = array<i64: 1, 8>}, {pipeline_mode = #tpu.pipeline_mode<synchronous>, transform_indices = @transform_3, window_bounds = array<i64: 72, 8>}, {pipeline_mode = #tpu.pipeline_mode<synchronous>, transform_indices = @transform_4, window_bounds = array<i64: 1, 8>}, {transform_indices = @transform_5, window_bounds = array<i64: 1, 16, 128>}]} {
    %c0 = arith.constant 0 : index
    %c0_0 = arith.constant 0 : index
    %c0_1 = arith.constant 0 : index
    %c0_2 = arith.constant 0 : index
    %0 = vector.load %arg1[%c0, %c0_0, %c0_1, %c0_2] : memref<1x16x16x4xf32, #tpu.memory_space<vmem>>, vector<1x16x16x4xf32>
    %1 = vector.shape_cast %0 : vector<1x16x16x4xf32> to vector<16x16x4xf32>
    %cst = arith.constant 0.000000e+00 : f32
    %2 = vector.broadcast %cst : f32 to vector<1x16x4xf32>
    %3 = tpu.concatenate %2, %1, %2 in 0 : vector<1x16x4xf32>, vector<16x16x4xf32>, vector<1x16x4xf32> -> vector<18x16x4xf32>
    %cst_3 = arith.constant 0.000000e+00 : f32
    %4 = vector.broadcast %cst_3 : f32 to vector<18x1x4xf32>
    %5 = tpu.concatenate %4, %3, %4 in 1 : vector<18x1x4xf32>, vector<18x16x4xf32>, vector<18x1x4xf32> -> vector<18x18x4xf32>
    %6 = vector.extract_strided_slice %5 {offsets = [0, 0, 0], sizes = [16, 16, 4], strides = [1, 1, 1]} : vector<18x18x4xf32> to vector<16x16x4xf32>
    %7 = vector.extract_strided_slice %5 {offsets = [0, 1, 0], sizes = [16, 16, 4], strides = [1, 1, 1]} : vector<18x18x4xf32> to vector<16x16x4xf32>
    %8 = vector.extract_strided_slice %5 {offsets = [0, 2, 0], sizes = [16, 16, 4], strides = [1, 1, 1]} : vector<18x18x4xf32> to vector<16x16x4xf32>
    %9 = vector.extract_strided_slice %5 {offsets = [1, 0, 0], sizes = [16, 16, 4], strides = [1, 1, 1]} : vector<18x18x4xf32> to vector<16x16x4xf32>
    %10 = vector.extract_strided_slice %5 {offsets = [1, 1, 0], sizes = [16, 16, 4], strides = [1, 1, 1]} : vector<18x18x4xf32> to vector<16x16x4xf32>
    %11 = vector.extract_strided_slice %5 {offsets = [1, 2, 0], sizes = [16, 16, 4], strides = [1, 1, 1]} : vector<18x18x4xf32> to vector<16x16x4xf32>
    %12 = vector.extract_strided_slice %5 {offsets = [2, 0, 0], sizes = [16, 16, 4], strides = [1, 1, 1]} : vector<18x18x4xf32> to vector<16x16x4xf32>
    %13 = vector.extract_strided_slice %5 {offsets = [2, 1, 0], sizes = [16, 16, 4], strides = [1, 1, 1]} : vector<18x18x4xf32> to vector<16x16x4xf32>
    %14 = vector.extract_strided_slice %5 {offsets = [2, 2, 0], sizes = [16, 16, 4], strides = [1, 1, 1]} : vector<18x18x4xf32> to vector<16x16x4xf32>
    %15 = tpu.concatenate %6, %7, %8, %9, %10, %11, %12, %13, %14 in 2 : vector<16x16x4xf32>, vector<16x16x4xf32>, vector<16x16x4xf32>, vector<16x16x4xf32>, vector<16x16x4xf32>, vector<16x16x4xf32>, vector<16x16x4xf32>, vector<16x16x4xf32>, vector<16x16x4xf32> -> vector<16x16x36xf32>
    %16 = vector.shape_cast %15 : vector<16x16x36xf32> to vector<256x36xf32>
    %c0_4 = arith.constant 0 : index
    %c0_5 = arith.constant 0 : index
    %17 = vector.load %arg2[%c0_4, %c0_5] : memref<36x8xf32, #tpu.memory_space<vmem>>, vector<36x8xf32>
    %cst_6 = arith.constant dense<0.000000e+00> : vector<256x8xf32>
    %18 = tpu.matmul %16, %17, %cst_6 {dimension_numbers = #tpu.dot_dimension_numbers<[1], [0], [0], [1], [0, 0, 1, 1], [], []>} : vector<256x36xf32>, vector<36x8xf32>, vector<256x8xf32> -> vector<256x8xf32>
    %c0_7 = arith.constant 0 : index
    %c0_8 = arith.constant 0 : index
    %19 = vector.load %arg3[%c0_7, %c0_8] : memref<1x8xf32, #tpu.memory_space<vmem>>, vector<1x8xf32>
    %20 = vector.broadcast %19 : vector<1x8xf32> to vector<256x8xf32>
    %21 = arith.addf %18, %20 : vector<256x8xf32>
    %cst_9 = arith.constant 0.000000e+00 : f32
    %22 = vector.broadcast %cst_9 : f32 to vector<256x8xf32>
    %23 = arith.maximumf %21, %22 : vector<256x8xf32>
    %24 = vector.shape_cast %23 : vector<256x8xf32> to vector<16x16x8xf32>
    %cst_10 = arith.constant 0.000000e+00 : f32
    %25 = vector.broadcast %cst_10 : f32 to vector<1x16x8xf32>
    %26 = tpu.concatenate %25, %24, %25 in 0 : vector<1x16x8xf32>, vector<16x16x8xf32>, vector<1x16x8xf32> -> vector<18x16x8xf32>
    %cst_11 = arith.constant 0.000000e+00 : f32
    %27 = vector.broadcast %cst_11 : f32 to vector<18x1x8xf32>
    %28 = tpu.concatenate %27, %26, %27 in 1 : vector<18x1x8xf32>, vector<18x16x8xf32>, vector<18x1x8xf32> -> vector<18x18x8xf32>
    %29 = vector.extract_strided_slice %28 {offsets = [0, 0, 0], sizes = [16, 16, 8], strides = [1, 1, 1]} : vector<18x18x8xf32> to vector<16x16x8xf32>
    %30 = vector.extract_strided_slice %28 {offsets = [0, 1, 0], sizes = [16, 16, 8], strides = [1, 1, 1]} : vector<18x18x8xf32> to vector<16x16x8xf32>
    %31 = vector.extract_strided_slice %28 {offsets = [0, 2, 0], sizes = [16, 16, 8], strides = [1, 1, 1]} : vector<18x18x8xf32> to vector<16x16x8xf32>
    %32 = vector.extract_strided_slice %28 {offsets = [1, 0, 0], sizes = [16, 16, 8], strides = [1, 1, 1]} : vector<18x18x8xf32> to vector<16x16x8xf32>
    %33 = vector.extract_strided_slice %28 {offsets = [1, 1, 0], sizes = [16, 16, 8], strides = [1, 1, 1]} : vector<18x18x8xf32> to vector<16x16x8xf32>
    %34 = vector.extract_strided_slice %28 {offsets = [1, 2, 0], sizes = [16, 16, 8], strides = [1, 1, 1]} : vector<18x18x8xf32> to vector<16x16x8xf32>
    %35 = vector.extract_strided_slice %28 {offsets = [2, 0, 0], sizes = [16, 16, 8], strides = [1, 1, 1]} : vector<18x18x8xf32> to vector<16x16x8xf32>
    %36 = vector.extract_strided_slice %28 {offsets = [2, 1, 0], sizes = [16, 16, 8], strides = [1, 1, 1]} : vector<18x18x8xf32> to vector<16x16x8xf32>
    %37 = vector.extract_strided_slice %28 {offsets = [2, 2, 0], sizes = [16, 16, 8], strides = [1, 1, 1]} : vector<18x18x8xf32> to vector<16x16x8xf32>
    %38 = tpu.concatenate %29, %30, %31, %32, %33, %34, %35, %36, %37 in 2 : vector<16x16x8xf32>, vector<16x16x8xf32>, vector<16x16x8xf32>, vector<16x16x8xf32>, vector<16x16x8xf32>, vector<16x16x8xf32>, vector<16x16x8xf32>, vector<16x16x8xf32>, vector<16x16x8xf32> -> vector<16x16x72xf32>
    %39 = vector.shape_cast %38 : vector<16x16x72xf32> to vector<256x72xf32>
    %c0_12 = arith.constant 0 : index
    %c0_13 = arith.constant 0 : index
    %40 = vector.load %arg4[%c0_12, %c0_13] : memref<72x8xf32, #tpu.memory_space<vmem>>, vector<72x8xf32>
    %cst_14 = arith.constant dense<0.000000e+00> : vector<256x8xf32>
    %41 = tpu.matmul %39, %40, %cst_14 {dimension_numbers = #tpu.dot_dimension_numbers<[1], [0], [0], [1], [0, 0, 1, 1], [], []>} : vector<256x72xf32>, vector<72x8xf32>, vector<256x8xf32> -> vector<256x8xf32>
    %c0_15 = arith.constant 0 : index
    %c0_16 = arith.constant 0 : index
    %42 = vector.load %arg5[%c0_15, %c0_16] : memref<1x8xf32, #tpu.memory_space<vmem>>, vector<1x8xf32>
    %43 = vector.broadcast %42 : vector<1x8xf32> to vector<256x8xf32>
    %44 = arith.addf %41, %43 : vector<256x8xf32>
    %cst_17 = arith.constant 0.000000e+00 : f32
    %45 = vector.broadcast %cst_17 : f32 to vector<256x8xf32>
    %46 = arith.maximumf %44, %45 : vector<256x8xf32>
    %47 = vector.shape_cast %46 : vector<256x8xf32> to vector<16x16x8xf32>
    %48 = vector.extract_strided_slice %47 {offsets = [0, 0, 0], sizes = [16, 1, 8], strides = [1, 1, 1]} : vector<16x16x8xf32> to vector<16x1x8xf32>
    %49 = vector.shape_cast %48 : vector<16x1x8xf32> to vector<16x8xf32>
    %50 = vector.extract_strided_slice %47 {offsets = [0, 1, 0], sizes = [16, 1, 8], strides = [1, 1, 1]} : vector<16x16x8xf32> to vector<16x1x8xf32>
    %51 = vector.shape_cast %50 : vector<16x1x8xf32> to vector<16x8xf32>
    %52 = vector.extract_strided_slice %47 {offsets = [0, 2, 0], sizes = [16, 1, 8], strides = [1, 1, 1]} : vector<16x16x8xf32> to vector<16x1x8xf32>
    %53 = vector.shape_cast %52 : vector<16x1x8xf32> to vector<16x8xf32>
    %54 = vector.extract_strided_slice %47 {offsets = [0, 3, 0], sizes = [16, 1, 8], strides = [1, 1, 1]} : vector<16x16x8xf32> to vector<16x1x8xf32>
    %55 = vector.shape_cast %54 : vector<16x1x8xf32> to vector<16x8xf32>
    %56 = vector.extract_strided_slice %47 {offsets = [0, 4, 0], sizes = [16, 1, 8], strides = [1, 1, 1]} : vector<16x16x8xf32> to vector<16x1x8xf32>
    %57 = vector.shape_cast %56 : vector<16x1x8xf32> to vector<16x8xf32>
    %58 = vector.extract_strided_slice %47 {offsets = [0, 5, 0], sizes = [16, 1, 8], strides = [1, 1, 1]} : vector<16x16x8xf32> to vector<16x1x8xf32>
    %59 = vector.shape_cast %58 : vector<16x1x8xf32> to vector<16x8xf32>
    %60 = vector.extract_strided_slice %47 {offsets = [0, 6, 0], sizes = [16, 1, 8], strides = [1, 1, 1]} : vector<16x16x8xf32> to vector<16x1x8xf32>
    %61 = vector.shape_cast %60 : vector<16x1x8xf32> to vector<16x8xf32>
    %62 = vector.extract_strided_slice %47 {offsets = [0, 7, 0], sizes = [16, 1, 8], strides = [1, 1, 1]} : vector<16x16x8xf32> to vector<16x1x8xf32>
    %63 = vector.shape_cast %62 : vector<16x1x8xf32> to vector<16x8xf32>
    %64 = vector.extract_strided_slice %47 {offsets = [0, 8, 0], sizes = [16, 1, 8], strides = [1, 1, 1]} : vector<16x16x8xf32> to vector<16x1x8xf32>
    %65 = vector.shape_cast %64 : vector<16x1x8xf32> to vector<16x8xf32>
    %66 = vector.extract_strided_slice %47 {offsets = [0, 9, 0], sizes = [16, 1, 8], strides = [1, 1, 1]} : vector<16x16x8xf32> to vector<16x1x8xf32>
    %67 = vector.shape_cast %66 : vector<16x1x8xf32> to vector<16x8xf32>
    %68 = vector.extract_strided_slice %47 {offsets = [0, 10, 0], sizes = [16, 1, 8], strides = [1, 1, 1]} : vector<16x16x8xf32> to vector<16x1x8xf32>
    %69 = vector.shape_cast %68 : vector<16x1x8xf32> to vector<16x8xf32>
    %70 = vector.extract_strided_slice %47 {offsets = [0, 11, 0], sizes = [16, 1, 8], strides = [1, 1, 1]} : vector<16x16x8xf32> to vector<16x1x8xf32>
    %71 = vector.shape_cast %70 : vector<16x1x8xf32> to vector<16x8xf32>
    %72 = vector.extract_strided_slice %47 {offsets = [0, 12, 0], sizes = [16, 1, 8], strides = [1, 1, 1]} : vector<16x16x8xf32> to vector<16x1x8xf32>
    %73 = vector.shape_cast %72 : vector<16x1x8xf32> to vector<16x8xf32>
    %74 = vector.extract_strided_slice %47 {offsets = [0, 13, 0], sizes = [16, 1, 8], strides = [1, 1, 1]} : vector<16x16x8xf32> to vector<16x1x8xf32>
    %75 = vector.shape_cast %74 : vector<16x1x8xf32> to vector<16x8xf32>
    %76 = vector.extract_strided_slice %47 {offsets = [0, 14, 0], sizes = [16, 1, 8], strides = [1, 1, 1]} : vector<16x16x8xf32> to vector<16x1x8xf32>
    %77 = vector.shape_cast %76 : vector<16x1x8xf32> to vector<16x8xf32>
    %78 = vector.extract_strided_slice %47 {offsets = [0, 15, 0], sizes = [16, 1, 8], strides = [1, 1, 1]} : vector<16x16x8xf32> to vector<16x1x8xf32>
    %79 = vector.shape_cast %78 : vector<16x1x8xf32> to vector<16x8xf32>
    %80 = tpu.concatenate %49, %51, %53, %55, %57, %59, %61, %63, %65, %67, %69, %71, %73, %75, %77, %79 in 1 : vector<16x8xf32>, vector<16x8xf32>, vector<16x8xf32>, vector<16x8xf32>, vector<16x8xf32>, vector<16x8xf32>, vector<16x8xf32>, vector<16x8xf32>, vector<16x8xf32>, vector<16x8xf32>, vector<16x8xf32>, vector<16x8xf32>, vector<16x8xf32>, vector<16x8xf32>, vector<16x8xf32>, vector<16x8xf32> -> vector<16x128xf32>
    %81 = vector.shape_cast %80 : vector<16x128xf32> to vector<1x16x128xf32>
    %c0_18 = arith.constant 0 : index
    %c0_19 = arith.constant 0 : index
    %c0_20 = arith.constant 0 : index
    %82 = vector.load %arg6[%c0_18, %c0_19, %c0_20] : memref<1x16x128xf32, #tpu.memory_space<vmem>>, vector<1x16x128xf32>
    tpu.vector_store %arg6[%c0_18, %c0_19, %c0_20], %81 {strides = array<i32>} : memref<1x16x128xf32, #tpu.memory_space<vmem>>, vector<1x16x128xf32>,
    return
  }
  func.func @transform_0(%arg0: i32) -> (i32, i32, i32, i32) {
    %c0_i32 = arith.constant 0 : i32
    %c0_i32_0 = arith.constant 0 : i32
    %c0_i32_1 = arith.constant 0 : i32
    %c0_i32_2 = arith.constant 0 : i32
    return %arg0, %c0_i32, %c0_i32_0, %c0_i32_1 : i32, i32, i32, i32
  }
  func.func @transform_1(%arg0: i32) -> (i32, i32) {
    %c0_i32 = arith.constant 0 : i32
    %c0_i32_0 = arith.constant 0 : i32
    %c0_i32_1 = arith.constant 0 : i32
    return %c0_i32, %c0_i32_0 : i32, i32
  }
  func.func @transform_2(%arg0: i32) -> (i32, i32) {
    %c0_i32 = arith.constant 0 : i32
    %c0_i32_0 = arith.constant 0 : i32
    %c0_i32_1 = arith.constant 0 : i32
    return %c0_i32, %c0_i32_0 : i32, i32
  }
  func.func @transform_3(%arg0: i32) -> (i32, i32) {
    %c0_i32 = arith.constant 0 : i32
    %c0_i32_0 = arith.constant 0 : i32
    %c0_i32_1 = arith.constant 0 : i32
    return %c0_i32, %c0_i32_0 : i32, i32
  }
  func.func @transform_4(%arg0: i32) -> (i32, i32) {
    %c0_i32 = arith.constant 0 : i32
    %c0_i32_0 = arith.constant 0 : i32
    %c0_i32_1 = arith.constant 0 : i32
    return %c0_i32, %c0_i32_0 : i32, i32
  }
  func.func @transform_5(%arg0: i32) -> (i32, i32, i32) {
    %c0_i32 = arith.constant 0 : i32
    %c0_i32_0 = arith.constant 0 : i32
    %c0_i32_1 = arith.constant 0 : i32
    return %arg0, %c0_i32, %c0_i32_0 : i32, i32, i32
  }
}

</mosaic_0001>

<llo_original>
// kernel: tpu_custom_call.1
$region0: #{tpu_custom_call.1}
  #allocation0 [shape = 'u32[]', space=smem, size = 0x4, offset = 0x4, fixed_abs, tag = 'smem constant byte address 0x4 - core index']
  #allocation1 [shape = 'u32[144,128]{1,0:T(1,128)}', space=vmem, size = 0x12000, scoped, tag = 'internal scratch']
  %s0 = inlined_call_operand.vmem [shape: f32[2,16,16,4], index: 0, kind: input, shape index: {}]
  %s1 = inlined_call_operand.vmem [shape: f32[36,8], index: 1, kind: input, shape index: {}]
  %s2 = inlined_call_operand.vmem [shape: f32[1,8], index: 2, kind: input, shape index: {}]
  %s3 = inlined_call_operand.vmem [shape: f32[72,8], index: 3, kind: input, shape index: {}]
  %s4 = inlined_call_operand.vmem [shape: f32[1,8], index: 4, kind: input, shape index: {}]
  %s5 = inlined_call_operand.hbm [shape: f32[2,16,128], index: 5, kind: output, shape index: {}]
  %s6 = sld [smem:[#allocation0]]
  $region53: #{tpu_custom_call.1} parent=0
    _
  %s8 = ssub.s32 1, %s6
  %s9 = scalar_select 0, %s8, %s6
  $region1: #{tpu_custom_call.1} parent=0
    #allocation2 [shape = 'u8[16384]{0}', space=vmem, size = 0x4000, scoped, tag = 'output window, operand 0']
    #allocation3 [shape = 's32[2]{0}', space=sflag, size = 0x8, scoped, tag = 'scoped memory for tpu_custom_call.1']
    %10 = vsyncpa [#allocation3], 0
    %s11 = scalar_lea.sflag [#allocation3], 1
    %12 = vsyncpa %s11, 0
    loop: start=0, step=1, limit=4
    $region2: #{tpu_custom_call.1} parent=1 // loop_pre_header
      _
    $region3: #{tpu_custom_call.1} parent=1 // loop_header
      %s14 = sphi 0, %s18
      %p15 = scmp.ge.s32.totalorder %s14, 4
      %s24 = sphi 0, %s26
      %s27 = sphi 0, %s24
      %s28 = sphi 0, %s27
      %s44 = sphi 0, %s28
      %s48 = sphi 0, %s48
      %s50 = sphi 0, %s48
      %s51 = sphi 0, %s50
      %s65 = sphi 0, %s51
      %s69 = sphi 0, %s69
      %s71 = sphi 0, %s69
      %s72 = sphi 0, %s71
      %s86 = sphi 0, %s72
      %s90 = sphi 0, %s90
      %s92 = sphi 0, %s90
      %s93 = sphi 0, %s92
      %s107 = sphi 0, %s93
      %s111 = sphi 0, %s111
      %s113 = sphi 0, %s111
      %s114 = sphi 0, %s113
      %s128 = sphi 0, %s114
      %s134 = sphi 0, %s136
      %s137 = sphi 0, %s134
      %s138 = sphi 0, %s137
      %s154 = sphi 0, %s138
    $region4: #{tpu_custom_call.1} parent=1 // loop_header_branch
      %17 = sbr.rel (%p15) target = $region8
    $region5: #{tpu_custom_call.1} parent=1 // loop_body
      %s19 = ssub.s32 %s14, 1
      %s20 = ssub.s32 %s14, 2
      %s21 = sadd.s32 %s14, 1
      %s22 = ssub.s32 %s14, %s21
      %p23 = scmp.eq.s32.totalorder %s22, 0
      %s25 = sadd.s32 %s24, 1
      %s26 = scalar_select %p23, %s24, %s25
      %p29 = pneg %p23
      %p30 = scmp.eq.s32.totalorder %s14, 1
      %p31 = por %p29, %p30
      %p32 = scmp.ne.s32.totalorder %s24, %s27
      %p33 = scmp.eq.s32.totalorder %s14, 0
      %p34 = por %p32, %p33
      %p35 = scmp.ne.s32.totalorder %s24, %s27
      %p36 = scmp.eq.s32.totalorder %s19, 1
      %p37 = por %p35, %p36
      %p38 = scmp.ne.s32.totalorder %s27, %s28
      %p39 = scmp.eq.s32.totalorder %s19, 0
      %p40 = por %p38, %p39
      %p41 = scmp.ne.s32.totalorder %s27, %s28
      %p42 = scmp.eq.s32.totalorder %s20, 1
      %p43 = por %p41, %p42
      %p45 = scmp.ne.s32.totalorder %s28, %s44
      %p46 = scmp.eq.s32.totalorder %s20, 0
      %p47 = por %p45, %p46
      %s49 = sadd.s32 %s48, 1
      %p52 = scmp.eq.s32.totalorder %s14, 1
      %p53 = scmp.ne.s32.totalorder %s48, %s50
      %p54 = scmp.eq.s32.totalorder %s14, 0
      %p55 = por %p53, %p54
      %p56 = scmp.ne.s32.totalorder %s48, %s50
      %p57 = scmp.eq.s32.totalorder %s19, 1
      %p58 = por %p56, %p57
      %p59 = scmp.ne.s32.totalorder %s50, %s51
      %p60 = scmp.eq.s32.totalorder %s19, 0
      %p61 = por %p59, %p60
      %p62 = scmp.ne.s32.totalorder %s50, %s51
      %p63 = scmp.eq.s32.totalorder %s20, 1
      %p64 = por %p62, %p63
      %p66 = scmp.ne.s32.totalorder %s51, %s65
      %p67 = scmp.eq.s32.totalorder %s20, 0
      %p68 = por %p66, %p67
      %s70 = sadd.s32 %s69, 1
      %p73 = scmp.eq.s32.totalorder %s14, 1
      %p74 = scmp.ne.s32.totalorder %s69, %s71
      %p75 = scmp.eq.s32.totalorder %s14, 0
      %p76 = por %p74, %p75
      %p77 = scmp.ne.s32.totalorder %s69, %s71
      %p78 = scmp.eq.s32.totalorder %s19, 1
      %p79 = por %p77, %p78
      %p80 = scmp.ne.s32.totalorder %s71, %s72
      %p81 = scmp.eq.s32.totalorder %s19, 0
      %p82 = por %p80, %p81
      %p83 = scmp.ne.s32.totalorder %s71, %s72
      %p84 = scmp.eq.s32.totalorder %s20, 1
      %p85 = por %p83, %p84
      %p87 = scmp.ne.s32.totalorder %s72, %s86
      %p88 = scmp.eq.s32.totalorder %s20, 0
      %p89 = por %p87, %p88
      %s91 = sadd.s32 %s90, 1
      %p94 = scmp.eq.s32.totalorder %s14, 1
      %p95 = scmp.ne.s32.totalorder %s90, %s92
      %p96 = scmp.eq.s32.totalorder %s14, 0
      %p97 = por %p95, %p96
      %p98 = scmp.ne.s32.totalorder %s90, %s92
      %p99 = scmp.eq.s32.totalorder %s19, 1
      %p100 = por %p98, %p99
      %p101 = scmp.ne.s32.totalorder %s92, %s93
      %p102 = scmp.eq.s32.totalorder %s19, 0
      %p103 = por %p101, %p102
      %p104 = scmp.ne.s32.totalorder %s92, %s93
      %p105 = scmp.eq.s32.totalorder %s20, 1
      %p106 = por %p104, %p105
      %p108 = scmp.ne.s32.totalorder %s93, %s107
      %p109 = scmp.eq.s32.totalorder %s20, 0
      %p110 = por %p108, %p109
      %s112 = sadd.s32 %s111, 1
      %p115 = scmp.eq.s32.totalorder %s14, 1
      %p116 = scmp.ne.s32.totalorder %s111, %s113
      %p117 = scmp.eq.s32.totalorder %s14, 0
      %p118 = por %p116, %p117
      %p119 = scmp.ne.s32.totalorder %s111, %s113
      %p120 = scmp.eq.s32.totalorder %s19, 1
      %p121 = por %p119, %p120
      %p122 = scmp.ne.s32.totalorder %s113, %s114
      %p123 = scmp.eq.s32.totalorder %s19, 0
      %p124 = por %p122, %p123
      %p125 = scmp.ne.s32.totalorder %s113, %s114
      %p126 = scmp.eq.s32.totalorder %s20, 1
      %p127 = por %p125, %p126
      %p129 = scmp.ne.s32.totalorder %s114, %s128
      %p130 = scmp.eq.s32.totalorder %s20, 0
      %p131 = por %p129, %p130
      %s132 = ssub.s32 %s14, %s21
      %p133 = scmp.eq.s32.totalorder %s132, 0
      %s135 = sadd.s32 %s134, 1
      %s136 = scalar_select %p133, %s134, %s135
      %p139 = pneg %p133
      %p140 = scmp.eq.s32.totalorder %s14, 1
      %p141 = por %p139, %p140
      %p142 = scmp.ne.s32.totalorder %s134, %s137
      %p143 = scmp.eq.s32.totalorder %s14, 0
      %p144 = por %p142, %p143
      %p145 = scmp.ne.s32.totalorder %s134, %s137
      %p146 = scmp.eq.s32.totalorder %s19, 1
      %p147 = por %p145, %p146
      %p148 = scmp.ne.s32.totalorder %s137, %s138
      %p149 = scmp.eq.s32.totalorder %s19, 0
      %p150 = por %p148, %p149
      %p151 = scmp.ne.s32.totalorder %s137, %s138
      %p152 = scmp.eq.s32.totalorder %s20, 1
      %p153 = por %p151, %p152
      %p155 = scmp.ne.s32.totalorder %s138, %s154
      %p156 = scmp.eq.s32.totalorder %s20, 0
      %p157 = por %p155, %p156
      %p158 = scmp.le.s32.totalorder 1, %s14
      %p159 = scmp.lt.s32.totalorder %s14, 3
      %p160 = pnand %p158, %p159
      %p161 = pneg %p160
      // Predicated region
      $region9: #{tpu_custom_call.1} parent=5 // pred_check
        _
      $region10: #{tpu_custom_call.1} parent=5 // pred_check_branch
        %163 = sbr.rel (%p160) target = $region12
      $region11: #{tpu_custom_call.1} parent=5 // pred_region
        %s164 = ssub.s32 %s14, 1
        // Predicated region
        $region13: #{tpu_custom_call.1} parent=11 // pred_check
          %p165 = pneg %p61
        $region14: #{tpu_custom_call.1} parent=11 // pred_check_branch
          %167 = sbr.rel (%p165) target = $region16
        $region15: #{tpu_custom_call.1} parent=11 // pred_region
          _
        $region16: #{tpu_custom_call.1} parent=11 // pred_fallthru
          _
        // Predicated region
        $region17: #{tpu_custom_call.1} parent=11 // pred_check
          %p168 = pneg %p82
        $region18: #{tpu_custom_call.1} parent=11 // pred_check_branch
          %170 = sbr.rel (%p168) target = $region20
        $region19: #{tpu_custom_call.1} parent=11 // pred_region
          _
        $region20: #{tpu_custom_call.1} parent=11 // pred_fallthru
          _
        // Predicated region
        $region21: #{tpu_custom_call.1} parent=11 // pred_check
          %p171 = pneg %p103
        $region22: #{tpu_custom_call.1} parent=11 // pred_check_branch
          %173 = sbr.rel (%p171) target = $region24
        $region23: #{tpu_custom_call.1} parent=11 // pred_region
          _
        $region24: #{tpu_custom_call.1} parent=11 // pred_fallthru
          _
        // Predicated region
        $region25: #{tpu_custom_call.1} parent=11 // pred_check
          %p174 = pneg %p124
        $region26: #{tpu_custom_call.1} parent=11 // pred_check_branch
          %176 = sbr.rel (%p174) target = $region28
        $region27: #{tpu_custom_call.1} parent=11 // pred_region
          _
        $region28: #{tpu_custom_call.1} parent=11 // pred_fallthru
          _
      $region12: #{tpu_custom_call.1} parent=5 // pred_fallthru
        _
      %p177 = scmp.lt.s32.totalorder %s14, 2
      // Predicated region
      $region29: #{tpu_custom_call.1} parent=5 // pred_check
        %p178 = pneg %p177
      $region30: #{tpu_custom_call.1} parent=5 // pred_check_branch
        %180 = sbr.rel (%p178) target = $region32
      $region31: #{tpu_custom_call.1} parent=5 // pred_region
        // Predicated region
        $region33: #{tpu_custom_call.1} parent=31 // pred_check
          %p181 = pneg %p34
        $region34: #{tpu_custom_call.1} parent=31 // pred_check_branch
          %183 = sbr.rel (%p181) target = $region36
        $region35: #{tpu_custom_call.1} parent=31 // pred_region
          %p184 = scmp.lt.s32.totalorder %s14, 1
          %s185 = scalar_select %p184, %s14, 1
          %s186 = smul.addr %s185, 32
          %s187 = smul.addr %s186, 8
          %s188 = scalar_lea.vmem %s0, %s187
        $region36: #{tpu_custom_call.1} parent=31 // pred_fallthru
          _
      $region32: #{tpu_custom_call.1} parent=5 // pred_fallthru
        _
      %p189 = scmp.le.s32.totalorder 1, %s14
      %p190 = scmp.lt.s32.totalorder %s14, 3
      %p191 = pnand %p189, %p190
      %p192 = pneg %p191
      // Predicated region
      $region37: #{tpu_custom_call.1} parent=5 // pred_check
        _
      $region38: #{tpu_custom_call.1} parent=5 // pred_check_branch
        %194 = sbr.rel (%p191) target = $region40
      $region39: #{tpu_custom_call.1} parent=5 // pred_region
        %s195 = ssub.s32 %s14, 1
        %p196 = scmp.lt.s32.totalorder %s19, 1
        %s197 = scalar_select %p196, %s19, 1
        %s198 = smul.addr %s197, 32
        %s199 = smul.addr %s198, 8
        %s200 = scalar_lea.vmem %s0, %s199
        %p201 = pneg %p40
        %p202 = pneg %p37
        %p203 = pneg %p61
        %p204 = pneg %p58
        %p205 = pneg %p82
        %p206 = pneg %p79
        %p207 = pneg %p103
        %p208 = pneg %p100
        %p209 = pneg %p124
        %p210 = pneg %p121
        %p211 = pneg %p150
        %p212 = pneg %p147
        %s213 = sand.u32 %s137, 1
        %s214 = scalar_lea.sflag [#allocation3], %s213
        %s215 = sand.u32 %s137, 1
        %s216 = smul.addr %s215, 16
        %s217 = scalar_lea.vmem [#allocation2], %s216
        %p218 = scmp.lt.s32.totalorder %s19, 1
        %s219 = scalar_select %p218, %s19, 1
        %s220 = smul.addr %s219, 32
        %s221 = smul.addr %s220, 8
        %s222 = scalar_lea.vmem %s0, %s221
        %v223 = vld [vmem:[%s222] sm:$0xff]
        %v224 = vld [vmem:[%s222 + $0x8] sm:$0xff]
        %v225 = vld [vmem:[%s222 + $0x10] sm:$0xff]
        %v226 = vld [vmem:[%s222 + $0x18] sm:$0xff]
        %v227 = vld [vmem:[%s222 + $0x20] sm:$0xff]
        %v228 = vld [vmem:[%s222 + $0x28] sm:$0xff]
        %v229 = vld [vmem:[%s222 + $0x30] sm:$0xff]
        %v230 = vld [vmem:[%s222 + $0x38] sm:$0xff]
        %v231 = vld [vmem:[%s222 + $0x40] sm:$0xff]
        %v232 = vld [vmem:[%s222 + $0x48] sm:$0xff]
        %v233 = vld [vmem:[%s222 + $0x50] sm:$0xff]
        %v234 = vld [vmem:[%s222 + $0x58] sm:$0xff]
        %v235 = vld [vmem:[%s222 + $0x60] sm:$0xff]
        %v236 = vld [vmem:[%s222 + $0x68] sm:$0xff]
        %v237 = vld [vmem:[%s222 + $0x70] sm:$0xff]
        %v238 = vld [vmem:[%s222 + $0x78] sm:$0xff]
        %v239 = vld [vmem:[%s222 + $0x80] sm:$0xff]
        %v240 = vld [vmem:[%s222 + $0x88] sm:$0xff]
        %v241 = vld [vmem:[%s222 + $0x90] sm:$0xff]
        %v242 = vld [vmem:[%s222 + $0x98] sm:$0xff]
        %v243 = vld [vmem:[%s222 + $0xa0] sm:$0xff]
        %v244 = vld [vmem:[%s222 + $0xa8] sm:$0xff]
        %v245 = vld [vmem:[%s222 + $0xb0] sm:$0xff]
        %v246 = vld [vmem:[%s222 + $0xb8] sm:$0xff]
        %v247 = vld [vmem:[%s222 + $0xc0] sm:$0xff]
        %v248 = vld [vmem:[%s222 + $0xc8] sm:$0xff]
        %v249 = vld [vmem:[%s222 + $0xd0] sm:$0xff]
        %v250 = vld [vmem:[%s222 + $0xd8] sm:$0xff]
        %v251 = vld [vmem:[%s222 + $0xe0] sm:$0xff]
        %v252 = vld [vmem:[%s222 + $0xe8] sm:$0xff]
        %v253 = vld [vmem:[%s222 + $0xf0] sm:$0xff]
        %v254 = vld [vmem:[%s222 + $0xf8] sm:$0xff]
        %vm288 = vcmask 1040384
        %v289 = vrot.slane 0.0, 7
        %v290 = vsel %vm288, %v289, %v289
        %v291 = vrot.slane %v223, 7
        %v292 = vrot.slane %v224, 7
        %v293 = vsel %vm288, %v291, %v292
        %v294 = vrot.slane %v225, 7
        %v295 = vrot.slane %v226, 7
        %v296 = vsel %vm288, %v294, %v295
        %v297 = vrot.slane %v227, 7
        %v298 = vrot.slane %v228, 7
        %v299 = vsel %vm288, %v297, %v298
        %v300 = vrot.slane %v229, 7
        %v301 = vrot.slane %v230, 7
        %v302 = vsel %vm288, %v300, %v301
        %v303 = vrot.slane %v231, 7
        %v304 = vrot.slane %v232, 7
        %v305 = vsel %vm288, %v303, %v304
        %v306 = vrot.slane %v233, 7
        %v307 = vrot.slane %v234, 7
        %v308 = vsel %vm288, %v306, %v307
        %v309 = vrot.slane %v235, 7
        %v310 = vrot.slane %v236, 7
        %v311 = vsel %vm288, %v309, %v310
        %v312 = vrot.slane %v237, 7
        %v313 = vrot.slane %v238, 7
        %v314 = vsel %vm288, %v312, %v313
        %v315 = vrot.slane %v239, 7
        %v316 = vrot.slane %v240, 7
        %v317 = vsel %vm288, %v315, %v316
        %v318 = vrot.slane %v241, 7
        %v319 = vrot.slane %v242, 7
        %v320 = vsel %vm288, %v318, %v319
        %v321 = vrot.slane %v243, 7
        %v322 = vrot.slane %v244, 7
        %v323 = vsel %vm288, %v321, %v322
        %v324 = vrot.slane %v245, 7
        %v325 = vrot.slane %v246, 7
        %v326 = vsel %vm288, %v324, %v325
        %v327 = vrot.slane %v247, 7
        %v328 = vrot.slane %v248, 7
        %v329 = vsel %vm288, %v327, %v328
        %v330 = vrot.slane %v249, 7
        %v331 = vrot.slane %v250, 7
        %v332 = vsel %vm288, %v330, %v331
        %v333 = vrot.slane %v251, 7
        %v334 = vrot.slane %v252, 7
        %v335 = vsel %vm288, %v333, %v334
        %v336 = vrot.slane %v253, 7
        %v337 = vrot.slane %v254, 7
        %v338 = vsel %vm288, %v336, %v337
        %v388 = vsel %vm288, 0.0, %v289
        %v389 = vsel %vm288, 0.0, %v291
        %v390 = vsel %vm288, 0.0, %v294
        %v391 = vsel %vm288, 0.0, %v297
        %v392 = vsel %vm288, 0.0, %v300
        %v393 = vsel %vm288, 0.0, %v303
        %v394 = vsel %vm288, 0.0, %v306
        %v395 = vsel %vm288, 0.0, %v309
        %v396 = vsel %vm288, 0.0, %v312
        %v397 = vsel %vm288, 0.0, %v315
        %v398 = vsel %vm288, 0.0, %v318
        %v399 = vsel %vm288, 0.0, %v321
        %v400 = vsel %vm288, 0.0, %v324
        %v401 = vsel %vm288, 0.0, %v327
        %v402 = vsel %vm288, 0.0, %v330
        %v403 = vsel %vm288, 0.0, %v333
        %v404 = vsel %vm288, 0.0, %v336
        %v405 = vsel %vm288, %v289, 0.0
        %v406 = vsel %vm288, %v292, 0.0
        %v407 = vsel %vm288, %v295, 0.0
        %v408 = vsel %vm288, %v298, 0.0
        %v409 = vsel %vm288, %v301, 0.0
        %v410 = vsel %vm288, %v304, 0.0
        %v411 = vsel %vm288, %v307, 0.0
        %v412 = vsel %vm288, %v310, 0.0
        %v413 = vsel %vm288, %v313, 0.0
        %v414 = vsel %vm288, %v316, 0.0
        %v415 = vsel %vm288, %v319, 0.0
        %v416 = vsel %vm288, %v322, 0.0
        %v417 = vsel %vm288, %v325, 0.0
        %v418 = vsel %vm288, %v328, 0.0
        %v419 = vsel %vm288, %v331, 0.0
        %v420 = vsel %vm288, %v334, 0.0
        %v421 = vsel %vm288, %v337, 0.0
        %vm454 = vcmask 1046528
        %v455 = vrot.slane %v388, 1
        %v456 = vrot.slane %v290, 1
        %v457 = vsel %vm454, %v455, %v456
        %v458 = vrot.slane %v405, 1
        %v459 = vsel %vm454, %v456, %v458
        %v460 = vrot.slane %v389, 1
        %v461 = vrot.slane %v293, 1
        %v462 = vsel %vm454, %v460, %v461
        %v463 = vrot.slane %v406, 1
        %v464 = vsel %vm454, %v461, %v463
        %v465 = vrot.slane %v390, 1
        %v466 = vrot.slane %v296, 1
        %v467 = vsel %vm454, %v465, %v466
        %v468 = vrot.slane %v407, 1
        %v469 = vsel %vm454, %v466, %v468
        %v470 = vrot.slane %v391, 1
        %v471 = vrot.slane %v299, 1
        %v472 = vsel %vm454, %v470, %v471
        %v473 = vrot.slane %v408, 1
        %v474 = vsel %vm454, %v471, %v473
        %v475 = vrot.slane %v392, 1
        %v476 = vrot.slane %v302, 1
        %v477 = vsel %vm454, %v475, %v476
        %v478 = vrot.slane %v409, 1
        %v479 = vsel %vm454, %v476, %v478
        %v480 = vrot.slane %v393, 1
        %v481 = vrot.slane %v305, 1
        %v482 = vsel %vm454, %v480, %v481
        %v483 = vrot.slane %v410, 1
        %v484 = vsel %vm454, %v481, %v483
        %v485 = vrot.slane %v394, 1
        %v486 = vrot.slane %v308, 1
        %v487 = vsel %vm454, %v485, %v486
        %v488 = vrot.slane %v411, 1
        %v489 = vsel %vm454, %v486, %v488
        %v490 = vrot.slane %v395, 1
        %v491 = vrot.slane %v311, 1
        %v492 = vsel %vm454, %v490, %v491
        %v493 = vrot.slane %v412, 1
        %v494 = vsel %vm454, %v491, %v493
        %v495 = vrot.slane %v396, 1
        %v496 = vrot.slane %v314, 1
        %v497 = vsel %vm454, %v495, %v496
        %v498 = vrot.slane %v413, 1
        %v499 = vsel %vm454, %v496, %v498
        %v500 = vrot.slane %v397, 1
        %v501 = vrot.slane %v317, 1
        %v502 = vsel %vm454, %v500, %v501
        %v503 = vrot.slane %v414, 1
        %v504 = vsel %vm454, %v501, %v503
        %v505 = vrot.slane %v398, 1
        %v506 = vrot.slane %v320, 1
        %v507 = vsel %vm454, %v505, %v506
        %v508 = vrot.slane %v415, 1
        %v509 = vsel %vm454, %v506, %v508
        %v510 = vrot.slane %v399, 1
        %v511 = vrot.slane %v323, 1
        %v512 = vsel %vm454, %v510, %v511
        %v513 = vrot.slane %v416, 1
        %v514 = vsel %vm454, %v511, %v513
        %v515 = vrot.slane %v400, 1
        %v516 = vrot.slane %v326, 1
        %v517 = vsel %vm454, %v515, %v516
        %v518 = vrot.slane %v417, 1
        %v519 = vsel %vm454, %v516, %v518
        %v520 = vrot.slane %v401, 1
        %v521 = vrot.slane %v329, 1
        %v522 = vsel %vm454, %v520, %v521
        %v523 = vrot.slane %v418, 1
        %v524 = vsel %vm454, %v521, %v523
        %v525 = vrot.slane %v402, 1
        %v526 = vrot.slane %v332, 1
        %v527 = vsel %vm454, %v525, %v526
        %v528 = vrot.slane %v419, 1
        %v529 = vsel %vm454, %v526, %v528
        %v530 = vrot.slane %v403, 1
        %v531 = vrot.slane %v335, 1
        %v532 = vsel %vm454, %v530, %v531
        %v533 = vrot.slane %v420, 1
        %v534 = vsel %vm454, %v531, %v533
        %535 = vrot.lane.b32.xlu0 %v457, 4
        %v536 = vpop.permute.xlu0 %535
        %537 = vrot.lane.b32.xlu0 %v459, 4
        %v538 = vpop.permute.xlu0 %537
        %539 = vrot.lane.b32.xlu0 %v462, 4
        %v540 = vpop.permute.xlu0 %539
        %541 = vrot.lane.b32.xlu0 %v464, 4
        %v542 = vpop.permute.xlu0 %541
        %543 = vrot.lane.b32.xlu0 %v467, 4
        %v544 = vpop.permute.xlu0 %543
        %545 = vrot.lane.b32.xlu0 %v469, 4
        %v546 = vpop.permute.xlu0 %545
        %547 = vrot.lane.b32.xlu0 %v472, 4
        %v548 = vpop.permute.xlu0 %547
        %549 = vrot.lane.b32.xlu0 %v474, 4
        %v550 = vpop.permute.xlu0 %549
        %551 = vrot.lane.b32.xlu0 %v477, 4
        %v552 = vpop.permute.xlu0 %551
        %553 = vrot.lane.b32.xlu0 %v479, 4
        %v554 = vpop.permute.xlu0 %553
        %555 = vrot.lane.b32.xlu0 %v482, 4
        %v556 = vpop.permute.xlu0 %555
        %557 = vrot.lane.b32.xlu0 %v484, 4
        %v558 = vpop.permute.xlu0 %557
        %559 = vrot.lane.b32.xlu0 %v487, 4
        %v560 = vpop.permute.xlu0 %559
        %561 = vrot.lane.b32.xlu0 %v489, 4
        %v562 = vpop.permute.xlu0 %561
        %563 = vrot.lane.b32.xlu0 %v492, 4
        %v564 = vpop.permute.xlu0 %563
        %565 = vrot.lane.b32.xlu0 %v494, 4
        %v566 = vpop.permute.xlu0 %565
        %567 = vrot.lane.b32.xlu0 %v497, 4
        %v568 = vpop.permute.xlu0 %567
        %569 = vrot.lane.b32.xlu0 %v499, 4
        %v570 = vpop.permute.xlu0 %569
        %571 = vrot.lane.b32.xlu0 %v502, 4
        %v572 = vpop.permute.xlu0 %571
        %573 = vrot.lane.b32.xlu0 %v504, 4
        %v574 = vpop.permute.xlu0 %573
        %575 = vrot.lane.b32.xlu0 %v507, 4
        %v576 = vpop.permute.xlu0 %575
        %577 = vrot.lane.b32.xlu0 %v509, 4
        %v578 = vpop.permute.xlu0 %577
        %579 = vrot.lane.b32.xlu0 %v512, 4
        %v580 = vpop.permute.xlu0 %579
        %581 = vrot.lane.b32.xlu0 %v514, 4
        %v582 = vpop.permute.xlu0 %581
        %583 = vrot.lane.b32.xlu0 %v517, 4
        %v584 = vpop.permute.xlu0 %583
        %585 = vrot.lane.b32.xlu0 %v519, 4
        %v586 = vpop.permute.xlu0 %585
        %587 = vrot.lane.b32.xlu0 %v522, 4
        %v588 = vpop.permute.xlu0 %587
        %589 = vrot.lane.b32.xlu0 %v524, 4
        %v590 = vpop.permute.xlu0 %589
        %591 = vrot.lane.b32.xlu0 %v527, 4
        %v592 = vpop.permute.xlu0 %591
        %593 = vrot.lane.b32.xlu0 %v529, 4
        %v594 = vpop.permute.xlu0 %593
        %595 = vrot.lane.b32.xlu0 %v532, 4
        %v596 = vpop.permute.xlu0 %595
        %597 = vrot.lane.b32.xlu0 %v534, 4
        %v598 = vpop.permute.xlu0 %597
        %vm631 = vcmask 1045504
        %v632 = vrot.slane %v388, 2
        %v633 = vrot.slane %v290, 2
        %v634 = vsel %vm631, %v632, %v633
        %v635 = vrot.slane %v405, 2
        %v636 = vsel %vm631, %v633, %v635
        %v637 = vrot.slane %v389, 2
        %v638 = vrot.slane %v293, 2
        %v639 = vsel %vm631, %v637, %v638
        %v640 = vrot.slane %v406, 2
        %v641 = vsel %vm631, %v638, %v640
        %v642 = vrot.slane %v390, 2
        %v643 = vrot.slane %v296, 2
        %v644 = vsel %vm631, %v642, %v643
        %v645 = vrot.slane %v407, 2
        %v646 = vsel %vm631, %v643, %v645
        %v647 = vrot.slane %v391, 2
        %v648 = vrot.slane %v299, 2
        %v649 = vsel %vm631, %v647, %v648
        %v650 = vrot.slane %v408, 2
        %v651 = vsel %vm631, %v648, %v650
        %v652 = vrot.slane %v392, 2
        %v653 = vrot.slane %v302, 2
        %v654 = vsel %vm631, %v652, %v653
        %v655 = vrot.slane %v409, 2
        %v656 = vsel %vm631, %v653, %v655
        %v657 = vrot.slane %v393, 2
        %v658 = vrot.slane %v305, 2
        %v659 = vsel %vm631, %v657, %v658
        %v660 = vrot.slane %v410, 2
        %v661 = vsel %vm631, %v658, %v660
        %v662 = vrot.slane %v394, 2
        %v663 = vrot.slane %v308, 2
        %v664 = vsel %vm631, %v662, %v663
        %v665 = vrot.slane %v411, 2
        %v666 = vsel %vm631, %v663, %v665
        %v667 = vrot.slane %v395, 2
        %v668 = vrot.slane %v311, 2
        %v669 = vsel %vm631, %v667, %v668
        %v670 = vrot.slane %v412, 2
        %v671 = vsel %vm631, %v668, %v670
        %v672 = vrot.slane %v396, 2
        %v673 = vrot.slane %v314, 2
        %v674 = vsel %vm631, %v672, %v673
        %v675 = vrot.slane %v413, 2
        %v676 = vsel %vm631, %v673, %v675
        %v677 = vrot.slane %v397, 2
        %v678 = vrot.slane %v317, 2
        %v679 = vsel %vm631, %v677, %v678
        %v680 = vrot.slane %v414, 2
        %v681 = vsel %vm631, %v678, %v680
        %v682 = vrot.slane %v398, 2
        %v683 = vrot.slane %v320, 2
        %v684 = vsel %vm631, %v682, %v683
        %v685 = vrot.slane %v415, 2
        %v686 = vsel %vm631, %v683, %v685
        %v687 = vrot.slane %v399, 2
        %v688 = vrot.slane %v323, 2
        %v689 = vsel %vm631, %v687, %v688
        %v690 = vrot.slane %v416, 2
        %v691 = vsel %vm631, %v688, %v690
        %v692 = vrot.slane %v400, 2
        %v693 = vrot.slane %v326, 2
        %v694 = vsel %vm631, %v692, %v693
        %v695 = vrot.slane %v417, 2
        %v696 = vsel %vm631, %v693, %v695
        %v697 = vrot.slane %v401, 2
        %v698 = vrot.slane %v329, 2
        %v699 = vsel %vm631, %v697, %v698
        %v700 = vrot.slane %v418, 2
        %v701 = vsel %vm631, %v698, %v700
        %v702 = vrot.slane %v402, 2
        %v703 = vrot.slane %v332, 2
        %v704 = vsel %vm631, %v702, %v703
        %v705 = vrot.slane %v419, 2
        %v706 = vsel %vm631, %v703, %v705
        %v707 = vrot.slane %v403, 2
        %v708 = vrot.slane %v335, 2
        %v709 = vsel %vm631, %v707, %v708
        %v710 = vrot.slane %v420, 2
        %v711 = vsel %vm631, %v708, %v710
        %712 = vrot.lane.b32.xlu0 %v634, 8
        %v713 = vpop.permute.xlu0 %712
        %714 = vrot.lane.b32.xlu0 %v636, 8
        %v715 = vpop.permute.xlu0 %714
        %716 = vrot.lane.b32.xlu0 %v639, 8
        %v717 = vpop.permute.xlu0 %716
        %718 = vrot.lane.b32.xlu0 %v641, 8
        %v719 = vpop.permute.xlu0 %718
        %720 = vrot.lane.b32.xlu0 %v644, 8
        %v721 = vpop.permute.xlu0 %720
        %722 = vrot.lane.b32.xlu0 %v646, 8
        %v723 = vpop.permute.xlu0 %722
        %724 = vrot.lane.b32.xlu0 %v649, 8
        %v725 = vpop.permute.xlu0 %724
        %726 = vrot.lane.b32.xlu0 %v651, 8
        %v727 = vpop.permute.xlu0 %726
        %728 = vrot.lane.b32.xlu0 %v654, 8
        %v729 = vpop.permute.xlu0 %728
        %730 = vrot.lane.b32.xlu0 %v656, 8
        %v731 = vpop.permute.xlu0 %730
        %732 = vrot.lane.b32.xlu0 %v659, 8
        %v733 = vpop.permute.xlu0 %732
        %734 = vrot.lane.b32.xlu0 %v661, 8
        %v735 = vpop.permute.xlu0 %734
        %736 = vrot.lane.b32.xlu0 %v664, 8
        %v737 = vpop.permute.xlu0 %736
        %738 = vrot.lane.b32.xlu0 %v666, 8
        %v739 = vpop.permute.xlu0 %738
        %740 = vrot.lane.b32.xlu0 %v669, 8
        %v741 = vpop.permute.xlu0 %740
        %742 = vrot.lane.b32.xlu0 %v671, 8
        %v743 = vpop.permute.xlu0 %742
        %744 = vrot.lane.b32.xlu0 %v674, 8
        %v745 = vpop.permute.xlu0 %744
        %746 = vrot.lane.b32.xlu0 %v676, 8
        %v747 = vpop.permute.xlu0 %746
        %748 = vrot.lane.b32.xlu0 %v679, 8
        %v749 = vpop.permute.xlu0 %748
        %750 = vrot.lane.b32.xlu0 %v681, 8
        %v751 = vpop.permute.xlu0 %750
        %752 = vrot.lane.b32.xlu0 %v684, 8
        %v753 = vpop.permute.xlu0 %752
        %754 = vrot.lane.b32.xlu0 %v686, 8
        %v755 = vpop.permute.xlu0 %754
        %756 = vrot.lane.b32.xlu0 %v689, 8
        %v757 = vpop.permute.xlu0 %756
        %758 = vrot.lane.b32.xlu0 %v691, 8
        %v759 = vpop.permute.xlu0 %758
        %760 = vrot.lane.b32.xlu0 %v694, 8
        %v761 = vpop.permute.xlu0 %760
        %762 = vrot.lane.b32.xlu0 %v696, 8
        %v763 = vpop.permute.xlu0 %762
        %764 = vrot.lane.b32.xlu0 %v699, 8
        %v765 = vpop.permute.xlu0 %764
        %766 = vrot.lane.b32.xlu0 %v701, 8
        %v767 = vpop.permute.xlu0 %766
        %768 = vrot.lane.b32.xlu0 %v704, 8
        %v769 = vpop.permute.xlu0 %768
        %770 = vrot.lane.b32.xlu0 %v706, 8
        %v771 = vpop.permute.xlu0 %770
        %772 = vrot.lane.b32.xlu0 %v709, 8
        %v773 = vpop.permute.xlu0 %772
        %774 = vrot.lane.b32.xlu0 %v711, 8
        %v775 = vpop.permute.xlu0 %774
        %809 = vrot.lane.b32.xlu0 %v389, 12
        %v810 = vpop.permute.xlu0 %809
        %811 = vrot.lane.b32.xlu0 %v293, 12
        %v812 = vpop.permute.xlu0 %811
        %813 = vrot.lane.b32.xlu0 %v390, 12
        %v814 = vpop.permute.xlu0 %813
        %815 = vrot.lane.b32.xlu0 %v296, 12
        %v816 = vpop.permute.xlu0 %815
        %817 = vrot.lane.b32.xlu0 %v391, 12
        %v818 = vpop.permute.xlu0 %817
        %819 = vrot.lane.b32.xlu0 %v299, 12
        %v820 = vpop.permute.xlu0 %819
        %821 = vrot.lane.b32.xlu0 %v392, 12
        %v822 = vpop.permute.xlu0 %821
        %823 = vrot.lane.b32.xlu0 %v302, 12
        %v824 = vpop.permute.xlu0 %823
        %825 = vrot.lane.b32.xlu0 %v393, 12
        %v826 = vpop.permute.xlu0 %825
        %827 = vrot.lane.b32.xlu0 %v305, 12
        %v828 = vpop.permute.xlu0 %827
        %829 = vrot.lane.b32.xlu0 %v394, 12
        %v830 = vpop.permute.xlu0 %829
        %831 = vrot.lane.b32.xlu0 %v308, 12
        %v832 = vpop.permute.xlu0 %831
        %833 = vrot.lane.b32.xlu0 %v395, 12
        %v834 = vpop.permute.xlu0 %833
        %835 = vrot.lane.b32.xlu0 %v311, 12
        %v836 = vpop.permute.xlu0 %835
        %837 = vrot.lane.b32.xlu0 %v396, 12
        %v838 = vpop.permute.xlu0 %837
        %839 = vrot.lane.b32.xlu0 %v314, 12
        %v840 = vpop.permute.xlu0 %839
        %841 = vrot.lane.b32.xlu0 %v397, 12
        %v842 = vpop.permute.xlu0 %841
        %843 = vrot.lane.b32.xlu0 %v317, 12
        %v844 = vpop.permute.xlu0 %843
        %845 = vrot.lane.b32.xlu0 %v398, 12
        %v846 = vpop.permute.xlu0 %845
        %847 = vrot.lane.b32.xlu0 %v320, 12
        %v848 = vpop.permute.xlu0 %847
        %849 = vrot.lane.b32.xlu0 %v399, 12
        %v850 = vpop.permute.xlu0 %849
        %851 = vrot.lane.b32.xlu0 %v323, 12
        %v852 = vpop.permute.xlu0 %851
        %853 = vrot.lane.b32.xlu0 %v400, 12
        %v854 = vpop.permute.xlu0 %853
        %855 = vrot.lane.b32.xlu0 %v326, 12
        %v856 = vpop.permute.xlu0 %855
        %857 = vrot.lane.b32.xlu0 %v401, 12
        %v858 = vpop.permute.xlu0 %857
        %859 = vrot.lane.b32.xlu0 %v329, 12
        %v860 = vpop.permute.xlu0 %859
        %861 = vrot.lane.b32.xlu0 %v402, 12
        %v862 = vpop.permute.xlu0 %861
        %863 = vrot.lane.b32.xlu0 %v332, 12
        %v864 = vpop.permute.xlu0 %863
        %865 = vrot.lane.b32.xlu0 %v403, 12
        %v866 = vpop.permute.xlu0 %865
        %867 = vrot.lane.b32.xlu0 %v335, 12
        %v868 = vpop.permute.xlu0 %867
        %869 = vrot.lane.b32.xlu0 %v404, 12
        %v870 = vpop.permute.xlu0 %869
        %871 = vrot.lane.b32.xlu0 %v338, 12
        %v872 = vpop.permute.xlu0 %871
        %v906 = vrot.slane %v404, 1
        %v907 = vrot.slane %v338, 1
        %v908 = vsel %vm454, %v906, %v907
        %v909 = vrot.slane %v421, 1
        %v910 = vsel %vm454, %v907, %v909
        %911 = vrot.lane.b32.xlu0 %v462, 16
        %v912 = vpop.permute.xlu0 %911
        %913 = vrot.lane.b32.xlu0 %v464, 16
        %v914 = vpop.permute.xlu0 %913
        %915 = vrot.lane.b32.xlu0 %v467, 16
        %v916 = vpop.permute.xlu0 %915
        %917 = vrot.lane.b32.xlu0 %v469, 16
        %v918 = vpop.permute.xlu0 %917
        %919 = vrot.lane.b32.xlu0 %v472, 16
        %v920 = vpop.permute.xlu0 %919
        %921 = vrot.lane.b32.xlu0 %v474, 16
        %v922 = vpop.permute.xlu0 %921
        %923 = vrot.lane.b32.xlu0 %v477, 16
        %v924 = vpop.permute.xlu0 %923
        %925 = vrot.lane.b32.xlu0 %v479, 16
        %v926 = vpop.permute.xlu0 %925
        %927 = vrot.lane.b32.xlu0 %v482, 16
        %v928 = vpop.permute.xlu0 %927
        %929 = vrot.lane.b32.xlu0 %v484, 16
        %v930 = vpop.permute.xlu0 %929
        %931 = vrot.lane.b32.xlu0 %v487, 16
        %v932 = vpop.permute.xlu0 %931
        %933 = vrot.lane.b32.xlu0 %v489, 16
        %v934 = vpop.permute.xlu0 %933
        %935 = vrot.lane.b32.xlu0 %v492, 16
        %v936 = vpop.permute.xlu0 %935
        %937 = vrot.lane.b32.xlu0 %v494, 16
        %v938 = vpop.permute.xlu0 %937
        %939 = vrot.lane.b32.xlu0 %v497, 16
        %v940 = vpop.permute.xlu0 %939
        %941 = vrot.lane.b32.xlu0 %v499, 16
        %v942 = vpop.permute.xlu0 %941
        %943 = vrot.lane.b32.xlu0 %v502, 16
        %v944 = vpop.permute.xlu0 %943
        %945 = vrot.lane.b32.xlu0 %v504, 16
        %v946 = vpop.permute.xlu0 %945
        %947 = vrot.lane.b32.xlu0 %v507, 16
        %v948 = vpop.permute.xlu0 %947
        %949 = vrot.lane.b32.xlu0 %v509, 16
        %v950 = vpop.permute.xlu0 %949
        %951 = vrot.lane.b32.xlu0 %v512, 16
        %v952 = vpop.permute.xlu0 %951
        %953 = vrot.lane.b32.xlu0 %v514, 16
        %v954 = vpop.permute.xlu0 %953
        %955 = vrot.lane.b32.xlu0 %v517, 16
        %v956 = vpop.permute.xlu0 %955
        %957 = vrot.lane.b32.xlu0 %v519, 16
        %v958 = vpop.permute.xlu0 %957
        %959 = vrot.lane.b32.xlu0 %v522, 16
        %v960 = vpop.permute.xlu0 %959
        %961 = vrot.lane.b32.xlu0 %v524, 16
        %v962 = vpop.permute.xlu0 %961
        %963 = vrot.lane.b32.xlu0 %v527, 16
        %v964 = vpop.permute.xlu0 %963
        %965 = vrot.lane.b32.xlu0 %v529, 16
        %v966 = vpop.permute.xlu0 %965
        %967 = vrot.lane.b32.xlu0 %v532, 16
        %v968 = vpop.permute.xlu0 %967
        %969 = vrot.lane.b32.xlu0 %v534, 16
        %v970 = vpop.permute.xlu0 %969
        %971 = vrot.lane.b32.xlu0 %v908, 16
        %v972 = vpop.permute.xlu0 %971
        %973 = vrot.lane.b32.xlu0 %v910, 16
        %v974 = vpop.permute.xlu0 %973
        %v1007 = vrot.slane %v404, 2
        %v1008 = vrot.slane %v338, 2
        %v1009 = vsel %vm631, %v1007, %v1008
        %v1010 = vrot.slane %v421, 2
        %v1011 = vsel %vm631, %v1008, %v1010
        %1012 = vrot.lane.b32.xlu0 %v639, 20
        %v1013 = vpop.permute.xlu0 %1012
        %1014 = vrot.lane.b32.xlu0 %v641, 20
        %v1015 = vpop.permute.xlu0 %1014
        %1016 = vrot.lane.b32.xlu0 %v644, 20
        %v1017 = vpop.permute.xlu0 %1016
        %1018 = vrot.lane.b32.xlu0 %v646, 20
        %v1019 = vpop.permute.xlu0 %1018
        %1020 = vrot.lane.b32.xlu0 %v649, 20
        %v1021 = vpop.permute.xlu0 %1020
        %1022 = vrot.lane.b32.xlu0 %v651, 20
        %v1023 = vpop.permute.xlu0 %1022
        %1024 = vrot.lane.b32.xlu0 %v654, 20
        %v1025 = vpop.permute.xlu0 %1024
        %1026 = vrot.lane.b32.xlu0 %v656, 20
        %v1027 = vpop.permute.xlu0 %1026
        %1028 = vrot.lane.b32.xlu0 %v659, 20
        %v1029 = vpop.permute.xlu0 %1028
        %1030 = vrot.lane.b32.xlu0 %v661, 20
        %v1031 = vpop.permute.xlu0 %1030
        %1032 = vrot.lane.b32.xlu0 %v664, 20
        %v1033 = vpop.permute.xlu0 %1032
        %1034 = vrot.lane.b32.xlu0 %v666, 20
        %v1035 = vpop.permute.xlu0 %1034
        %1036 = vrot.lane.b32.xlu0 %v669, 20
        %v1037 = vpop.permute.xlu0 %1036
        %1038 = vrot.lane.b32.xlu0 %v671, 20
        %v1039 = vpop.permute.xlu0 %1038
        %1040 = vrot.lane.b32.xlu0 %v674, 20
        %v1041 = vpop.permute.xlu0 %1040
        %1042 = vrot.lane.b32.xlu0 %v676, 20
        %v1043 = vpop.permute.xlu0 %1042
        %1044 = vrot.lane.b32.xlu0 %v679, 20
        %v1045 = vpop.permute.xlu0 %1044
        %1046 = vrot.lane.b32.xlu0 %v681, 20
        %v1047 = vpop.permute.xlu0 %1046
        %1048 = vrot.lane.b32.xlu0 %v684, 20
        %v1049 = vpop.permute.xlu0 %1048
        %1050 = vrot.lane.b32.xlu0 %v686, 20
        %v1051 = vpop.permute.xlu0 %1050
        %1052 = vrot.lane.b32.xlu0 %v689, 20
        %v1053 = vpop.permute.xlu0 %1052
        %1054 = vrot.lane.b32.xlu0 %v691, 20
        %v1055 = vpop.permute.xlu0 %1054
        %1056 = vrot.lane.b32.xlu0 %v694, 20
        %v1057 = vpop.permute.xlu0 %1056
        %1058 = vrot.lane.b32.xlu0 %v696, 20
        %v1059 = vpop.permute.xlu0 %1058
        %1060 = vrot.lane.b32.xlu0 %v699, 20
        %v1061 = vpop.permute.xlu0 %1060
        %1062 = vrot.lane.b32.xlu0 %v701, 20
        %v1063 = vpop.permute.xlu0 %1062
        %1064 = vrot.lane.b32.xlu0 %v704, 20
        %v1065 = vpop.permute.xlu0 %1064
        %1066 = vrot.lane.b32.xlu0 %v706, 20
        %v1067 = vpop.permute.xlu0 %1066
        %1068 = vrot.lane.b32.xlu0 %v709, 20
        %v1069 = vpop.permute.xlu0 %1068
        %1070 = vrot.lane.b32.xlu0 %v711, 20
        %v1071 = vpop.permute.xlu0 %1070
        %1072 = vrot.lane.b32.xlu0 %v1009, 20
        %v1073 = vpop.permute.xlu0 %1072
        %1074 = vrot.lane.b32.xlu0 %v1011, 20
        %v1075 = vpop.permute.xlu0 %1074
        %1108 = vrot.lane.b32.xlu0 %v390, 24
        %v1109 = vpop.permute.xlu0 %1108
        %1110 = vrot.lane.b32.xlu0 %v296, 24
        %v1111 = vpop.permute.xlu0 %1110
        %1112 = vrot.lane.b32.xlu0 %v391, 24
        %v1113 = vpop.permute.xlu0 %1112
        %1114 = vrot.lane.b32.xlu0 %v299, 24
        %v1115 = vpop.permute.xlu0 %1114
        %1116 = vrot.lane.b32.xlu0 %v392, 24
        %v1117 = vpop.permute.xlu0 %1116
        %1118 = vrot.lane.b32.xlu0 %v302, 24
        %v1119 = vpop.permute.xlu0 %1118
        %1120 = vrot.lane.b32.xlu0 %v393, 24
        %v1121 = vpop.permute.xlu0 %1120
        %1122 = vrot.lane.b32.xlu0 %v305, 24
        %v1123 = vpop.permute.xlu0 %1122
        %1124 = vrot.lane.b32.xlu0 %v394, 24
        %v1125 = vpop.permute.xlu0 %1124
        %1126 = vrot.lane.b32.xlu0 %v308, 24
        %v1127 = vpop.permute.xlu0 %1126
        %1128 = vrot.lane.b32.xlu0 %v395, 24
        %v1129 = vpop.permute.xlu0 %1128
        %1130 = vrot.lane.b32.xlu0 %v311, 24
        %v1131 = vpop.permute.xlu0 %1130
        %1132 = vrot.lane.b32.xlu0 %v396, 24
        %v1133 = vpop.permute.xlu0 %1132
        %1134 = vrot.lane.b32.xlu0 %v314, 24
        %v1135 = vpop.permute.xlu0 %1134
        %1136 = vrot.lane.b32.xlu0 %v397, 24
        %v1137 = vpop.permute.xlu0 %1136
        %1138 = vrot.lane.b32.xlu0 %v317, 24
        %v1139 = vpop.permute.xlu0 %1138
        %1140 = vrot.lane.b32.xlu0 %v398, 24
        %v1141 = vpop.permute.xlu0 %1140
        %1142 = vrot.lane.b32.xlu0 %v320, 24
        %v1143 = vpop.permute.xlu0 %1142
        %1144 = vrot.lane.b32.xlu0 %v399, 24
        %v1145 = vpop.permute.xlu0 %1144
        %1146 = vrot.lane.b32.xlu0 %v323, 24
        %v1147 = vpop.permute.xlu0 %1146
        %1148 = vrot.lane.b32.xlu0 %v400, 24
        %v1149 = vpop.permute.xlu0 %1148
        %1150 = vrot.lane.b32.xlu0 %v326, 24
        %v1151 = vpop.permute.xlu0 %1150
        %1152 = vrot.lane.b32.xlu0 %v401, 24
        %v1153 = vpop.permute.xlu0 %1152
        %1154 = vrot.lane.b32.xlu0 %v329, 24
        %v1155 = vpop.permute.xlu0 %1154
        %1156 = vrot.lane.b32.xlu0 %v402, 24
        %v1157 = vpop.permute.xlu0 %1156
        %1158 = vrot.lane.b32.xlu0 %v332, 24
        %v1159 = vpop.permute.xlu0 %1158
        %1160 = vrot.lane.b32.xlu0 %v403, 24
        %v1161 = vpop.permute.xlu0 %1160
        %1162 = vrot.lane.b32.xlu0 %v335, 24
        %v1163 = vpop.permute.xlu0 %1162
        %1164 = vrot.lane.b32.xlu0 %v404, 24
        %v1165 = vpop.permute.xlu0 %1164
        %1166 = vrot.lane.b32.xlu0 %v338, 24
        %v1167 = vpop.permute.xlu0 %1166
        %1168 = vrot.lane.b32.xlu0 %v388, 24
        %v1169 = vpop.permute.xlu0 %1168
        %1170 = vrot.lane.b32.xlu0 %v290, 24
        %v1171 = vpop.permute.xlu0 %1170
        %1204 = vrot.lane.b32.xlu0 %v467, 28
        %v1205 = vpop.permute.xlu0 %1204
        %1206 = vrot.lane.b32.xlu0 %v469, 28
        %v1207 = vpop.permute.xlu0 %1206
        %1208 = vrot.lane.b32.xlu0 %v472, 28
        %v1209 = vpop.permute.xlu0 %1208
        %1210 = vrot.lane.b32.xlu0 %v474, 28
        %v1211 = vpop.permute.xlu0 %1210
        %1212 = vrot.lane.b32.xlu0 %v477, 28
        %v1213 = vpop.permute.xlu0 %1212
        %1214 = vrot.lane.b32.xlu0 %v479, 28
        %v1215 = vpop.permute.xlu0 %1214
        %1216 = vrot.lane.b32.xlu0 %v482, 28
        %v1217 = vpop.permute.xlu0 %1216
        %1218 = vrot.lane.b32.xlu0 %v484, 28
        %v1219 = vpop.permute.xlu0 %1218
        %1220 = vrot.lane.b32.xlu0 %v487, 28
        %v1221 = vpop.permute.xlu0 %1220
        %1222 = vrot.lane.b32.xlu0 %v489, 28
        %v1223 = vpop.permute.xlu0 %1222
        %1224 = vrot.lane.b32.xlu0 %v492, 28
        %v1225 = vpop.permute.xlu0 %1224
        %1226 = vrot.lane.b32.xlu0 %v494, 28
        %v1227 = vpop.permute.xlu0 %1226
        %1228 = vrot.lane.b32.xlu0 %v497, 28
        %v1229 = vpop.permute.xlu0 %1228
        %1230 = vrot.lane.b32.xlu0 %v499, 28
        %v1231 = vpop.permute.xlu0 %1230
        %1232 = vrot.lane.b32.xlu0 %v502, 28
        %v1233 = vpop.permute.xlu0 %1232
        %1234 = vrot.lane.b32.xlu0 %v504, 28
        %v1235 = vpop.permute.xlu0 %1234
        %1236 = vrot.lane.b32.xlu0 %v507, 28
        %v1237 = vpop.permute.xlu0 %1236
        %1238 = vrot.lane.b32.xlu0 %v509, 28
        %v1239 = vpop.permute.xlu0 %1238
        %1240 = vrot.lane.b32.xlu0 %v512, 28
        %v1241 = vpop.permute.xlu0 %1240
        %1242 = vrot.lane.b32.xlu0 %v514, 28
        %v1243 = vpop.permute.xlu0 %1242
        %1244 = vrot.lane.b32.xlu0 %v517, 28
        %v1245 = vpop.permute.xlu0 %1244
        %1246 = vrot.lane.b32.xlu0 %v519, 28
        %v1247 = vpop.permute.xlu0 %1246
        %1248 = vrot.lane.b32.xlu0 %v522, 28
        %v1249 = vpop.permute.xlu0 %1248
        %1250 = vrot.lane.b32.xlu0 %v524, 28
        %v1251 = vpop.permute.xlu0 %1250
        %1252 = vrot.lane.b32.xlu0 %v527, 28
        %v1253 = vpop.permute.xlu0 %1252
        %1254 = vrot.lane.b32.xlu0 %v529, 28
        %v1255 = vpop.permute.xlu0 %1254
        %1256 = vrot.lane.b32.xlu0 %v532, 28
        %v1257 = vpop.permute.xlu0 %1256
        %1258 = vrot.lane.b32.xlu0 %v534, 28
        %v1259 = vpop.permute.xlu0 %1258
        %1260 = vrot.lane.b32.xlu0 %v908, 28
        %v1261 = vpop.permute.xlu0 %1260
        %1262 = vrot.lane.b32.xlu0 %v910, 28
        %v1263 = vpop.permute.xlu0 %1262
        %1264 = vrot.lane.b32.xlu0 %v457, 28
        %v1265 = vpop.permute.xlu0 %1264
        %1266 = vrot.lane.b32.xlu0 %v459, 28
        %v1267 = vpop.permute.xlu0 %1266
        %1300 = vrot.lane.b32.xlu0 %v644, 32
        %v1301 = vpop.permute.xlu0 %1300
        %1302 = vrot.lane.b32.xlu0 %v646, 32
        %v1303 = vpop.permute.xlu0 %1302
        %1304 = vrot.lane.b32.xlu0 %v649, 32
        %v1305 = vpop.permute.xlu0 %1304
        %1306 = vrot.lane.b32.xlu0 %v651, 32
        %v1307 = vpop.permute.xlu0 %1306
        %1308 = vrot.lane.b32.xlu0 %v654, 32
        %v1309 = vpop.permute.xlu0 %1308
        %1310 = vrot.lane.b32.xlu0 %v656, 32
        %v1311 = vpop.permute.xlu0 %1310
        %1312 = vrot.lane.b32.xlu0 %v659, 32
        %v1313 = vpop.permute.xlu0 %1312
        %1314 = vrot.lane.b32.xlu0 %v661, 32
        %v1315 = vpop.permute.xlu0 %1314
        %1316 = vrot.lane.b32.xlu0 %v664, 32
        %v1317 = vpop.permute.xlu0 %1316
        %1318 = vrot.lane.b32.xlu0 %v666, 32
        %v1319 = vpop.permute.xlu0 %1318
        %1320 = vrot.lane.b32.xlu0 %v669, 32
        %v1321 = vpop.permute.xlu0 %1320
        %1322 = vrot.lane.b32.xlu0 %v671, 32
        %v1323 = vpop.permute.xlu0 %1322
        %1324 = vrot.lane.b32.xlu0 %v674, 32
        %v1325 = vpop.permute.xlu0 %1324
        %1326 = vrot.lane.b32.xlu0 %v676, 32
        %v1327 = vpop.permute.xlu0 %1326
        %1328 = vrot.lane.b32.xlu0 %v679, 32
        %v1329 = vpop.permute.xlu0 %1328
        %1330 = vrot.lane.b32.xlu0 %v681, 32
        %v1331 = vpop.permute.xlu0 %1330
        %1332 = vrot.lane.b32.xlu0 %v684, 32
        %v1333 = vpop.permute.xlu0 %1332
        %1334 = vrot.lane.b32.xlu0 %v686, 32
        %v1335 = vpop.permute.xlu0 %1334
        %1336 = vrot.lane.b32.xlu0 %v689, 32
        %v1337 = vpop.permute.xlu0 %1336
        %1338 = vrot.lane.b32.xlu0 %v691, 32
        %v1339 = vpop.permute.xlu0 %1338
        %1340 = vrot.lane.b32.xlu0 %v694, 32
        %v1341 = vpop.permute.xlu0 %1340
        %1342 = vrot.lane.b32.xlu0 %v696, 32
        %v1343 = vpop.permute.xlu0 %1342
        %1344 = vrot.lane.b32.xlu0 %v699, 32
        %v1345 = vpop.permute.xlu0 %1344
        %1346 = vrot.lane.b32.xlu0 %v701, 32
        %v1347 = vpop.permute.xlu0 %1346
        %1348 = vrot.lane.b32.xlu0 %v704, 32
        %v1349 = vpop.permute.xlu0 %1348
        %1350 = vrot.lane.b32.xlu0 %v706, 32
        %v1351 = vpop.permute.xlu0 %1350
        %1352 = vrot.lane.b32.xlu0 %v709, 32
        %v1353 = vpop.permute.xlu0 %1352
        %1354 = vrot.lane.b32.xlu0 %v711, 32
        %v1355 = vpop.permute.xlu0 %1354
        %1356 = vrot.lane.b32.xlu0 %v1009, 32
        %v1357 = vpop.permute.xlu0 %1356
        %1358 = vrot.lane.b32.xlu0 %v1011, 32
        %v1359 = vpop.permute.xlu0 %1358
        %1360 = vrot.lane.b32.xlu0 %v634, 32
        %v1361 = vpop.permute.xlu0 %1360
        %1362 = vrot.lane.b32.xlu0 %v636, 32
        %v1363 = vpop.permute.xlu0 %1362
        %vm1396 = vcmask 31744
        %v1397 = vsel %vm1396, %v388, %v536
        %v1398 = vsel %vm1396, %v290, %v538
        %v1399 = vsel %vm1396, %v389, %v540
        %v1400 = vsel %vm1396, %v293, %v542
        %v1401 = vsel %vm1396, %v390, %v544
        %v1402 = vsel %vm1396, %v296, %v546
        %v1403 = vsel %vm1396, %v391, %v548
        %v1404 = vsel %vm1396, %v299, %v550
        %v1405 = vsel %vm1396, %v392, %v552
        %v1406 = vsel %vm1396, %v302, %v554
        %v1407 = vsel %vm1396, %v393, %v556
        %v1408 = vsel %vm1396, %v305, %v558
        %v1409 = vsel %vm1396, %v394, %v560
        %v1410 = vsel %vm1396, %v308, %v562
        %v1411 = vsel %vm1396, %v395, %v564
        %v1412 = vsel %vm1396, %v311, %v566
        %v1413 = vsel %vm1396, %v396, %v568
        %v1414 = vsel %vm1396, %v314, %v570
        %v1415 = vsel %vm1396, %v397, %v572
        %v1416 = vsel %vm1396, %v317, %v574
        %v1417 = vsel %vm1396, %v398, %v576
        %v1418 = vsel %vm1396, %v320, %v578
        %v1419 = vsel %vm1396, %v399, %v580
        %v1420 = vsel %vm1396, %v323, %v582
        %v1421 = vsel %vm1396, %v400, %v584
        %v1422 = vsel %vm1396, %v326, %v586
        %v1423 = vsel %vm1396, %v401, %v588
        %v1424 = vsel %vm1396, %v329, %v590
        %v1425 = vsel %vm1396, %v402, %v592
        %v1426 = vsel %vm1396, %v332, %v594
        %v1427 = vsel %vm1396, %v403, %v596
        %v1428 = vsel %vm1396, %v335, %v598
        %vm1429 = vcmask 64512
        %v1430 = vsel %vm1429, %v1397, %v713
        %v1431 = vsel %vm1429, %v1398, %v715
        %v1432 = vsel %vm1429, %v1399, %v717
        %v1433 = vsel %vm1429, %v1400, %v719
        %v1434 = vsel %vm1429, %v1401, %v721
        %v1435 = vsel %vm1429, %v1402, %v723
        %v1436 = vsel %vm1429, %v1403, %v725
        %v1437 = vsel %vm1429, %v1404, %v727
        %v1438 = vsel %vm1429, %v1405, %v729
        %v1439 = vsel %vm1429, %v1406, %v731
        %v1440 = vsel %vm1429, %v1407, %v733
        %v1441 = vsel %vm1429, %v1408, %v735
        %v1442 = vsel %vm1429, %v1409, %v737
        %v1443 = vsel %vm1429, %v1410, %v739
        %v1444 = vsel %vm1429, %v1411, %v741
        %v1445 = vsel %vm1429, %v1412, %v743
        %v1446 = vsel %vm1429, %v1413, %v745
        %v1447 = vsel %vm1429, %v1414, %v747
        %v1448 = vsel %vm1429, %v1415, %v749
        %v1449 = vsel %vm1429, %v1416, %v751
        %v1450 = vsel %vm1429, %v1417, %v753
        %v1451 = vsel %vm1429, %v1418, %v755
        %v1452 = vsel %vm1429, %v1419, %v757
        %v1453 = vsel %vm1429, %v1420, %v759
        %v1454 = vsel %vm1429, %v1421, %v761
        %v1455 = vsel %vm1429, %v1422, %v763
        %v1456 = vsel %vm1429, %v1423, %v765
        %v1457 = vsel %vm1429, %v1424, %v767
        %v1458 = vsel %vm1429, %v1425, %v769
        %v1459 = vsel %vm1429, %v1426, %v771
        %v1460 = vsel %vm1429, %v1427, %v773
        %v1461 = vsel %vm1429, %v1428, %v775
        %vm1462 = vcmask 97280
        %v1463 = vsel %vm1462, %v1430, %v810
        %v1464 = vsel %vm1462, %v1431, %v812
        %v1465 = vsel %vm1462, %v1432, %v814
        %v1466 = vsel %vm1462, %v1433, %v816
        %v1467 = vsel %vm1462, %v1434, %v818
        %v1468 = vsel %vm1462, %v1435, %v820
        %v1469 = vsel %vm1462, %v1436, %v822
        %v1470 = vsel %vm1462, %v1437, %v824
        %v1471 = vsel %vm1462, %v1438, %v826
        %v1472 = vsel %vm1462, %v1439, %v828
        %v1473 = vsel %vm1462, %v1440, %v830
        %v1474 = vsel %vm1462, %v1441, %v832
        %v1475 = vsel %vm1462, %v1442, %v834
        %v1476 = vsel %vm1462, %v1443, %v836
        %v1477 = vsel %vm1462, %v1444, %v838
        %v1478 = vsel %vm1462, %v1445, %v840
        %v1479 = vsel %vm1462, %v1446, %v842
        %v1480 = vsel %vm1462, %v1447, %v844
        %v1481 = vsel %vm1462, %v1448, %v846
        %v1482 = vsel %vm1462, %v1449, %v848
        %v1483 = vsel %vm1462, %v1450, %v850
        %v1484 = vsel %vm1462, %v1451, %v852
        %v1485 = vsel %vm1462, %v1452, %v854
        %v1486 = vsel %vm1462, %v1453, %v856
        %v1487 = vsel %vm1462, %v1454, %v858
        %v1488 = vsel %vm1462, %v1455, %v860
        %v1489 = vsel %vm1462, %v1456, %v862
        %v1490 = vsel %vm1462, %v1457, %v864
        %v1491 = vsel %vm1462, %v1458, %v866
        %v1492 = vsel %vm1462, %v1459, %v868
        %v1493 = vsel %vm1462, %v1460, %v870
        %v1494 = vsel %vm1462, %v1461, %v872
        %vm1495 = vcmask 130048
        %v1496 = vsel %vm1495, %v1463, %v912
        %v1497 = vsel %vm1495, %v1464, %v914
        %v1498 = vsel %vm1495, %v1465, %v916
        %v1499 = vsel %vm1495, %v1466, %v918
        %v1500 = vsel %vm1495, %v1467, %v920
        %v1501 = vsel %vm1495, %v1468, %v922
        %v1502 = vsel %vm1495, %v1469, %v924
        %v1503 = vsel %vm1495, %v1470, %v926
        %v1504 = vsel %vm1495, %v1471, %v928
        %v1505 = vsel %vm1495, %v1472, %v930
        %v1506 = vsel %vm1495, %v1473, %v932
        %v1507 = vsel %vm1495, %v1474, %v934
        %v1508 = vsel %vm1495, %v1475, %v936
        %v1509 = vsel %vm1495, %v1476, %v938
        %v1510 = vsel %vm1495, %v1477, %v940
        %v1511 = vsel %vm1495, %v1478, %v942
        %v1512 = vsel %vm1495, %v1479, %v944
        %v1513 = vsel %vm1495, %v1480, %v946
        %v1514 = vsel %vm1495, %v1481, %v948
        %v1515 = vsel %vm1495, %v1482, %v950
        %v1516 = vsel %vm1495, %v1483, %v952
        %v1517 = vsel %vm1495, %v1484, %v954
        %v1518 = vsel %vm1495, %v1485, %v956
        %v1519 = vsel %vm1495, %v1486, %v958
        %v1520 = vsel %vm1495, %v1487, %v960
        %v1521 = vsel %vm1495, %v1488, %v962
        %v1522 = vsel %vm1495, %v1489, %v964
        %v1523 = vsel %vm1495, %v1490, %v966
        %v1524 = vsel %vm1495, %v1491, %v968
        %v1525 = vsel %vm1495, %v1492, %v970
        %v1526 = vsel %vm1495, %v1493, %v972
        %v1527 = vsel %vm1495, %v1494, %v974
        %vm1528 = vcmask 162816
        %v1529 = vsel %vm1528, %v1496, %v1013
        %v1530 = vsel %vm1528, %v1497, %v1015
        %v1531 = vsel %vm1528, %v1498, %v1017
        %v1532 = vsel %vm1528, %v1499, %v1019
        %v1533 = vsel %vm1528, %v1500, %v1021
        %v1534 = vsel %vm1528, %v1501, %v1023
        %v1535 = vsel %vm1528, %v1502, %v1025
        %v1536 = vsel %vm1528, %v1503, %v1027
        %v1537 = vsel %vm1528, %v1504, %v1029
        %v1538 = vsel %vm1528, %v1505, %v1031
        %v1539 = vsel %vm1528, %v1506, %v1033
        %v1540 = vsel %vm1528, %v1507, %v1035
        %v1541 = vsel %vm1528, %v1508, %v1037
        %v1542 = vsel %vm1528, %v1509, %v1039
        %v1543 = vsel %vm1528, %v1510, %v1041
        %v1544 = vsel %vm1528, %v1511, %v1043
        %v1545 = vsel %vm1528, %v1512, %v1045
        %v1546 = vsel %vm1528, %v1513, %v1047
        %v1547 = vsel %vm1528, %v1514, %v1049
        %v1548 = vsel %vm1528, %v1515, %v1051
        %v1549 = vsel %vm1528, %v1516, %v1053
        %v1550 = vsel %vm1528, %v1517, %v1055
        %v1551 = vsel %vm1528, %v1518, %v1057
        %v1552 = vsel %vm1528, %v1519, %v1059
        %v1553 = vsel %vm1528, %v1520, %v1061
        %v1554 = vsel %vm1528, %v1521, %v1063
        %v1555 = vsel %vm1528, %v1522, %v1065
        %v1556 = vsel %vm1528, %v1523, %v1067
        %v1557 = vsel %vm1528, %v1524, %v1069
        %v1558 = vsel %vm1528, %v1525, %v1071
        %v1559 = vsel %vm1528, %v1526, %v1073
        %v1560 = vsel %vm1528, %v1527, %v1075
        %vm1561 = vcmask 195584
        %v1562 = vsel %vm1561, %v1529, %v1109
        %v1563 = vsel %vm1561, %v1530, %v1111
        %v1564 = vsel %vm1561, %v1531, %v1113
        %v1565 = vsel %vm1561, %v1532, %v1115
        %v1566 = vsel %vm1561, %v1533, %v1117
        %v1567 = vsel %vm1561, %v1534, %v1119
        %v1568 = vsel %vm1561, %v1535, %v1121
        %v1569 = vsel %vm1561, %v1536, %v1123
        %v1570 = vsel %vm1561, %v1537, %v1125
        %v1571 = vsel %vm1561, %v1538, %v1127
        %v1572 = vsel %vm1561, %v1539, %v1129
        %v1573 = vsel %vm1561, %v1540, %v1131
        %v1574 = vsel %vm1561, %v1541, %v1133
        %v1575 = vsel %vm1561, %v1542, %v1135
        %v1576 = vsel %vm1561, %v1543, %v1137
        %v1577 = vsel %vm1561, %v1544, %v1139
        %v1578 = vsel %vm1561, %v1545, %v1141
        %v1579 = vsel %vm1561, %v1546, %v1143
        %v1580 = vsel %vm1561, %v1547, %v1145
        %v1581 = vsel %vm1561, %v1548, %v1147
        %v1582 = vsel %vm1561, %v1549, %v1149
        %v1583 = vsel %vm1561, %v1550, %v1151
        %v1584 = vsel %vm1561, %v1551, %v1153
        %v1585 = vsel %vm1561, %v1552, %v1155
        %v1586 = vsel %vm1561, %v1553, %v1157
        %v1587 = vsel %vm1561, %v1554, %v1159
        %v1588 = vsel %vm1561, %v1555, %v1161
        %v1589 = vsel %vm1561, %v1556, %v1163
        %v1590 = vsel %vm1561, %v1557, %v1165
        %v1591 = vsel %vm1561, %v1558, %v1167
        %v1592 = vsel %vm1561, %v1559, %v1169
        %v1593 = vsel %vm1561, %v1560, %v1171
        %vm1594 = vcmask 228352
        %v1595 = vsel %vm1594, %v1562, %v1205
        %v1596 = vsel %vm1594, %v1563, %v1207
        %v1597 = vsel %vm1594, %v1564, %v1209
        %v1598 = vsel %vm1594, %v1565, %v1211
        %v1599 = vsel %vm1594, %v1566, %v1213
        %v1600 = vsel %vm1594, %v1567, %v1215
        %v1601 = vsel %vm1594, %v1568, %v1217
        %v1602 = vsel %vm1594, %v1569, %v1219
        %v1603 = vsel %vm1594, %v1570, %v1221
        %v1604 = vsel %vm1594, %v1571, %v1223
        %v1605 = vsel %vm1594, %v1572, %v1225
        %v1606 = vsel %vm1594, %v1573, %v1227
        %v1607 = vsel %vm1594, %v1574, %v1229
        %v1608 = vsel %vm1594, %v1575, %v1231
        %v1609 = vsel %vm1594, %v1576, %v1233
        %v1610 = vsel %vm1594, %v1577, %v1235
        %v1611 = vsel %vm1594, %v1578, %v1237
        %v1612 = vsel %vm1594, %v1579, %v1239
        %v1613 = vsel %vm1594, %v1580, %v1241
        %v1614 = vsel %vm1594, %v1581, %v1243
        %v1615 = vsel %vm1594, %v1582, %v1245
        %v1616 = vsel %vm1594, %v1583, %v1247
        %v1617 = vsel %vm1594, %v1584, %v1249
        %v1618 = vsel %vm1594, %v1585, %v1251
        %v1619 = vsel %vm1594, %v1586, %v1253
        %v1620 = vsel %vm1594, %v1587, %v1255
        %v1621 = vsel %vm1594, %v1588, %v1257
        %v1622 = vsel %vm1594, %v1589, %v1259
        %v1623 = vsel %vm1594, %v1590, %v1261
        %v1624 = vsel %vm1594, %v1591, %v1263
        %v1625 = vsel %vm1594, %v1592, %v1265
        %v1626 = vsel %vm1594, %v1593, %v1267
        %vm1627 = vcmask 261120
        %v1628 = vsel %vm1627, %v1595, %v1301
        %v1629 = vsel %vm1627, %v1596, %v1303
        %v1630 = vsel %vm1627, %v1597, %v1305
        %v1631 = vsel %vm1627, %v1598, %v1307
        %v1632 = vsel %vm1627, %v1599, %v1309
        %v1633 = vsel %vm1627, %v1600, %v1311
        %v1634 = vsel %vm1627, %v1601, %v1313
        %v1635 = vsel %vm1627, %v1602, %v1315
        %v1636 = vsel %vm1627, %v1603, %v1317
        %v1637 = vsel %vm1627, %v1604, %v1319
        %v1638 = vsel %vm1627, %v1605, %v1321
        %v1639 = vsel %vm1627, %v1606, %v1323
        %v1640 = vsel %vm1627, %v1607, %v1325
        %v1641 = vsel %vm1627, %v1608, %v1327
        %v1642 = vsel %vm1627, %v1609, %v1329
        %v1643 = vsel %vm1627, %v1610, %v1331
        %v1644 = vsel %vm1627, %v1611, %v1333
        %v1645 = vsel %vm1627, %v1612, %v1335
        %v1646 = vsel %vm1627, %v1613, %v1337
        %v1647 = vsel %vm1627, %v1614, %v1339
        %v1648 = vsel %vm1627, %v1615, %v1341
        %v1649 = vsel %vm1627, %v1616, %v1343
        %v1650 = vsel %vm1627, %v1617, %v1345
        %v1651 = vsel %vm1627, %v1618, %v1347
        %v1652 = vsel %vm1627, %v1619, %v1349
        %v1653 = vsel %vm1627, %v1620, %v1351
        %v1654 = vsel %vm1627, %v1621, %v1353
        %v1655 = vsel %vm1627, %v1622, %v1355
        %v1656 = vsel %vm1627, %v1623, %v1357
        %v1657 = vsel %vm1627, %v1624, %v1359
        %v1658 = vsel %vm1627, %v1625, %v1361
        %v1659 = vsel %vm1627, %v1626, %v1363
        %v1660 = vld [vmem:[%s1] sm:$0xff]
        %v1661 = vld [vmem:[%s1 + $0x8] sm:$0xff]
        %v1662 = vld [vmem:[%s1 + $0x10] sm:$0xff]
        %v1663 = vld [vmem:[%s1 + $0x18] sm:$0xff]
        %v1664 = vld [vmem:[%s1 + $0x20] sm:$0xf]
        %v1665 = vld [vmem:[%s2] sm:$0x1]
        %v1667 = vlaneseq
        %v1668 = vshrl.u32 %v1667, 7
        %v1669 = vsub.s32 0, %v1668
        %v1670 = vrot.slane %v1665, %v1669
        %vm1672 = vcmask 293888
        %v1674 = vsel %vm1672, %v1628, 0
        %v1677 = vsel %vm1672, %v1629, 0
        %v1680 = vsel %vm1672, %v1630, 0
        %v1683 = vsel %vm1672, %v1631, 0
        %v1686 = vsel %vm1672, %v1632, 0
        %v1689 = vsel %vm1672, %v1633, 0
        %v1692 = vsel %vm1672, %v1634, 0
        %v1695 = vsel %vm1672, %v1635, 0
        %v1698 = vsel %vm1672, %v1636, 0
        %v1701 = vsel %vm1672, %v1637, 0
        %v1704 = vsel %vm1672, %v1638, 0
        %v1707 = vsel %vm1672, %v1639, 0
        %v1710 = vsel %vm1672, %v1640, 0
        %v1713 = vsel %vm1672, %v1641, 0
        %v1716 = vsel %vm1672, %v1642, 0
        %v1719 = vsel %vm1672, %v1643, 0
        %v1722 = vsel %vm1672, %v1644, 0
        %v1725 = vsel %vm1672, %v1645, 0
        %v1728 = vsel %vm1672, %v1646, 0
        %v1731 = vsel %vm1672, %v1647, 0
        %v1734 = vsel %vm1672, %v1648, 0
        %v1737 = vsel %vm1672, %v1649, 0
        %v1740 = vsel %vm1672, %v1650, 0
        %v1743 = vsel %vm1672, %v1651, 0
        %v1746 = vsel %vm1672, %v1652, 0
        %v1749 = vsel %vm1672, %v1653, 0
        %v1752 = vsel %vm1672, %v1654, 0
        %v1755 = vsel %vm1672, %v1655, 0
        %v1758 = vsel %vm1672, %v1656, 0
        %v1761 = vsel %vm1672, %v1657, 0
        %v1764 = vsel %vm1672, %v1658, 0
        %v1767 = vsel %vm1672, %v1659, 0
        %vm1769 = vcmask 1043456
        %v1771 = vsel %vm1769, %v1664, 0
        %1773 = vmatprep.subr.mxu0 0.0
        %1774 = vmatpush1.msra.mxu0 0.0
        %1775 = vmatprep.subr.mxu0 0.0
        %1776 = vmatpush1.msra.mxu0 0.0
        %1777 = vmatprep.subr.mxu0 0.0
        %1778 = vmatpush1.msra.mxu0 0.0
        %1779 = vmatprep.subr.mxu0 0.0
        %1780 = vmatpush1.msra.mxu0 0.0
        %1781 = vmatprep.subr.mxu0 0.0
        %1782 = vmatpush1.msra.mxu0 0.0
        %1783 = vmatprep.subr.mxu0 0.0
        %1784 = vmatpush1.msra.mxu0 0.0
        %1785 = vmatprep.subr.mxu0 0.0
        %1786 = vmatpush1.msra.mxu0 0.0
        %1787 = vmatprep.subr.mxu0 0.0
        %1788 = vmatpush1.msra.mxu0 0.0
        %1789 = vmatprep.subr.mxu0 0.0
        %1790 = vmatpush1.msra.mxu0 0.0
        %1791 = vmatprep.subr.mxu0 0.0
        %1792 = vmatpush1.msra.mxu0 0.0
        %1793 = vmatprep.subr.mxu0 0.0
        %1794 = vmatpush1.msra.mxu0 0.0
        %1795 = vmatprep.subr.mxu0 0.0
        %1796 = vmatpush1.msra.mxu0 %v1771
        %1797 = vmatprep.subr.mxu0 0.0
        %1798 = vmatpush1.msra.mxu0 %v1663
        %1799 = vmatprep.subr.mxu0 0.0
        %1800 = vmatpush1.msra.mxu0 %v1662
        %1801 = vmatprep.subr.mxu0 0.0
        %1802 = vmatpush1.msra.mxu0 %v1661
        %1803 = vmatprep.subr.mxu0 0.0
        %1804 = vmatpush1.msra.mxu0 %v1660
        %1805 = vmatprep.subr.mxu0 0.0
        %1806 = vmatpush2.msra.mxu0 0.0
        %1807 = vmatprep.subr.mxu0 0.0
        %1808 = vmatpush2.msra.mxu0 0.0
        %1809 = vmatprep.subr.mxu0 0.0
        %1810 = vmatpush2.msra.mxu0 0.0
        %1811 = vmatprep.subr.mxu0 0.0
        %1812 = vmatpush2.msra.mxu0 0.0
        %1813 = vmatprep.subr.mxu0 0.0
        %1814 = vmatpush2.msra.mxu0 0.0
        %1815 = vmatprep.subr.mxu0 0.0
        %1816 = vmatpush2.msra.mxu0 0.0
        %1817 = vmatprep.subr.mxu0 0.0
        %1818 = vmatpush2.msra.mxu0 0.0
        %1819 = vmatprep.subr.mxu0 0.0
        %1820 = vmatpush2.msra.mxu0 0.0
        %1821 = vmatprep.subr.mxu0 0.0
        %1822 = vmatpush2.msra.mxu0 0.0
        %1823 = vmatprep.subr.mxu0 0.0
        %1824 = vmatpush2.msra.mxu0 0.0
        %1825 = vmatprep.subr.mxu0 0.0
        %1826 = vmatpush2.msra.mxu0 0.0
        %1827 = vmatprep.subr.mxu0 0.0
        %1828 = vmatpush2.msra.mxu0 0.0
        %1829 = vmatprep.subr.mxu0 0.0
        %1830 = vmatpush2.msra.mxu0 0.0
        %1831 = vmatprep.subr.mxu0 0.0
        %1832 = vmatpush2.msra.mxu0 0.0
        %1833 = vmatprep.subr.mxu0 0.0
        %1834 = vmatpush2.msra.mxu0 0.0
        %1835 = vmatprep.subr.mxu0 0.0
        %1836 = vmatpush2.msra.mxu0 0.0
        %1837 = vmatprep.mubr.f32.mxu0 0.0
        %1838 = vmatmul.mubr.f32.gmra.mxu0 %v1674
        %v1839 = vpop.f32.mrf.mxu0
        %v1840 = vadd.f32 %v1670, %v1839
        %v1841 = vpop.f32.mrf.mxu0
        %1842 = vmatprep.mubr.f32.mxu0 0.0
        %1843 = vmatmul.mubr.f32.gmra.mxu0 %v1677
        %v1844 = vpop.f32.mrf.mxu0
        %v1845 = vadd.f32 %v1670, %v1844
        %v1846 = vpop.f32.mrf.mxu0
        %1847 = vmatprep.mubr.f32.mxu0 0.0
        %1848 = vmatmul.mubr.f32.gmra.mxu0 %v1680
        %v1849 = vpop.f32.mrf.mxu0
        %v1850 = vadd.f32 %v1670, %v1849
        %v1851 = vpop.f32.mrf.mxu0
        %1852 = vmatprep.mubr.f32.mxu0 0.0
        %1853 = vmatmul.mubr.f32.gmra.mxu0 %v1683
        %v1854 = vpop.f32.mrf.mxu0
        %v1855 = vadd.f32 %v1670, %v1854
        %v1856 = vpop.f32.mrf.mxu0
        %1857 = vmatprep.mubr.f32.mxu0 0.0
        %1858 = vmatmul.mubr.f32.gmra.mxu0 %v1686
        %v1859 = vpop.f32.mrf.mxu0
        %v1860 = vadd.f32 %v1670, %v1859
        %v1861 = vpop.f32.mrf.mxu0
        %1862 = vmatprep.mubr.f32.mxu0 0.0
        %1863 = vmatmul.mubr.f32.gmra.mxu0 %v1689
        %v1864 = vpop.f32.mrf.mxu0
        %v1865 = vadd.f32 %v1670, %v1864
        %v1866 = vpop.f32.mrf.mxu0
        %1867 = vmatprep.mubr.f32.mxu0 0.0
        %1868 = vmatmul.mubr.f32.gmra.mxu0 %v1692
        %v1869 = vpop.f32.mrf.mxu0
        %v1870 = vadd.f32 %v1670, %v1869
        %v1871 = vpop.f32.mrf.mxu0
        %1872 = vmatprep.mubr.f32.mxu0 0.0
        %1873 = vmatmul.mubr.f32.gmra.mxu0 %v1695
        %v1874 = vpop.f32.mrf.mxu0
        %v1875 = vadd.f32 %v1670, %v1874
        %v1876 = vpop.f32.mrf.mxu0
        %1877 = vmatprep.mubr.f32.mxu0 0.0
        %1878 = vmatmul.mubr.f32.gmra.mxu0 %v1698
        %v1879 = vpop.f32.mrf.mxu0
        %v1880 = vadd.f32 %v1670, %v1879
        %v1881 = vpop.f32.mrf.mxu0
        %1882 = vmatprep.mubr.f32.mxu0 0.0
        %1883 = vmatmul.mubr.f32.gmra.mxu0 %v1701
        %v1884 = vpop.f32.mrf.mxu0
        %v1885 = vadd.f32 %v1670, %v1884
        %v1886 = vpop.f32.mrf.mxu0
        %1887 = vmatprep.mubr.f32.mxu0 0.0
        %1888 = vmatmul.mubr.f32.gmra.mxu0 %v1704
        %v1889 = vpop.f32.mrf.mxu0
        %v1890 = vadd.f32 %v1670, %v1889
        %v1891 = vpop.f32.mrf.mxu0
        %1892 = vmatprep.mubr.f32.mxu0 0.0
        %1893 = vmatmul.mubr.f32.gmra.mxu0 %v1707
        %v1894 = vpop.f32.mrf.mxu0
        %v1895 = vadd.f32 %v1670, %v1894
        %v1896 = vpop.f32.mrf.mxu0
        %1897 = vmatprep.mubr.f32.mxu0 0.0
        %1898 = vmatmul.mubr.f32.gmra.mxu0 %v1710
        %v1899 = vpop.f32.mrf.mxu0
        %v1900 = vadd.f32 %v1670, %v1899
        %v1901 = vpop.f32.mrf.mxu0
        %1902 = vmatprep.mubr.f32.mxu0 0.0
        %1903 = vmatmul.mubr.f32.gmra.mxu0 %v1713
        %v1904 = vpop.f32.mrf.mxu0
        %v1905 = vadd.f32 %v1670, %v1904
        %v1906 = vpop.f32.mrf.mxu0
        %1907 = vmatprep.mubr.f32.mxu0 0.0
        %1908 = vmatmul.mubr.f32.gmra.mxu0 %v1716
        %v1909 = vpop.f32.mrf.mxu0
        %v1910 = vadd.f32 %v1670, %v1909
        %v1911 = vpop.f32.mrf.mxu0
        %1912 = vmatprep.mubr.f32.mxu0 0.0
        %1913 = vmatmul.mubr.f32.gmra.mxu0 %v1719
        %v1914 = vpop.f32.mrf.mxu0
        %v1915 = vadd.f32 %v1670, %v1914
        %v1916 = vpop.f32.mrf.mxu0
        %1917 = vmatprep.mubr.f32.mxu0 0.0
        %1918 = vmatmul.mubr.f32.gmra.mxu0 %v1722
        %v1919 = vpop.f32.mrf.mxu0
        %v1920 = vadd.f32 %v1670, %v1919
        %v1921 = vpop.f32.mrf.mxu0
        %1922 = vmatprep.mubr.f32.mxu0 0.0
        %1923 = vmatmul.mubr.f32.gmra.mxu0 %v1725
        %v1924 = vpop.f32.mrf.mxu0
        %v1925 = vadd.f32 %v1670, %v1924
        %v1926 = vpop.f32.mrf.mxu0
        %1927 = vmatprep.mubr.f32.mxu0 0.0
        %1928 = vmatmul.mubr.f32.gmra.mxu0 %v1728
        %v1929 = vpop.f32.mrf.mxu0
        %v1930 = vadd.f32 %v1670, %v1929
        %v1931 = vpop.f32.mrf.mxu0
        %1932 = vmatprep.mubr.f32.mxu0 0.0
        %1933 = vmatmul.mubr.f32.gmra.mxu0 %v1731
        %v1934 = vpop.f32.mrf.mxu0
        %v1935 = vadd.f32 %v1670, %v1934
        %v1936 = vpop.f32.mrf.mxu0
        %1937 = vmatprep.mubr.f32.mxu0 0.0
        %1938 = vmatmul.mubr.f32.gmra.mxu0 %v1734
        %v1939 = vpop.f32.mrf.mxu0
        %v1940 = vadd.f32 %v1670, %v1939
        %v1941 = vpop.f32.mrf.mxu0
        %1942 = vmatprep.mubr.f32.mxu0 0.0
        %1943 = vmatmul.mubr.f32.gmra.mxu0 %v1737
        %v1944 = vpop.f32.mrf.mxu0
        %v1945 = vadd.f32 %v1670, %v1944
        %v1946 = vpop.f32.mrf.mxu0
        %1947 = vmatprep.mubr.f32.mxu0 0.0
        %1948 = vmatmul.mubr.f32.gmra.mxu0 %v1740
        %v1949 = vpop.f32.mrf.mxu0
        %v1950 = vadd.f32 %v1670, %v1949
        %v1951 = vpop.f32.mrf.mxu0
        %1952 = vmatprep.mubr.f32.mxu0 0.0
        %1953 = vmatmul.mubr.f32.gmra.mxu0 %v1743
        %v1954 = vpop.f32.mrf.mxu0
        %v1955 = vadd.f32 %v1670, %v1954
        %v1956 = vpop.f32.mrf.mxu0
        %1957 = vmatprep.mubr.f32.mxu0 0.0
        %1958 = vmatmul.mubr.f32.gmra.mxu0 %v1746
        %v1959 = vpop.f32.mrf.mxu0
        %v1960 = vadd.f32 %v1670, %v1959
        %v1961 = vpop.f32.mrf.mxu0
        %1962 = vmatprep.mubr.f32.mxu0 0.0
        %1963 = vmatmul.mubr.f32.gmra.mxu0 %v1749
        %v1964 = vpop.f32.mrf.mxu0
        %v1965 = vadd.f32 %v1670, %v1964
        %v1966 = vpop.f32.mrf.mxu0
        %1967 = vmatprep.mubr.f32.mxu0 0.0
        %1968 = vmatmul.mubr.f32.gmra.mxu0 %v1752
        %v1969 = vpop.f32.mrf.mxu0
        %v1970 = vadd.f32 %v1670, %v1969
        %v1971 = vpop.f32.mrf.mxu0
        %1972 = vmatprep.mubr.f32.mxu0 0.0
        %1973 = vmatmul.mubr.f32.gmra.mxu0 %v1755
        %v1974 = vpop.f32.mrf.mxu0
        %v1975 = vadd.f32 %v1670, %v1974
        %v1976 = vpop.f32.mrf.mxu0
        %1977 = vmatprep.mubr.f32.mxu0 0.0
        %1978 = vmatmul.mubr.f32.gmra.mxu0 %v1758
        %v1979 = vpop.f32.mrf.mxu0
        %v1980 = vadd.f32 %v1670, %v1979
        %v1981 = vpop.f32.mrf.mxu0
        %1982 = vmatprep.mubr.f32.mxu0 0.0
        %1983 = vmatmul.mubr.f32.gmra.mxu0 %v1761
        %v1984 = vpop.f32.mrf.mxu0
        %v1985 = vadd.f32 %v1670, %v1984
        %v1986 = vpop.f32.mrf.mxu0
        %1987 = vmatprep.mubr.f32.mxu0 0.0
        %1988 = vmatmul.mubr.f32.gmra.mxu0 %v1764
        %v1989 = vpop.f32.mrf.mxu0
        %v1990 = vadd.f32 %v1670, %v1989
        %v1991 = vpop.f32.mrf.mxu0
        %1992 = vmatprep.mubr.f32.mxu0 0.0
        %1993 = vmatmul.mubr.f32.gmra.mxu0 %v1767
        %v1994 = vpop.f32.mrf.mxu0
        %v1995 = vadd.f32 %v1670, %v1994
        %v1996 = vpop.f32.mrf.mxu0
        %1997 = vdwg.mxu0
        %v1998 = vmax.f32 %v1840, 0.0
        %v1999 = vmax.f32 %v1845, 0.0
        %v2000 = vmax.f32 %v1850, 0.0
        %v2001 = vmax.f32 %v1855, 0.0
        %v2002 = vmax.f32 %v1860, 0.0
        %v2003 = vmax.f32 %v1865, 0.0
        %v2004 = vmax.f32 %v1870, 0.0
        %v2005 = vmax.f32 %v1875, 0.0
        %v2006 = vmax.f32 %v1880, 0.0
        %v2007 = vmax.f32 %v1885, 0.0
        %v2008 = vmax.f32 %v1890, 0.0
        %v2009 = vmax.f32 %v1895, 0.0
        %v2010 = vmax.f32 %v1900, 0.0
        %v2011 = vmax.f32 %v1905, 0.0
        %v2012 = vmax.f32 %v1910, 0.0
        %v2013 = vmax.f32 %v1915, 0.0
        %v2014 = vmax.f32 %v1920, 0.0
        %v2015 = vmax.f32 %v1925, 0.0
        %v2016 = vmax.f32 %v1930, 0.0
        %v2017 = vmax.f32 %v1935, 0.0
        %v2018 = vmax.f32 %v1940, 0.0
        %v2019 = vmax.f32 %v1945, 0.0
        %v2020 = vmax.f32 %v1950, 0.0
        %v2021 = vmax.f32 %v1955, 0.0
        %v2022 = vmax.f32 %v1960, 0.0
        %v2023 = vmax.f32 %v1965, 0.0
        %v2024 = vmax.f32 %v1970, 0.0
        %v2025 = vmax.f32 %v1975, 0.0
        %v2026 = vmax.f32 %v1980, 0.0
        %v2027 = vmax.f32 %v1985, 0.0
        %v2028 = vmax.f32 %v1990, 0.0
        %v2029 = vmax.f32 %v1995, 0.0
        %v2062 = vrot.slane %v1998, 7
        %v2063 = vrot.slane %v1999, 7
        %v2064 = vsel %vm288, %v2062, %v2063
        %v2065 = vrot.slane %v2000, 7
        %v2066 = vrot.slane %v2001, 7
        %v2067 = vsel %vm288, %v2065, %v2066
        %v2068 = vrot.slane %v2002, 7
        %v2069 = vrot.slane %v2003, 7
        %v2070 = vsel %vm288, %v2068, %v2069
        %v2071 = vrot.slane %v2004, 7
        %v2072 = vrot.slane %v2005, 7
        %v2073 = vsel %vm288, %v2071, %v2072
        %v2074 = vrot.slane %v2006, 7
        %v2075 = vrot.slane %v2007, 7
        %v2076 = vsel %vm288, %v2074, %v2075
        %v2077 = vrot.slane %v2008, 7
        %v2078 = vrot.slane %v2009, 7
        %v2079 = vsel %vm288, %v2077, %v2078
        %v2080 = vrot.slane %v2010, 7
        %v2081 = vrot.slane %v2011, 7
        %v2082 = vsel %vm288, %v2080, %v2081
        %v2083 = vrot.slane %v2012, 7
        %v2084 = vrot.slane %v2013, 7
        %v2085 = vsel %vm288, %v2083, %v2084
        %v2086 = vrot.slane %v2014, 7
        %v2087 = vrot.slane %v2015, 7
        %v2088 = vsel %vm288, %v2086, %v2087
        %v2089 = vrot.slane %v2016, 7
        %v2090 = vrot.slane %v2017, 7
        %v2091 = vsel %vm288, %v2089, %v2090
        %v2092 = vrot.slane %v2018, 7
        %v2093 = vrot.slane %v2019, 7
        %v2094 = vsel %vm288, %v2092, %v2093
        %v2095 = vrot.slane %v2020, 7
        %v2096 = vrot.slane %v2021, 7
        %v2097 = vsel %vm288, %v2095, %v2096
        %v2098 = vrot.slane %v2022, 7
        %v2099 = vrot.slane %v2023, 7
        %v2100 = vsel %vm288, %v2098, %v2099
        %v2101 = vrot.slane %v2024, 7
        %v2102 = vrot.slane %v2025, 7
        %v2103 = vsel %vm288, %v2101, %v2102
        %v2104 = vrot.slane %v2026, 7
        %v2105 = vrot.slane %v2027, 7
        %v2106 = vsel %vm288, %v2104, %v2105
        %v2107 = vrot.slane %v2028, 7
        %v2108 = vrot.slane %v2029, 7
        %v2109 = vsel %vm288, %v2107, %v2108
        %v2157 = vsel %vm288, 0.0, %v2062
        %v2158 = vsel %vm288, 0.0, %v2065
        %v2159 = vsel %vm288, 0.0, %v2068
        %v2160 = vsel %vm288, 0.0, %v2071
        %v2161 = vsel %vm288, 0.0, %v2074
        %v2162 = vsel %vm288, 0.0, %v2077
        %v2163 = vsel %vm288, 0.0, %v2080
        %v2164 = vsel %vm288, 0.0, %v2083
        %v2165 = vsel %vm288, 0.0, %v2086
        %v2166 = vsel %vm288, 0.0, %v2089
        %v2167 = vsel %vm288, 0.0, %v2092
        %v2168 = vsel %vm288, 0.0, %v2095
        %v2169 = vsel %vm288, 0.0, %v2098
        %v2170 = vsel %vm288, 0.0, %v2101
        %v2171 = vsel %vm288, 0.0, %v2104
        %v2172 = vsel %vm288, 0.0, %v2107
        %v2173 = vsel %vm288, %v2063, 0.0
        %v2174 = vsel %vm288, %v2066, 0.0
        %v2175 = vsel %vm288, %v2069, 0.0
        %v2176 = vsel %vm288, %v2072, 0.0
        %v2177 = vsel %vm288, %v2075, 0.0
        %v2178 = vsel %vm288, %v2078, 0.0
        %v2179 = vsel %vm288, %v2081, 0.0
        %v2180 = vsel %vm288, %v2084, 0.0
        %v2181 = vsel %vm288, %v2087, 0.0
        %v2182 = vsel %vm288, %v2090, 0.0
        %v2183 = vsel %vm288, %v2093, 0.0
        %v2184 = vsel %vm288, %v2096, 0.0
        %v2185 = vsel %vm288, %v2099, 0.0
        %v2186 = vsel %vm288, %v2102, 0.0
        %v2187 = vsel %vm288, %v2105, 0.0
        %v2188 = vsel %vm288, %v2108, 0.0
        %v2219 = vrot.slane %v2157, 1
        %v2220 = vrot.slane %v2064, 1
        %v2221 = vsel %vm454, %v2219, %v2220
        %v2222 = vrot.slane %v2173, 1
        %v2223 = vsel %vm454, %v2220, %v2222
        %v2224 = vrot.slane %v2158, 1
        %v2225 = vrot.slane %v2067, 1
        %v2226 = vsel %vm454, %v2224, %v2225
        %v2227 = vrot.slane %v2174, 1
        %v2228 = vsel %vm454, %v2225, %v2227
        %v2229 = vrot.slane %v2159, 1
        %v2230 = vrot.slane %v2070, 1
        %v2231 = vsel %vm454, %v2229, %v2230
        %v2232 = vrot.slane %v2175, 1
        %v2233 = vsel %vm454, %v2230, %v2232
        %v2234 = vrot.slane %v2160, 1
        %v2235 = vrot.slane %v2073, 1
        %v2236 = vsel %vm454, %v2234, %v2235
        %v2237 = vrot.slane %v2176, 1
        %v2238 = vsel %vm454, %v2235, %v2237
        %v2239 = vrot.slane %v2161, 1
        %v2240 = vrot.slane %v2076, 1
        %v2241 = vsel %vm454, %v2239, %v2240
        %v2242 = vrot.slane %v2177, 1
        %v2243 = vsel %vm454, %v2240, %v2242
        %v2244 = vrot.slane %v2162, 1
        %v2245 = vrot.slane %v2079, 1
        %v2246 = vsel %vm454, %v2244, %v2245
        %v2247 = vrot.slane %v2178, 1
        %v2248 = vsel %vm454, %v2245, %v2247
        %v2249 = vrot.slane %v2163, 1
        %v2250 = vrot.slane %v2082, 1
        %v2251 = vsel %vm454, %v2249, %v2250
        %v2252 = vrot.slane %v2179, 1
        %v2253 = vsel %vm454, %v2250, %v2252
        %v2254 = vrot.slane %v2164, 1
        %v2255 = vrot.slane %v2085, 1
        %v2256 = vsel %vm454, %v2254, %v2255
        %v2257 = vrot.slane %v2180, 1
        %v2258 = vsel %vm454, %v2255, %v2257
        %v2259 = vrot.slane %v2165, 1
        %v2260 = vrot.slane %v2088, 1
        %v2261 = vsel %vm454, %v2259, %v2260
        %v2262 = vrot.slane %v2181, 1
        %v2263 = vsel %vm454, %v2260, %v2262
        %v2264 = vrot.slane %v2166, 1
        %v2265 = vrot.slane %v2091, 1
        %v2266 = vsel %vm454, %v2264, %v2265
        %v2267 = vrot.slane %v2182, 1
        %v2268 = vsel %vm454, %v2265, %v2267
        %v2269 = vrot.slane %v2167, 1
        %v2270 = vrot.slane %v2094, 1
        %v2271 = vsel %vm454, %v2269, %v2270
        %v2272 = vrot.slane %v2183, 1
        %v2273 = vsel %vm454, %v2270, %v2272
        %v2274 = vrot.slane %v2168, 1
        %v2275 = vrot.slane %v2097, 1
        %v2276 = vsel %vm454, %v2274, %v2275
        %v2277 = vrot.slane %v2184, 1
        %v2278 = vsel %vm454, %v2275, %v2277
        %v2279 = vrot.slane %v2169, 1
        %v2280 = vrot.slane %v2100, 1
        %v2281 = vsel %vm454, %v2279, %v2280
        %v2282 = vrot.slane %v2185, 1
        %v2283 = vsel %vm454, %v2280, %v2282
        %v2284 = vrot.slane %v2170, 1
        %v2285 = vrot.slane %v2103, 1
        %v2286 = vsel %vm454, %v2284, %v2285
        %v2287 = vrot.slane %v2186, 1
        %v2288 = vsel %vm454, %v2285, %v2287
        %v2289 = vrot.slane %v2171, 1
        %v2290 = vrot.slane %v2106, 1
        %v2291 = vsel %vm454, %v2289, %v2290
        %v2292 = vrot.slane %v2187, 1
        %v2293 = vsel %vm454, %v2290, %v2292
        %2294 = vrot.lane.b32.xlu0 %v457, 8
        %v2295 = vpop.permute.xlu0 %2294
        %2296 = vrot.lane.b32.xlu0 %v459, 8
        %v2297 = vpop.permute.xlu0 %2296
        %2298 = vrot.lane.b32.xlu0 %v2221, 8
        %v2299 = vpop.permute.xlu0 %2298
        %2300 = vrot.lane.b32.xlu0 %v2223, 8
        %v2301 = vpop.permute.xlu0 %2300
        %2302 = vrot.lane.b32.xlu0 %v2226, 8
        %v2303 = vpop.permute.xlu0 %2302
        %2304 = vrot.lane.b32.xlu0 %v2228, 8
        %v2305 = vpop.permute.xlu0 %2304
        %2306 = vrot.lane.b32.xlu0 %v2231, 8
        %v2307 = vpop.permute.xlu0 %2306
        %2308 = vrot.lane.b32.xlu0 %v2233, 8
        %v2309 = vpop.permute.xlu0 %2308
        %2310 = vrot.lane.b32.xlu0 %v2236, 8
        %v2311 = vpop.permute.xlu0 %2310
        %2312 = vrot.lane.b32.xlu0 %v2238, 8
        %v2313 = vpop.permute.xlu0 %2312
        %2314 = vrot.lane.b32.xlu0 %v2241, 8
        %v2315 = vpop.permute.xlu0 %2314
        %2316 = vrot.lane.b32.xlu0 %v2243, 8
        %v2317 = vpop.permute.xlu0 %2316
        %2318 = vrot.lane.b32.xlu0 %v2246, 8
        %v2319 = vpop.permute.xlu0 %2318
        %2320 = vrot.lane.b32.xlu0 %v2248, 8
        %v2321 = vpop.permute.xlu0 %2320
        %2322 = vrot.lane.b32.xlu0 %v2251, 8
        %v2323 = vpop.permute.xlu0 %2322
        %2324 = vrot.lane.b32.xlu0 %v2253, 8
        %v2325 = vpop.permute.xlu0 %2324
        %2326 = vrot.lane.b32.xlu0 %v2256, 8
        %v2327 = vpop.permute.xlu0 %2326
        %2328 = vrot.lane.b32.xlu0 %v2258, 8
        %v2329 = vpop.permute.xlu0 %2328
        %2330 = vrot.lane.b32.xlu0 %v2261, 8
        %v2331 = vpop.permute.xlu0 %2330
        %2332 = vrot.lane.b32.xlu0 %v2263, 8
        %v2333 = vpop.permute.xlu0 %2332
        %2334 = vrot.lane.b32.xlu0 %v2266, 8
        %v2335 = vpop.permute.xlu0 %2334
        %2336 = vrot.lane.b32.xlu0 %v2268, 8
        %v2337 = vpop.permute.xlu0 %2336
        %2338 = vrot.lane.b32.xlu0 %v2271, 8
        %v2339 = vpop.permute.xlu0 %2338
        %2340 = vrot.lane.b32.xlu0 %v2273, 8
        %v2341 = vpop.permute.xlu0 %2340
        %2342 = vrot.lane.b32.xlu0 %v2276, 8
        %v2343 = vpop.permute.xlu0 %2342
        %2344 = vrot.lane.b32.xlu0 %v2278, 8
        %v2345 = vpop.permute.xlu0 %2344
        %2346 = vrot.lane.b32.xlu0 %v2281, 8
        %v2347 = vpop.permute.xlu0 %2346
        %2348 = vrot.lane.b32.xlu0 %v2283, 8
        %v2349 = vpop.permute.xlu0 %2348
        %2350 = vrot.lane.b32.xlu0 %v2286, 8
        %v2351 = vpop.permute.xlu0 %2350
        %2352 = vrot.lane.b32.xlu0 %v2288, 8
        %v2353 = vpop.permute.xlu0 %2352
        %2354 = vrot.lane.b32.xlu0 %v2291, 8
        %v2355 = vpop.permute.xlu0 %2354
        %2356 = vrot.lane.b32.xlu0 %v2293, 8
        %v2357 = vpop.permute.xlu0 %2356
        %v2390 = vrot.slane %v2157, 2
        %v2391 = vrot.slane %v2064, 2
        %v2392 = vsel %vm631, %v2390, %v2391
        %v2393 = vrot.slane %v2173, 2
        %v2394 = vsel %vm631, %v2391, %v2393
        %v2395 = vrot.slane %v2158, 2
        %v2396 = vrot.slane %v2067, 2
        %v2397 = vsel %vm631, %v2395, %v2396
        %v2398 = vrot.slane %v2174, 2
        %v2399 = vsel %vm631, %v2396, %v2398
        %v2400 = vrot.slane %v2159, 2
        %v2401 = vrot.slane %v2070, 2
        %v2402 = vsel %vm631, %v2400, %v2401
        %v2403 = vrot.slane %v2175, 2
        %v2404 = vsel %vm631, %v2401, %v2403
        %v2405 = vrot.slane %v2160, 2
        %v2406 = vrot.slane %v2073, 2
        %v2407 = vsel %vm631, %v2405, %v2406
        %v2408 = vrot.slane %v2176, 2
        %v2409 = vsel %vm631, %v2406, %v2408
        %v2410 = vrot.slane %v2161, 2
        %v2411 = vrot.slane %v2076, 2
        %v2412 = vsel %vm631, %v2410, %v2411
        %v2413 = vrot.slane %v2177, 2
        %v2414 = vsel %vm631, %v2411, %v2413
        %v2415 = vrot.slane %v2162, 2
        %v2416 = vrot.slane %v2079, 2
        %v2417 = vsel %vm631, %v2415, %v2416
        %v2418 = vrot.slane %v2178, 2
        %v2419 = vsel %vm631, %v2416, %v2418
        %v2420 = vrot.slane %v2163, 2
        %v2421 = vrot.slane %v2082, 2
        %v2422 = vsel %vm631, %v2420, %v2421
        %v2423 = vrot.slane %v2179, 2
        %v2424 = vsel %vm631, %v2421, %v2423
        %v2425 = vrot.slane %v2164, 2
        %v2426 = vrot.slane %v2085, 2
        %v2427 = vsel %vm631, %v2425, %v2426
        %v2428 = vrot.slane %v2180, 2
        %v2429 = vsel %vm631, %v2426, %v2428
        %v2430 = vrot.slane %v2165, 2
        %v2431 = vrot.slane %v2088, 2
        %v2432 = vsel %vm631, %v2430, %v2431
        %v2433 = vrot.slane %v2181, 2
        %v2434 = vsel %vm631, %v2431, %v2433
        %v2435 = vrot.slane %v2166, 2
        %v2436 = vrot.slane %v2091, 2
        %v2437 = vsel %vm631, %v2435, %v2436
        %v2438 = vrot.slane %v2182, 2
        %v2439 = vsel %vm631, %v2436, %v2438
        %v2440 = vrot.slane %v2167, 2
        %v2441 = vrot.slane %v2094, 2
        %v2442 = vsel %vm631, %v2440, %v2441
        %v2443 = vrot.slane %v2183, 2
        %v2444 = vsel %vm631, %v2441, %v2443
        %v2445 = vrot.slane %v2168, 2
        %v2446 = vrot.slane %v2097, 2
        %v2447 = vsel %vm631, %v2445, %v2446
        %v2448 = vrot.slane %v2184, 2
        %v2449 = vsel %vm631, %v2446, %v2448
        %v2450 = vrot.slane %v2169, 2
        %v2451 = vrot.slane %v2100, 2
        %v2452 = vsel %vm631, %v2450, %v2451
        %v2453 = vrot.slane %v2185, 2
        %v2454 = vsel %vm631, %v2451, %v2453
        %v2455 = vrot.slane %v2170, 2
        %v2456 = vrot.slane %v2103, 2
        %v2457 = vsel %vm631, %v2455, %v2456
        %v2458 = vrot.slane %v2186, 2
        %v2459 = vsel %vm631, %v2456, %v2458
        %v2460 = vrot.slane %v2171, 2
        %v2461 = vrot.slane %v2106, 2
        %v2462 = vsel %vm631, %v2460, %v2461
        %v2463 = vrot.slane %v2187, 2
        %v2464 = vsel %vm631, %v2461, %v2463
        %2465 = vrot.lane.b32.xlu0 %v634, 16
        %v2466 = vpop.permute.xlu0 %2465
        %2467 = vrot.lane.b32.xlu0 %v636, 16
        %v2468 = vpop.permute.xlu0 %2467
        %2469 = vrot.lane.b32.xlu0 %v2392, 16
        %v2470 = vpop.permute.xlu0 %2469
        %2471 = vrot.lane.b32.xlu0 %v2394, 16
        %v2472 = vpop.permute.xlu0 %2471
        %2473 = vrot.lane.b32.xlu0 %v2397, 16
        %v2474 = vpop.permute.xlu0 %2473
        %2475 = vrot.lane.b32.xlu0 %v2399, 16
        %v2476 = vpop.permute.xlu0 %2475
        %2477 = vrot.lane.b32.xlu0 %v2402, 16
        %v2478 = vpop.permute.xlu0 %2477
        %2479 = vrot.lane.b32.xlu0 %v2404, 16
        %v2480 = vpop.permute.xlu0 %2479
        %2481 = vrot.lane.b32.xlu0 %v2407, 16
        %v2482 = vpop.permute.xlu0 %2481
        %2483 = vrot.lane.b32.xlu0 %v2409, 16
        %v2484 = vpop.permute.xlu0 %2483
        %2485 = vrot.lane.b32.xlu0 %v2412, 16
        %v2486 = vpop.permute.xlu0 %2485
        %2487 = vrot.lane.b32.xlu0 %v2414, 16
        %v2488 = vpop.permute.xlu0 %2487
        %2489 = vrot.lane.b32.xlu0 %v2417, 16
        %v2490 = vpop.permute.xlu0 %2489
        %2491 = vrot.lane.b32.xlu0 %v2419, 16
        %v2492 = vpop.permute.xlu0 %2491
        %2493 = vrot.lane.b32.xlu0 %v2422, 16
        %v2494 = vpop.permute.xlu0 %2493
        %2495 = vrot.lane.b32.xlu0 %v2424, 16
        %v2496 = vpop.permute.xlu0 %2495
        %2497 = vrot.lane.b32.xlu0 %v2427, 16
        %v2498 = vpop.permute.xlu0 %2497
        %2499 = vrot.lane.b32.xlu0 %v2429, 16
        %v2500 = vpop.permute.xlu0 %2499
        %2501 = vrot.lane.b32.xlu0 %v2432, 16
        %v2502 = vpop.permute.xlu0 %2501
        %2503 = vrot.lane.b32.xlu0 %v2434, 16
        %v2504 = vpop.permute.xlu0 %2503
        %2505 = vrot.lane.b32.xlu0 %v2437, 16
        %v2506 = vpop.permute.xlu0 %2505
        %2507 = vrot.lane.b32.xlu0 %v2439, 16
        %v2508 = vpop.permute.xlu0 %2507
        %2509 = vrot.lane.b32.xlu0 %v2442, 16
        %v2510 = vpop.permute.xlu0 %2509
        %2511 = vrot.lane.b32.xlu0 %v2444, 16
        %v2512 = vpop.permute.xlu0 %2511
        %2513 = vrot.lane.b32.xlu0 %v2447, 16
        %v2514 = vpop.permute.xlu0 %2513
        %2515 = vrot.lane.b32.xlu0 %v2449, 16
        %v2516 = vpop.permute.xlu0 %2515
        %2517 = vrot.lane.b32.xlu0 %v2452, 16
        %v2518 = vpop.permute.xlu0 %2517
        %2519 = vrot.lane.b32.xlu0 %v2454, 16
        %v2520 = vpop.permute.xlu0 %2519
        %2521 = vrot.lane.b32.xlu0 %v2457, 16
        %v2522 = vpop.permute.xlu0 %2521
        %2523 = vrot.lane.b32.xlu0 %v2459, 16
        %v2524 = vpop.permute.xlu0 %2523
        %2525 = vrot.lane.b32.xlu0 %v2462, 16
        %v2526 = vpop.permute.xlu0 %2525
        %2527 = vrot.lane.b32.xlu0 %v2464, 16
        %v2528 = vpop.permute.xlu0 %2527
        %2562 = vrot.lane.b32.xlu0 %v2157, 24
        %v2563 = vpop.permute.xlu0 %2562
        %2564 = vrot.lane.b32.xlu0 %v2064, 24
        %v2565 = vpop.permute.xlu0 %2564
        %2566 = vrot.lane.b32.xlu0 %v2158, 24
        %v2567 = vpop.permute.xlu0 %2566
        %2568 = vrot.lane.b32.xlu0 %v2067, 24
        %v2569 = vpop.permute.xlu0 %2568
        %2570 = vrot.lane.b32.xlu0 %v2159, 24
        %v2571 = vpop.permute.xlu0 %2570
        %2572 = vrot.lane.b32.xlu0 %v2070, 24
        %v2573 = vpop.permute.xlu0 %2572
        %2574 = vrot.lane.b32.xlu0 %v2160, 24
        %v2575 = vpop.permute.xlu0 %2574
        %2576 = vrot.lane.b32.xlu0 %v2073, 24
        %v2577 = vpop.permute.xlu0 %2576
        %2578 = vrot.lane.b32.xlu0 %v2161, 24
        %v2579 = vpop.permute.xlu0 %2578
        %2580 = vrot.lane.b32.xlu0 %v2076, 24
        %v2581 = vpop.permute.xlu0 %2580
        %2582 = vrot.lane.b32.xlu0 %v2162, 24
        %v2583 = vpop.permute.xlu0 %2582
        %2584 = vrot.lane.b32.xlu0 %v2079, 24
        %v2585 = vpop.permute.xlu0 %2584
        %2586 = vrot.lane.b32.xlu0 %v2163, 24
        %v2587 = vpop.permute.xlu0 %2586
        %2588 = vrot.lane.b32.xlu0 %v2082, 24
        %v2589 = vpop.permute.xlu0 %2588
        %2590 = vrot.lane.b32.xlu0 %v2164, 24
        %v2591 = vpop.permute.xlu0 %2590
        %2592 = vrot.lane.b32.xlu0 %v2085, 24
        %v2593 = vpop.permute.xlu0 %2592
        %2594 = vrot.lane.b32.xlu0 %v2165, 24
        %v2595 = vpop.permute.xlu0 %2594
        %2596 = vrot.lane.b32.xlu0 %v2088, 24
        %v2597 = vpop.permute.xlu0 %2596
        %2598 = vrot.lane.b32.xlu0 %v2166, 24
        %v2599 = vpop.permute.xlu0 %2598
        %2600 = vrot.lane.b32.xlu0 %v2091, 24
        %v2601 = vpop.permute.xlu0 %2600
        %2602 = vrot.lane.b32.xlu0 %v2167, 24
        %v2603 = vpop.permute.xlu0 %2602
        %2604 = vrot.lane.b32.xlu0 %v2094, 24
        %v2605 = vpop.permute.xlu0 %2604
        %2606 = vrot.lane.b32.xlu0 %v2168, 24
        %v2607 = vpop.permute.xlu0 %2606
        %2608 = vrot.lane.b32.xlu0 %v2097, 24
        %v2609 = vpop.permute.xlu0 %2608
        %2610 = vrot.lane.b32.xlu0 %v2169, 24
        %v2611 = vpop.permute.xlu0 %2610
        %2612 = vrot.lane.b32.xlu0 %v2100, 24
        %v2613 = vpop.permute.xlu0 %2612
        %2614 = vrot.lane.b32.xlu0 %v2170, 24
        %v2615 = vpop.permute.xlu0 %2614
        %2616 = vrot.lane.b32.xlu0 %v2103, 24
        %v2617 = vpop.permute.xlu0 %2616
        %2618 = vrot.lane.b32.xlu0 %v2171, 24
        %v2619 = vpop.permute.xlu0 %2618
        %2620 = vrot.lane.b32.xlu0 %v2106, 24
        %v2621 = vpop.permute.xlu0 %2620
        %2622 = vrot.lane.b32.xlu0 %v2172, 24
        %v2623 = vpop.permute.xlu0 %2622
        %2624 = vrot.lane.b32.xlu0 %v2109, 24
        %v2625 = vpop.permute.xlu0 %2624
        %v2659 = vrot.slane %v2172, 1
        %v2660 = vrot.slane %v2109, 1
        %v2661 = vsel %vm454, %v2659, %v2660
        %v2662 = vrot.slane %v2188, 1
        %v2663 = vsel %vm454, %v2660, %v2662
        %2664 = vrot.lane.b32.xlu0 %v2221, 32
        %v2665 = vpop.permute.xlu0 %2664
        %2666 = vrot.lane.b32.xlu0 %v2223, 32
        %v2667 = vpop.permute.xlu0 %2666
        %2668 = vrot.lane.b32.xlu0 %v2226, 32
        %v2669 = vpop.permute.xlu0 %2668
        %2670 = vrot.lane.b32.xlu0 %v2228, 32
        %v2671 = vpop.permute.xlu0 %2670
        %2672 = vrot.lane.b32.xlu0 %v2231, 32
        %v2673 = vpop.permute.xlu0 %2672
        %2674 = vrot.lane.b32.xlu0 %v2233, 32
        %v2675 = vpop.permute.xlu0 %2674
        %2676 = vrot.lane.b32.xlu0 %v2236, 32
        %v2677 = vpop.permute.xlu0 %2676
        %2678 = vrot.lane.b32.xlu0 %v2238, 32
        %v2679 = vpop.permute.xlu0 %2678
        %2680 = vrot.lane.b32.xlu0 %v2241, 32
        %v2681 = vpop.permute.xlu0 %2680
        %2682 = vrot.lane.b32.xlu0 %v2243, 32
        %v2683 = vpop.permute.xlu0 %2682
        %2684 = vrot.lane.b32.xlu0 %v2246, 32
        %v2685 = vpop.permute.xlu0 %2684
        %2686 = vrot.lane.b32.xlu0 %v2248, 32
        %v2687 = vpop.permute.xlu0 %2686
        %2688 = vrot.lane.b32.xlu0 %v2251, 32
        %v2689 = vpop.permute.xlu0 %2688
        %2690 = vrot.lane.b32.xlu0 %v2253, 32
        %v2691 = vpop.permute.xlu0 %2690
        %2692 = vrot.lane.b32.xlu0 %v2256, 32
        %v2693 = vpop.permute.xlu0 %2692
        %2694 = vrot.lane.b32.xlu0 %v2258, 32
        %v2695 = vpop.permute.xlu0 %2694
        %2696 = vrot.lane.b32.xlu0 %v2261, 32
        %v2697 = vpop.permute.xlu0 %2696
        %2698 = vrot.lane.b32.xlu0 %v2263, 32
        %v2699 = vpop.permute.xlu0 %2698
        %2700 = vrot.lane.b32.xlu0 %v2266, 32
        %v2701 = vpop.permute.xlu0 %2700
        %2702 = vrot.lane.b32.xlu0 %v2268, 32
        %v2703 = vpop.permute.xlu0 %2702
        %2704 = vrot.lane.b32.xlu0 %v2271, 32
        %v2705 = vpop.permute.xlu0 %2704
        %2706 = vrot.lane.b32.xlu0 %v2273, 32
        %v2707 = vpop.permute.xlu0 %2706
        %2708 = vrot.lane.b32.xlu0 %v2276, 32
        %v2709 = vpop.permute.xlu0 %2708
        %2710 = vrot.lane.b32.xlu0 %v2278, 32
        %v2711 = vpop.permute.xlu0 %2710
        %2712 = vrot.lane.b32.xlu0 %v2281, 32
        %v2713 = vpop.permute.xlu0 %2712
        %2714 = vrot.lane.b32.xlu0 %v2283, 32
        %v2715 = vpop.permute.xlu0 %2714
        %2716 = vrot.lane.b32.xlu0 %v2286, 32
        %v2717 = vpop.permute.xlu0 %2716
        %2718 = vrot.lane.b32.xlu0 %v2288, 32
        %v2719 = vpop.permute.xlu0 %2718
        %2720 = vrot.lane.b32.xlu0 %v2291, 32
        %v2721 = vpop.permute.xlu0 %2720
        %2722 = vrot.lane.b32.xlu0 %v2293, 32
        %v2723 = vpop.permute.xlu0 %2722
        %2724 = vrot.lane.b32.xlu0 %v2661, 32
        %v2725 = vpop.permute.xlu0 %2724
        %2726 = vrot.lane.b32.xlu0 %v2663, 32
        %v2727 = vpop.permute.xlu0 %2726
        %v2760 = vrot.slane %v2172, 2
        %v2761 = vrot.slane %v2109, 2
        %v2762 = vsel %vm631, %v2760, %v2761
        %v2763 = vrot.slane %v2188, 2
        %v2764 = vsel %vm631, %v2761, %v2763
        %2765 = vrot.lane.b32.xlu0 %v2392, 40
        %v2766 = vpop.permute.xlu0 %2765
        %2767 = vrot.lane.b32.xlu0 %v2394, 40
        %v2768 = vpop.permute.xlu0 %2767
        %2769 = vrot.lane.b32.xlu0 %v2397, 40
        %v2770 = vpop.permute.xlu0 %2769
        %2771 = vrot.lane.b32.xlu0 %v2399, 40
        %v2772 = vpop.permute.xlu0 %2771
        %2773 = vrot.lane.b32.xlu0 %v2402, 40
        %v2774 = vpop.permute.xlu0 %2773
        %2775 = vrot.lane.b32.xlu0 %v2404, 40
        %v2776 = vpop.permute.xlu0 %2775
        %2777 = vrot.lane.b32.xlu0 %v2407, 40
        %v2778 = vpop.permute.xlu0 %2777
        %2779 = vrot.lane.b32.xlu0 %v2409, 40
        %v2780 = vpop.permute.xlu0 %2779
        %2781 = vrot.lane.b32.xlu0 %v2412, 40
        %v2782 = vpop.permute.xlu0 %2781
        %2783 = vrot.lane.b32.xlu0 %v2414, 40
        %v2784 = vpop.permute.xlu0 %2783
        %2785 = vrot.lane.b32.xlu0 %v2417, 40
        %v2786 = vpop.permute.xlu0 %2785
        %2787 = vrot.lane.b32.xlu0 %v2419, 40
        %v2788 = vpop.permute.xlu0 %2787
        %2789 = vrot.lane.b32.xlu0 %v2422, 40
        %v2790 = vpop.permute.xlu0 %2789
        %2791 = vrot.lane.b32.xlu0 %v2424, 40
        %v2792 = vpop.permute.xlu0 %2791
        %2793 = vrot.lane.b32.xlu0 %v2427, 40
        %v2794 = vpop.permute.xlu0 %2793
        %2795 = vrot.lane.b32.xlu0 %v2429, 40
        %v2796 = vpop.permute.xlu0 %2795
        %2797 = vrot.lane.b32.xlu0 %v2432, 40
        %v2798 = vpop.permute.xlu0 %2797
        %2799 = vrot.lane.b32.xlu0 %v2434, 40
        %v2800 = vpop.permute.xlu0 %2799
        %2801 = vrot.lane.b32.xlu0 %v2437, 40
        %v2802 = vpop.permute.xlu0 %2801
        %2803 = vrot.lane.b32.xlu0 %v2439, 40
        %v2804 = vpop.permute.xlu0 %2803
        %2805 = vrot.lane.b32.xlu0 %v2442, 40
        %v2806 = vpop.permute.xlu0 %2805
        %2807 = vrot.lane.b32.xlu0 %v2444, 40
        %v2808 = vpop.permute.xlu0 %2807
        %2809 = vrot.lane.b32.xlu0 %v2447, 40
        %v2810 = vpop.permute.xlu0 %2809
        %2811 = vrot.lane.b32.xlu0 %v2449, 40
        %v2812 = vpop.permute.xlu0 %2811
        %2813 = vrot.lane.b32.xlu0 %v2452, 40
        %v2814 = vpop.permute.xlu0 %2813
        %2815 = vrot.lane.b32.xlu0 %v2454, 40
        %v2816 = vpop.permute.xlu0 %2815
        %2817 = vrot.lane.b32.xlu0 %v2457, 40
        %v2818 = vpop.permute.xlu0 %2817
        %2819 = vrot.lane.b32.xlu0 %v2459, 40
        %v2820 = vpop.permute.xlu0 %2819
        %2821 = vrot.lane.b32.xlu0 %v2462, 40
        %v2822 = vpop.permute.xlu0 %2821
        %2823 = vrot.lane.b32.xlu0 %v2464, 40
        %v2824 = vpop.permute.xlu0 %2823
        %2825 = vrot.lane.b32.xlu0 %v2762, 40
        %v2826 = vpop.permute.xlu0 %2825
        %2827 = vrot.lane.b32.xlu0 %v2764, 40
        %v2828 = vpop.permute.xlu0 %2827
        %2861 = vrot.lane.b32.xlu0 %v2158, 48
        %v2862 = vpop.permute.xlu0 %2861
        %2863 = vrot.lane.b32.xlu0 %v2067, 48
        %v2864 = vpop.permute.xlu0 %2863
        %2865 = vrot.lane.b32.xlu0 %v2159, 48
        %v2866 = vpop.permute.xlu0 %2865
        %2867 = vrot.lane.b32.xlu0 %v2070, 48
        %v2868 = vpop.permute.xlu0 %2867
        %2869 = vrot.lane.b32.xlu0 %v2160, 48
        %v2870 = vpop.permute.xlu0 %2869
        %2871 = vrot.lane.b32.xlu0 %v2073, 48
        %v2872 = vpop.permute.xlu0 %2871
        %2873 = vrot.lane.b32.xlu0 %v2161, 48
        %v2874 = vpop.permute.xlu0 %2873
        %2875 = vrot.lane.b32.xlu0 %v2076, 48
        %v2876 = vpop.permute.xlu0 %2875
        %2877 = vrot.lane.b32.xlu0 %v2162, 48
        %v2878 = vpop.permute.xlu0 %2877
        %2879 = vrot.lane.b32.xlu0 %v2079, 48
        %v2880 = vpop.permute.xlu0 %2879
        %2881 = vrot.lane.b32.xlu0 %v2163, 48
        %v2882 = vpop.permute.xlu0 %2881
        %2883 = vrot.lane.b32.xlu0 %v2082, 48
        %v2884 = vpop.permute.xlu0 %2883
        %2885 = vrot.lane.b32.xlu0 %v2164, 48
        %v2886 = vpop.permute.xlu0 %2885
        %2887 = vrot.lane.b32.xlu0 %v2085, 48
        %v2888 = vpop.permute.xlu0 %2887
        %2889 = vrot.lane.b32.xlu0 %v2165, 48
        %v2890 = vpop.permute.xlu0 %2889
        %2891 = vrot.lane.b32.xlu0 %v2088, 48
        %v2892 = vpop.permute.xlu0 %2891
        %2893 = vrot.lane.b32.xlu0 %v2166, 48
        %v2894 = vpop.permute.xlu0 %2893
        %2895 = vrot.lane.b32.xlu0 %v2091, 48
        %v2896 = vpop.permute.xlu0 %2895
        %2897 = vrot.lane.b32.xlu0 %v2167, 48
        %v2898 = vpop.permute.xlu0 %2897
        %2899 = vrot.lane.b32.xlu0 %v2094, 48
        %v2900 = vpop.permute.xlu0 %2899
        %2901 = vrot.lane.b32.xlu0 %v2168, 48
        %v2902 = vpop.permute.xlu0 %2901
        %2903 = vrot.lane.b32.xlu0 %v2097, 48
        %v2904 = vpop.permute.xlu0 %2903
        %2905 = vrot.lane.b32.xlu0 %v2169, 48
        %v2906 = vpop.permute.xlu0 %2905
        %2907 = vrot.lane.b32.xlu0 %v2100, 48
        %v2908 = vpop.permute.xlu0 %2907
        %2909 = vrot.lane.b32.xlu0 %v2170, 48
        %v2910 = vpop.permute.xlu0 %2909
        %2911 = vrot.lane.b32.xlu0 %v2103, 48
        %v2912 = vpop.permute.xlu0 %2911
        %2913 = vrot.lane.b32.xlu0 %v2171, 48
        %v2914 = vpop.permute.xlu0 %2913
        %2915 = vrot.lane.b32.xlu0 %v2106, 48
        %v2916 = vpop.permute.xlu0 %2915
        %2917 = vrot.lane.b32.xlu0 %v2172, 48
        %v2918 = vpop.permute.xlu0 %2917
        %2919 = vrot.lane.b32.xlu0 %v2109, 48
        %v2920 = vpop.permute.xlu0 %2919
        %2921 = vrot.lane.b32.xlu0 %v388, 48
        %v2922 = vpop.permute.xlu0 %2921
        %2923 = vrot.lane.b32.xlu0 %v290, 48
        %v2924 = vpop.permute.xlu0 %2923
        %2957 = vrot.lane.b32.xlu0 %v2226, 56
        %v2958 = vpop.permute.xlu0 %2957
        %2959 = vrot.lane.b32.xlu0 %v2228, 56
        %v2960 = vpop.permute.xlu0 %2959
        %2961 = vrot.lane.b32.xlu0 %v2231, 56
        %v2962 = vpop.permute.xlu0 %2961
        %2963 = vrot.lane.b32.xlu0 %v2233, 56
        %v2964 = vpop.permute.xlu0 %2963
        %2965 = vrot.lane.b32.xlu0 %v2236, 56
        %v2966 = vpop.permute.xlu0 %2965
        %2967 = vrot.lane.b32.xlu0 %v2238, 56
        %v2968 = vpop.permute.xlu0 %2967
        %2969 = vrot.lane.b32.xlu0 %v2241, 56
        %v2970 = vpop.permute.xlu0 %2969
        %2971 = vrot.lane.b32.xlu0 %v2243, 56
        %v2972 = vpop.permute.xlu0 %2971
        %2973 = vrot.lane.b32.xlu0 %v2246, 56
        %v2974 = vpop.permute.xlu0 %2973
        %2975 = vrot.lane.b32.xlu0 %v2248, 56
        %v2976 = vpop.permute.xlu0 %2975
        %2977 = vrot.lane.b32.xlu0 %v2251, 56
        %v2978 = vpop.permute.xlu0 %2977
        %2979 = vrot.lane.b32.xlu0 %v2253, 56
        %v2980 = vpop.permute.xlu0 %2979
        %2981 = vrot.lane.b32.xlu0 %v2256, 56
        %v2982 = vpop.permute.xlu0 %2981
        %2983 = vrot.lane.b32.xlu0 %v2258, 56
        %v2984 = vpop.permute.xlu0 %2983
        %2985 = vrot.lane.b32.xlu0 %v2261, 56
        %v2986 = vpop.permute.xlu0 %2985
        %2987 = vrot.lane.b32.xlu0 %v2263, 56
        %v2988 = vpop.permute.xlu0 %2987
        %2989 = vrot.lane.b32.xlu0 %v2266, 56
        %v2990 = vpop.permute.xlu0 %2989
        %2991 = vrot.lane.b32.xlu0 %v2268, 56
        %v2992 = vpop.permute.xlu0 %2991
        %2993 = vrot.lane.b32.xlu0 %v2271, 56
        %v2994 = vpop.permute.xlu0 %2993
        %2995 = vrot.lane.b32.xlu0 %v2273, 56
        %v2996 = vpop.permute.xlu0 %2995
        %2997 = vrot.lane.b32.xlu0 %v2276, 56
        %v2998 = vpop.permute.xlu0 %2997
        %2999 = vrot.lane.b32.xlu0 %v2278, 56
        %v3000 = vpop.permute.xlu0 %2999
        %3001 = vrot.lane.b32.xlu0 %v2281, 56
        %v3002 = vpop.permute.xlu0 %3001
        %3003 = vrot.lane.b32.xlu0 %v2283, 56
        %v3004 = vpop.permute.xlu0 %3003
        %3005 = vrot.lane.b32.xlu0 %v2286, 56
        %v3006 = vpop.permute.xlu0 %3005
        %3007 = vrot.lane.b32.xlu0 %v2288, 56
        %v3008 = vpop.permute.xlu0 %3007
        %3009 = vrot.lane.b32.xlu0 %v2291, 56
        %v3010 = vpop.permute.xlu0 %3009
        %3011 = vrot.lane.b32.xlu0 %v2293, 56
        %v3012 = vpop.permute.xlu0 %3011
        %3013 = vrot.lane.b32.xlu0 %v2661, 56
        %v3014 = vpop.permute.xlu0 %3013
        %3015 = vrot.lane.b32.xlu0 %v2663, 56
        %v3016 = vpop.permute.xlu0 %3015
        %3017 = vrot.lane.b32.xlu0 %v457, 56
        %v3018 = vpop.permute.xlu0 %3017
        %3019 = vrot.lane.b32.xlu0 %v459, 56
        %v3020 = vpop.permute.xlu0 %3019
        %3053 = vrot.lane.b32.xlu0 %v2397, 64
        %v3054 = vpop.permute.xlu0 %3053
        %3055 = vrot.lane.b32.xlu0 %v2399, 64
        %v3056 = vpop.permute.xlu0 %3055
        %3057 = vrot.lane.b32.xlu0 %v2402, 64
        %v3058 = vpop.permute.xlu0 %3057
        %3059 = vrot.lane.b32.xlu0 %v2404, 64
        %v3060 = vpop.permute.xlu0 %3059
        %3061 = vrot.lane.b32.xlu0 %v2407, 64
        %v3062 = vpop.permute.xlu0 %3061
        %3063 = vrot.lane.b32.xlu0 %v2409, 64
        %v3064 = vpop.permute.xlu0 %3063
        %3065 = vrot.lane.b32.xlu0 %v2412, 64
        %v3066 = vpop.permute.xlu0 %3065
        %3067 = vrot.lane.b32.xlu0 %v2414, 64
        %v3068 = vpop.permute.xlu0 %3067
        %3069 = vrot.lane.b32.xlu0 %v2417, 64
        %v3070 = vpop.permute.xlu0 %3069
        %3071 = vrot.lane.b32.xlu0 %v2419, 64
        %v3072 = vpop.permute.xlu0 %3071
        %3073 = vrot.lane.b32.xlu0 %v2422, 64
        %v3074 = vpop.permute.xlu0 %3073
        %3075 = vrot.lane.b32.xlu0 %v2424, 64
        %v3076 = vpop.permute.xlu0 %3075
        %3077 = vrot.lane.b32.xlu0 %v2427, 64
        %v3078 = vpop.permute.xlu0 %3077
        %3079 = vrot.lane.b32.xlu0 %v2429, 64
        %v3080 = vpop.permute.xlu0 %3079
        %3081 = vrot.lane.b32.xlu0 %v2432, 64
        %v3082 = vpop.permute.xlu0 %3081
        %3083 = vrot.lane.b32.xlu0 %v2434, 64
        %v3084 = vpop.permute.xlu0 %3083
        %3085 = vrot.lane.b32.xlu0 %v2437, 64
        %v3086 = vpop.permute.xlu0 %3085
        %3087 = vrot.lane.b32.xlu0 %v2439, 64
        %v3088 = vpop.permute.xlu0 %3087
        %3089 = vrot.lane.b32.xlu0 %v2442, 64
        %v3090 = vpop.permute.xlu0 %3089
        %3091 = vrot.lane.b32.xlu0 %v2444, 64
        %v3092 = vpop.permute.xlu0 %3091
        %3093 = vrot.lane.b32.xlu0 %v2447, 64
        %v3094 = vpop.permute.xlu0 %3093
        %3095 = vrot.lane.b32.xlu0 %v2449, 64
        %v3096 = vpop.permute.xlu0 %3095
        %3097 = vrot.lane.b32.xlu0 %v2452, 64
        %v3098 = vpop.permute.xlu0 %3097
        %3099 = vrot.lane.b32.xlu0 %v2454, 64
        %v3100 = vpop.permute.xlu0 %3099
        %3101 = vrot.lane.b32.xlu0 %v2457, 64
        %v3102 = vpop.permute.xlu0 %3101
        %3103 = vrot.lane.b32.xlu0 %v2459, 64
        %v3104 = vpop.permute.xlu0 %3103
        %3105 = vrot.lane.b32.xlu0 %v2462, 64
        %v3106 = vpop.permute.xlu0 %3105
        %3107 = vrot.lane.b32.xlu0 %v2464, 64
        %v3108 = vpop.permute.xlu0 %3107
        %3109 = vrot.lane.b32.xlu0 %v2762, 64
        %v3110 = vpop.permute.xlu0 %3109
        %3111 = vrot.lane.b32.xlu0 %v2764, 64
        %v3112 = vpop.permute.xlu0 %3111
        %3113 = vrot.lane.b32.xlu0 %v634, 64
        %v3114 = vpop.permute.xlu0 %3113
        %3115 = vrot.lane.b32.xlu0 %v636, 64
        %v3116 = vpop.permute.xlu0 %3115
        %v3149 = vsel %vm1429, %v388, %v2295
        %v3150 = vsel %vm1429, %v290, %v2297
        %v3151 = vsel %vm1429, %v2157, %v2299
        %v3152 = vsel %vm1429, %v2064, %v2301
        %v3153 = vsel %vm1429, %v2158, %v2303
        %v3154 = vsel %vm1429, %v2067, %v2305
        %v3155 = vsel %vm1429, %v2159, %v2307
        %v3156 = vsel %vm1429, %v2070, %v2309
        %v3157 = vsel %vm1429, %v2160, %v2311
        %v3158 = vsel %vm1429, %v2073, %v2313
        %v3159 = vsel %vm1429, %v2161, %v2315
        %v3160 = vsel %vm1429, %v2076, %v2317
        %v3161 = vsel %vm1429, %v2162, %v2319
        %v3162 = vsel %vm1429, %v2079, %v2321
        %v3163 = vsel %vm1429, %v2163, %v2323
        %v3164 = vsel %vm1429, %v2082, %v2325
        %v3165 = vsel %vm1429, %v2164, %v2327
        %v3166 = vsel %vm1429, %v2085, %v2329
        %v3167 = vsel %vm1429, %v2165, %v2331
        %v3168 = vsel %vm1429, %v2088, %v2333
        %v3169 = vsel %vm1429, %v2166, %v2335
        %v3170 = vsel %vm1429, %v2091, %v2337
        %v3171 = vsel %vm1429, %v2167, %v2339
        %v3172 = vsel %vm1429, %v2094, %v2341
        %v3173 = vsel %vm1429, %v2168, %v2343
        %v3174 = vsel %vm1429, %v2097, %v2345
        %v3175 = vsel %vm1429, %v2169, %v2347
        %v3176 = vsel %vm1429, %v2100, %v2349
        %v3177 = vsel %vm1429, %v2170, %v2351
        %v3178 = vsel %vm1429, %v2103, %v2353
        %v3179 = vsel %vm1429, %v2171, %v2355
        %v3180 = vsel %vm1429, %v2106, %v2357
        %v3181 = vsel %vm1495, %v3149, %v2466
        %v3182 = vsel %vm1495, %v3150, %v2468
        %v3183 = vsel %vm1495, %v3151, %v2470
        %v3184 = vsel %vm1495, %v3152, %v2472
        %v3185 = vsel %vm1495, %v3153, %v2474
        %v3186 = vsel %vm1495, %v3154, %v2476
        %v3187 = vsel %vm1495, %v3155, %v2478
        %v3188 = vsel %vm1495, %v3156, %v2480
        %v3189 = vsel %vm1495, %v3157, %v2482
        %v3190 = vsel %vm1495, %v3158, %v2484
        %v3191 = vsel %vm1495, %v3159, %v2486
        %v3192 = vsel %vm1495, %v3160, %v2488
        %v3193 = vsel %vm1495, %v3161, %v2490
        %v3194 = vsel %vm1495, %v3162, %v2492
        %v3195 = vsel %vm1495, %v3163, %v2494
        %v3196 = vsel %vm1495, %v3164, %v2496
        %v3197 = vsel %vm1495, %v3165, %v2498
        %v3198 = vsel %vm1495, %v3166, %v2500
        %v3199 = vsel %vm1495, %v3167, %v2502
        %v3200 = vsel %vm1495, %v3168, %v2504
        %v3201 = vsel %vm1495, %v3169, %v2506
        %v3202 = vsel %vm1495, %v3170, %v2508
        %v3203 = vsel %vm1495, %v3171, %v2510
        %v3204 = vsel %vm1495, %v3172, %v2512
        %v3205 = vsel %vm1495, %v3173, %v2514
        %v3206 = vsel %vm1495, %v3174, %v2516
        %v3207 = vsel %vm1495, %v3175, %v2518
        %v3208 = vsel %vm1495, %v3176, %v2520
        %v3209 = vsel %vm1495, %v3177, %v2522
        %v3210 = vsel %vm1495, %v3178, %v2524
        %v3211 = vsel %vm1495, %v3179, %v2526
        %v3212 = vsel %vm1495, %v3180, %v2528
        %v3213 = vsel %vm1561, %v3181, %v2563
        %v3214 = vsel %vm1561, %v3182, %v2565
        %v3215 = vsel %vm1561, %v3183, %v2567
        %v3216 = vsel %vm1561, %v3184, %v2569
        %v3217 = vsel %vm1561, %v3185, %v2571
        %v3218 = vsel %vm1561, %v3186, %v2573
        %v3219 = vsel %vm1561, %v3187, %v2575
        %v3220 = vsel %vm1561, %v3188, %v2577
        %v3221 = vsel %vm1561, %v3189, %v2579
        %v3222 = vsel %vm1561, %v3190, %v2581
        %v3223 = vsel %vm1561, %v3191, %v2583
        %v3224 = vsel %vm1561, %v3192, %v2585
        %v3225 = vsel %vm1561, %v3193, %v2587
        %v3226 = vsel %vm1561, %v3194, %v2589
        %v3227 = vsel %vm1561, %v3195, %v2591
        %v3228 = vsel %vm1561, %v3196, %v2593
        %v3229 = vsel %vm1561, %v3197, %v2595
        %v3230 = vsel %vm1561, %v3198, %v2597
        %v3231 = vsel %vm1561, %v3199, %v2599
        %v3232 = vsel %vm1561, %v3200, %v2601
        %v3233 = vsel %vm1561, %v3201, %v2603
        %v3234 = vsel %vm1561, %v3202, %v2605
        %v3235 = vsel %vm1561, %v3203, %v2607
        %v3236 = vsel %vm1561, %v3204, %v2609
        %v3237 = vsel %vm1561, %v3205, %v2611
        %v3238 = vsel %vm1561, %v3206, %v2613
        %v3239 = vsel %vm1561, %v3207, %v2615
        %v3240 = vsel %vm1561, %v3208, %v2617
        %v3241 = vsel %vm1561, %v3209, %v2619
        %v3242 = vsel %vm1561, %v3210, %v2621
        %v3243 = vsel %vm1561, %v3211, %v2623
        %v3244 = vsel %vm1561, %v3212, %v2625
        %v3245 = vsel %vm1627, %v3213, %v2665
        %v3246 = vsel %vm1627, %v3214, %v2667
        %v3247 = vsel %vm1627, %v3215, %v2669
        %v3248 = vsel %vm1627, %v3216, %v2671
        %v3249 = vsel %vm1627, %v3217, %v2673
        %v3250 = vsel %vm1627, %v3218, %v2675
        %v3251 = vsel %vm1627, %v3219, %v2677
        %v3252 = vsel %vm1627, %v3220, %v2679
        %v3253 = vsel %vm1627, %v3221, %v2681
        %v3254 = vsel %vm1627, %v3222, %v2683
        %v3255 = vsel %vm1627, %v3223, %v2685
        %v3256 = vsel %vm1627, %v3224, %v2687
        %v3257 = vsel %vm1627, %v3225, %v2689
        %v3258 = vsel %vm1627, %v3226, %v2691
        %v3259 = vsel %vm1627, %v3227, %v2693
        %v3260 = vsel %vm1627, %v3228, %v2695
        %v3261 = vsel %vm1627, %v3229, %v2697
        %v3262 = vsel %vm1627, %v3230, %v2699
        %v3263 = vsel %vm1627, %v3231, %v2701
        %v3264 = vsel %vm1627, %v3232, %v2703
        %v3265 = vsel %vm1627, %v3233, %v2705
        %v3266 = vsel %vm1627, %v3234, %v2707
        %v3267 = vsel %vm1627, %v3235, %v2709
        %v3268 = vsel %vm1627, %v3236, %v2711
        %v3269 = vsel %vm1627, %v3237, %v2713
        %v3270 = vsel %vm1627, %v3238, %v2715
        %v3271 = vsel %vm1627, %v3239, %v2717
        %v3272 = vsel %vm1627, %v3240, %v2719
        %v3273 = vsel %vm1627, %v3241, %v2721
        %v3274 = vsel %vm1627, %v3242, %v2723
        %v3275 = vsel %vm1627, %v3243, %v2725
        %v3276 = vsel %vm1627, %v3244, %v2727
        %vm3277 = vcmask 326656
        %v3278 = vsel %vm3277, %v3245, %v2766
        %v3279 = vsel %vm3277, %v3246, %v2768
        %v3280 = vsel %vm3277, %v3247, %v2770
        %v3281 = vsel %vm3277, %v3248, %v2772
        %v3282 = vsel %vm3277, %v3249, %v2774
        %v3283 = vsel %vm3277, %v3250, %v2776
        %v3284 = vsel %vm3277, %v3251, %v2778
        %v3285 = vsel %vm3277, %v3252, %v2780
        %v3286 = vsel %vm3277, %v3253, %v2782
        %v3287 = vsel %vm3277, %v3254, %v2784
        %v3288 = vsel %vm3277, %v3255, %v2786
        %v3289 = vsel %vm3277, %v3256, %v2788
        %v3290 = vsel %vm3277, %v3257, %v2790
        %v3291 = vsel %vm3277, %v3258, %v2792
        %v3292 = vsel %vm3277, %v3259, %v2794
        %v3293 = vsel %vm3277, %v3260, %v2796
        %v3294 = vsel %vm3277, %v3261, %v2798
        %v3295 = vsel %vm3277, %v3262, %v2800
        %v3296 = vsel %vm3277, %v3263, %v2802
        %v3297 = vsel %vm3277, %v3264, %v2804
        %v3298 = vsel %vm3277, %v3265, %v2806
        %v3299 = vsel %vm3277, %v3266, %v2808
        %v3300 = vsel %vm3277, %v3267, %v2810
        %v3301 = vsel %vm3277, %v3268, %v2812
        %v3302 = vsel %vm3277, %v3269, %v2814
        %v3303 = vsel %vm3277, %v3270, %v2816
        %v3304 = vsel %vm3277, %v3271, %v2818
        %v3305 = vsel %vm3277, %v3272, %v2820
        %v3306 = vsel %vm3277, %v3273, %v2822
        %v3307 = vsel %vm3277, %v3274, %v2824
        %v3308 = vsel %vm3277, %v3275, %v2826
        %v3309 = vsel %vm3277, %v3276, %v2828
        %vm3310 = vcmask 392192
        %v3311 = vsel %vm3310, %v3278, %v2862
        %v3312 = vsel %vm3310, %v3279, %v2864
        %v3313 = vsel %vm3310, %v3280, %v2866
        %v3314 = vsel %vm3310, %v3281, %v2868
        %v3315 = vsel %vm3310, %v3282, %v2870
        %v3316 = vsel %vm3310, %v3283, %v2872
        %v3317 = vsel %vm3310, %v3284, %v2874
        %v3318 = vsel %vm3310, %v3285, %v2876
        %v3319 = vsel %vm3310, %v3286, %v2878
        %v3320 = vsel %vm3310, %v3287, %v2880
        %v3321 = vsel %vm3310, %v3288, %v2882
        %v3322 = vsel %vm3310, %v3289, %v2884
        %v3323 = vsel %vm3310, %v3290, %v2886
        %v3324 = vsel %vm3310, %v3291, %v2888
        %v3325 = vsel %vm3310, %v3292, %v2890
        %v3326 = vsel %vm3310, %v3293, %v2892
        %v3327 = vsel %vm3310, %v3294, %v2894
        %v3328 = vsel %vm3310, %v3295, %v2896
        %v3329 = vsel %vm3310, %v3296, %v2898
        %v3330 = vsel %vm3310, %v3297, %v2900
        %v3331 = vsel %vm3310, %v3298, %v2902
        %v3332 = vsel %vm3310, %v3299, %v2904
        %v3333 = vsel %vm3310, %v3300, %v2906
        %v3334 = vsel %vm3310, %v3301, %v2908
        %v3335 = vsel %vm3310, %v3302, %v2910
        %v3336 = vsel %vm3310, %v3303, %v2912
        %v3337 = vsel %vm3310, %v3304, %v2914
        %v3338 = vsel %vm3310, %v3305, %v2916
        %v3339 = vsel %vm3310, %v3306, %v2918
        %v3340 = vsel %vm3310, %v3307, %v2920
        %v3341 = vsel %vm3310, %v3308, %v2922
        %v3342 = vsel %vm3310, %v3309, %v2924
        %vm3343 = vcmask 457728
        %v3344 = vsel %vm3343, %v3311, %v2958
        %v3345 = vsel %vm3343, %v3312, %v2960
        %v3346 = vsel %vm3343, %v3313, %v2962
        %v3347 = vsel %vm3343, %v3314, %v2964
        %v3348 = vsel %vm3343, %v3315, %v2966
        %v3349 = vsel %vm3343, %v3316, %v2968
        %v3350 = vsel %vm3343, %v3317, %v2970
        %v3351 = vsel %vm3343, %v3318, %v2972
        %v3352 = vsel %vm3343, %v3319, %v2974
        %v3353 = vsel %vm3343, %v3320, %v2976
        %v3354 = vsel %vm3343, %v3321, %v2978
        %v3355 = vsel %vm3343, %v3322, %v2980
        %v3356 = vsel %vm3343, %v3323, %v2982
        %v3357 = vsel %vm3343, %v3324, %v2984
        %v3358 = vsel %vm3343, %v3325, %v2986
        %v3359 = vsel %vm3343, %v3326, %v2988
        %v3360 = vsel %vm3343, %v3327, %v2990
        %v3361 = vsel %vm3343, %v3328, %v2992
        %v3362 = vsel %vm3343, %v3329, %v2994
        %v3363 = vsel %vm3343, %v3330, %v2996
        %v3364 = vsel %vm3343, %v3331, %v2998
        %v3365 = vsel %vm3343, %v3332, %v3000
        %v3366 = vsel %vm3343, %v3333, %v3002
        %v3367 = vsel %vm3343, %v3334, %v3004
        %v3368 = vsel %vm3343, %v3335, %v3006
        %v3369 = vsel %vm3343, %v3336, %v3008
        %v3370 = vsel %vm3343, %v3337, %v3010
        %v3371 = vsel %vm3343, %v3338, %v3012
        %v3372 = vsel %vm3343, %v3339, %v3014
        %v3373 = vsel %vm3343, %v3340, %v3016
        %v3374 = vsel %vm3343, %v3341, %v3018
        %v3375 = vsel %vm3343, %v3342, %v3020
        %vm3376 = vcmask 523264
        %v3377 = vsel %vm3376, %v3344, %v3054
        %v3378 = vsel %vm3376, %v3345, %v3056
        %v3379 = vsel %vm3376, %v3346, %v3058
        %v3380 = vsel %vm3376, %v3347, %v3060
        %v3381 = vsel %vm3376, %v3348, %v3062
        %v3382 = vsel %vm3376, %v3349, %v3064
        %v3383 = vsel %vm3376, %v3350, %v3066
        %v3384 = vsel %vm3376, %v3351, %v3068
        %v3385 = vsel %vm3376, %v3352, %v3070
        %v3386 = vsel %vm3376, %v3353, %v3072
        %v3387 = vsel %vm3376, %v3354, %v3074
        %v3388 = vsel %vm3376, %v3355, %v3076
        %v3389 = vsel %vm3376, %v3356, %v3078
        %v3390 = vsel %vm3376, %v3357, %v3080
        %v3391 = vsel %vm3376, %v3358, %v3082
        %v3392 = vsel %vm3376, %v3359, %v3084
        %v3393 = vsel %vm3376, %v3360, %v3086
        %v3394 = vsel %vm3376, %v3361, %v3088
        %v3395 = vsel %vm3376, %v3362, %v3090
        %v3396 = vsel %vm3376, %v3363, %v3092
        %v3397 = vsel %vm3376, %v3364, %v3094
        %v3398 = vsel %vm3376, %v3365, %v3096
        %v3399 = vsel %vm3376, %v3366, %v3098
        %v3400 = vsel %vm3376, %v3367, %v3100
        %v3401 = vsel %vm3376, %v3368, %v3102
        %v3402 = vsel %vm3376, %v3369, %v3104
        %v3403 = vsel %vm3376, %v3370, %v3106
        %v3404 = vsel %vm3376, %v3371, %v3108
        %v3405 = vsel %vm3376, %v3372, %v3110
        %v3406 = vsel %vm3376, %v3373, %v3112
        %v3407 = vsel %vm3376, %v3374, %v3114
        %v3408 = vsel %vm3376, %v3375, %v3116
        %v3409 = vld [vmem:[%s3] sm:$0xff]
        %v3410 = vld [vmem:[%s3 + $0x8] sm:$0xff]
        %v3411 = vld [vmem:[%s3 + $0x10] sm:$0xff]
        %v3412 = vld [vmem:[%s3 + $0x18] sm:$0xff]
        %v3413 = vld [vmem:[%s3 + $0x20] sm:$0xff]
        %v3414 = vld [vmem:[%s3 + $0x28] sm:$0xff]
        %v3415 = vld [vmem:[%s3 + $0x30] sm:$0xff]
        %v3416 = vld [vmem:[%s3 + $0x38] sm:$0xff]
        %v3417 = vld [vmem:[%s3 + $0x40] sm:$0xff]
        %v3418 = vld [vmem:[%s4] sm:$0x1]
        %v3420 = vlaneseq
        %v3421 = vshrl.u32 %v3420, 7
        %v3422 = vsub.s32 0, %v3421
        %v3423 = vrot.slane %v3418, %v3422
        %vm3425 = vcmask 588800
        %v3427 = vsel %vm3425, %v3377, 0
        %v3430 = vsel %vm3425, %v3378, 0
        %v3433 = vsel %vm3425, %v3379, 0
        %v3436 = vsel %vm3425, %v3380, 0
        %v3439 = vsel %vm3425, %v3381, 0
        %v3442 = vsel %vm3425, %v3382, 0
        %v3445 = vsel %vm3425, %v3383, 0
        %v3448 = vsel %vm3425, %v3384, 0
        %v3451 = vsel %vm3425, %v3385, 0
        %v3454 = vsel %vm3425, %v3386, 0
        %v3457 = vsel %vm3425, %v3387, 0
        %v3460 = vsel %vm3425, %v3388, 0
        %v3463 = vsel %vm3425, %v3389, 0
        %v3466 = vsel %vm3425, %v3390, 0
        %v3469 = vsel %vm3425, %v3391, 0
        %v3472 = vsel %vm3425, %v3392, 0
        %v3475 = vsel %vm3425, %v3393, 0
        %v3478 = vsel %vm3425, %v3394, 0
        %v3481 = vsel %vm3425, %v3395, 0
        %v3484 = vsel %vm3425, %v3396, 0
        %v3487 = vsel %vm3425, %v3397, 0
        %v3490 = vsel %vm3425, %v3398, 0
        %v3493 = vsel %vm3425, %v3399, 0
        %v3496 = vsel %vm3425, %v3400, 0
        %v3499 = vsel %vm3425, %v3401, 0
        %v3502 = vsel %vm3425, %v3402, 0
        %v3505 = vsel %vm3425, %v3403, 0
        %v3508 = vsel %vm3425, %v3404, 0
        %v3511 = vsel %vm3425, %v3405, 0
        %v3514 = vsel %vm3425, %v3406, 0
        %v3517 = vsel %vm3425, %v3407, 0
        %v3520 = vsel %vm3425, %v3408, 0
        %3522 = vmatprep.subr.mxu0 0.0
        %3523 = vmatpush1.msra.mxu0 0.0
        %3524 = vmatprep.subr.mxu0 0.0
        %3525 = vmatpush1.msra.mxu0 0.0
        %3526 = vmatprep.subr.mxu0 0.0
        %3527 = vmatpush1.msra.mxu0 0.0
        %3528 = vmatprep.subr.mxu0 0.0
        %3529 = vmatpush1.msra.mxu0 0.0
        %3530 = vmatprep.subr.mxu0 0.0
        %3531 = vmatpush1.msra.mxu0 0.0
        %3532 = vmatprep.subr.mxu0 0.0
        %3533 = vmatpush1.msra.mxu0 0.0
        %3534 = vmatprep.subr.mxu0 0.0
        %3535 = vmatpush1.msra.mxu0 0.0
        %3536 = vmatprep.subr.mxu0 0.0
        %3537 = vmatpush1.msra.mxu0 %v3417
        %3538 = vmatprep.subr.mxu0 0.0
        %3539 = vmatpush1.msra.mxu0 %v3416
        %3540 = vmatprep.subr.mxu0 0.0
        %3541 = vmatpush1.msra.mxu0 %v3415
        %3542 = vmatprep.subr.mxu0 0.0
        %3543 = vmatpush1.msra.mxu0 %v3414
        %3544 = vmatprep.subr.mxu0 0.0
        %3545 = vmatpush1.msra.mxu0 %v3413
        %3546 = vmatprep.subr.mxu0 0.0
        %3547 = vmatpush1.msra.mxu0 %v3412
        %3548 = vmatprep.subr.mxu0 0.0
        %3549 = vmatpush1.msra.mxu0 %v3411
        %3550 = vmatprep.subr.mxu0 0.0
        %3551 = vmatpush1.msra.mxu0 %v3410
        %3552 = vmatprep.subr.mxu0 0.0
        %3553 = vmatpush1.msra.mxu0 %v3409
        %3554 = vmatprep.subr.mxu0 0.0
        %3555 = vmatpush2.msra.mxu0 0.0
        %3556 = vmatprep.subr.mxu0 0.0
        %3557 = vmatpush2.msra.mxu0 0.0
        %3558 = vmatprep.subr.mxu0 0.0
        %3559 = vmatpush2.msra.mxu0 0.0
        %3560 = vmatprep.subr.mxu0 0.0
        %3561 = vmatpush2.msra.mxu0 0.0
        %3562 = vmatprep.subr.mxu0 0.0
        %3563 = vmatpush2.msra.mxu0 0.0
        %3564 = vmatprep.subr.mxu0 0.0
        %3565 = vmatpush2.msra.mxu0 0.0
        %3566 = vmatprep.subr.mxu0 0.0
        %3567 = vmatpush2.msra.mxu0 0.0
        %3568 = vmatprep.subr.mxu0 0.0
        %3569 = vmatpush2.msra.mxu0 0.0
        %3570 = vmatprep.subr.mxu0 0.0
        %3571 = vmatpush2.msra.mxu0 0.0
        %3572 = vmatprep.subr.mxu0 0.0
        %3573 = vmatpush2.msra.mxu0 0.0
        %3574 = vmatprep.subr.mxu0 0.0
        %3575 = vmatpush2.msra.mxu0 0.0
        %3576 = vmatprep.subr.mxu0 0.0
        %3577 = vmatpush2.msra.mxu0 0.0
        %3578 = vmatprep.subr.mxu0 0.0
        %3579 = vmatpush2.msra.mxu0 0.0
        %3580 = vmatprep.subr.mxu0 0.0
        %3581 = vmatpush2.msra.mxu0 0.0
        %3582 = vmatprep.subr.mxu0 0.0
        %3583 = vmatpush2.msra.mxu0 0.0
        %3584 = vmatprep.subr.mxu0 0.0
        %3585 = vmatpush2.msra.mxu0 0.0
        %3586 = vmatprep.mubr.f32.mxu0 0.0
        %3587 = vmatmul.mubr.f32.gmra.mxu0 %v3427
        %v3588 = vpop.f32.mrf.mxu0
        %v3589 = vadd.f32 %v3423, %v3588
        %v3590 = vpop.f32.mrf.mxu0
        %3591 = vmatprep.mubr.f32.mxu0 0.0
        %3592 = vmatmul.mubr.f32.gmra.mxu0 %v3430
        %v3593 = vpop.f32.mrf.mxu0
        %v3594 = vadd.f32 %v3423, %v3593
        %v3595 = vpop.f32.mrf.mxu0
        %3596 = vmatprep.mubr.f32.mxu0 0.0
        %3597 = vmatmul.mubr.f32.gmra.mxu0 %v3433
        %v3598 = vpop.f32.mrf.mxu0
        %v3599 = vadd.f32 %v3423, %v3598
        %v3600 = vpop.f32.mrf.mxu0
        %3601 = vmatprep.mubr.f32.mxu0 0.0
        %3602 = vmatmul.mubr.f32.gmra.mxu0 %v3436
        %v3603 = vpop.f32.mrf.mxu0
        %v3604 = vadd.f32 %v3423, %v3603
        %v3605 = vpop.f32.mrf.mxu0
        %3606 = vmatprep.mubr.f32.mxu0 0.0
        %3607 = vmatmul.mubr.f32.gmra.mxu0 %v3439
        %v3608 = vpop.f32.mrf.mxu0
        %v3609 = vadd.f32 %v3423, %v3608
        %v3610 = vpop.f32.mrf.mxu0
        %3611 = vmatprep.mubr.f32.mxu0 0.0
        %3612 = vmatmul.mubr.f32.gmra.mxu0 %v3442
        %v3613 = vpop.f32.mrf.mxu0
        %v3614 = vadd.f32 %v3423, %v3613
        %v3615 = vpop.f32.mrf.mxu0
        %3616 = vmatprep.mubr.f32.mxu0 0.0
        %3617 = vmatmul.mubr.f32.gmra.mxu0 %v3445
        %v3618 = vpop.f32.mrf.mxu0
        %v3619 = vadd.f32 %v3423, %v3618
        %v3620 = vpop.f32.mrf.mxu0
        %3621 = vmatprep.mubr.f32.mxu0 0.0
        %3622 = vmatmul.mubr.f32.gmra.mxu0 %v3448
        %v3623 = vpop.f32.mrf.mxu0
        %v3624 = vadd.f32 %v3423, %v3623
        %v3625 = vpop.f32.mrf.mxu0
        %3626 = vmatprep.mubr.f32.mxu0 0.0
        %3627 = vmatmul.mubr.f32.gmra.mxu0 %v3451
        %v3628 = vpop.f32.mrf.mxu0
        %v3629 = vadd.f32 %v3423, %v3628
        %v3630 = vpop.f32.mrf.mxu0
        %3631 = vmatprep.mubr.f32.mxu0 0.0
        %3632 = vmatmul.mubr.f32.gmra.mxu0 %v3454
        %v3633 = vpop.f32.mrf.mxu0
        %v3634 = vadd.f32 %v3423, %v3633
        %v3635 = vpop.f32.mrf.mxu0
        %3636 = vmatprep.mubr.f32.mxu0 0.0
        %3637 = vmatmul.mubr.f32.gmra.mxu0 %v3457
        %v3638 = vpop.f32.mrf.mxu0
        %v3639 = vadd.f32 %v3423, %v3638
        %v3640 = vpop.f32.mrf.mxu0
        %3641 = vmatprep.mubr.f32.mxu0 0.0
        %3642 = vmatmul.mubr.f32.gmra.mxu0 %v3460
        %v3643 = vpop.f32.mrf.mxu0
        %v3644 = vadd.f32 %v3423, %v3643
        %v3645 = vpop.f32.mrf.mxu0
        %3646 = vmatprep.mubr.f32.mxu0 0.0
        %3647 = vmatmul.mubr.f32.gmra.mxu0 %v3463
        %v3648 = vpop.f32.mrf.mxu0
        %v3649 = vadd.f32 %v3423, %v3648
        %v3650 = vpop.f32.mrf.mxu0
        %3651 = vmatprep.mubr.f32.mxu0 0.0
        %3652 = vmatmul.mubr.f32.gmra.mxu0 %v3466
        %v3653 = vpop.f32.mrf.mxu0
        %v3654 = vadd.f32 %v3423, %v3653
        %v3655 = vpop.f32.mrf.mxu0
        %3656 = vmatprep.mubr.f32.mxu0 0.0
        %3657 = vmatmul.mubr.f32.gmra.mxu0 %v3469
        %v3658 = vpop.f32.mrf.mxu0
        %v3659 = vadd.f32 %v3423, %v3658
        %v3660 = vpop.f32.mrf.mxu0
        %3661 = vmatprep.mubr.f32.mxu0 0.0
        %3662 = vmatmul.mubr.f32.gmra.mxu0 %v3472
        %v3663 = vpop.f32.mrf.mxu0
        %v3664 = vadd.f32 %v3423, %v3663
        %v3665 = vpop.f32.mrf.mxu0
        %3666 = vmatprep.mubr.f32.mxu0 0.0
        %3667 = vmatmul.mubr.f32.gmra.mxu0 %v3475
        %v3668 = vpop.f32.mrf.mxu0
        %v3669 = vadd.f32 %v3423, %v3668
        %v3670 = vpop.f32.mrf.mxu0
        %3671 = vmatprep.mubr.f32.mxu0 0.0
        %3672 = vmatmul.mubr.f32.gmra.mxu0 %v3478
        %v3673 = vpop.f32.mrf.mxu0
        %v3674 = vadd.f32 %v3423, %v3673
        %v3675 = vpop.f32.mrf.mxu0
        %3676 = vmatprep.mubr.f32.mxu0 0.0
        %3677 = vmatmul.mubr.f32.gmra.mxu0 %v3481
        %v3678 = vpop.f32.mrf.mxu0
        %v3679 = vadd.f32 %v3423, %v3678
        %v3680 = vpop.f32.mrf.mxu0
        %3681 = vmatprep.mubr.f32.mxu0 0.0
        %3682 = vmatmul.mubr.f32.gmra.mxu0 %v3484
        %v3683 = vpop.f32.mrf.mxu0
        %v3684 = vadd.f32 %v3423, %v3683
        %v3685 = vpop.f32.mrf.mxu0
        %3686 = vmatprep.mubr.f32.mxu0 0.0
        %3687 = vmatmul.mubr.f32.gmra.mxu0 %v3487
        %v3688 = vpop.f32.mrf.mxu0
        %v3689 = vadd.f32 %v3423, %v3688
        %v3690 = vpop.f32.mrf.mxu0
        %3691 = vmatprep.mubr.f32.mxu0 0.0
        %3692 = vmatmul.mubr.f32.gmra.mxu0 %v3490
        %v3693 = vpop.f32.mrf.mxu0
        %v3694 = vadd.f32 %v3423, %v3693
        %v3695 = vpop.f32.mrf.mxu0
        %3696 = vmatprep.mubr.f32.mxu0 0.0
        %3697 = vmatmul.mubr.f32.gmra.mxu0 %v3493
        %v3698 = vpop.f32.mrf.mxu0
        %v3699 = vadd.f32 %v3423, %v3698
        %v3700 = vpop.f32.mrf.mxu0
        %3701 = vmatprep.mubr.f32.mxu0 0.0
        %3702 = vmatmul.mubr.f32.gmra.mxu0 %v3496
        %v3703 = vpop.f32.mrf.mxu0
        %v3704 = vadd.f32 %v3423, %v3703
        %v3705 = vpop.f32.mrf.mxu0
        %3706 = vmatprep.mubr.f32.mxu0 0.0
        %3707 = vmatmul.mubr.f32.gmra.mxu0 %v3499
        %v3708 = vpop.f32.mrf.mxu0
        %v3709 = vadd.f32 %v3423, %v3708
        %v3710 = vpop.f32.mrf.mxu0
        %3711 = vmatprep.mubr.f32.mxu0 0.0
        %3712 = vmatmul.mubr.f32.gmra.mxu0 %v3502
        %v3713 = vpop.f32.mrf.mxu0
        %v3714 = vadd.f32 %v3423, %v3713
        %v3715 = vpop.f32.mrf.mxu0
        %3716 = vmatprep.mubr.f32.mxu0 0.0
        %3717 = vmatmul.mubr.f32.gmra.mxu0 %v3505
        %v3718 = vpop.f32.mrf.mxu0
        %v3719 = vadd.f32 %v3423, %v3718
        %v3720 = vpop.f32.mrf.mxu0
        %3721 = vmatprep.mubr.f32.mxu0 0.0
        %3722 = vmatmul.mubr.f32.gmra.mxu0 %v3508
        %v3723 = vpop.f32.mrf.mxu0
        %v3724 = vadd.f32 %v3423, %v3723
        %v3725 = vpop.f32.mrf.mxu0
        %3726 = vmatprep.mubr.f32.mxu0 0.0
        %3727 = vmatmul.mubr.f32.gmra.mxu0 %v3511
        %v3728 = vpop.f32.mrf.mxu0
        %v3729 = vadd.f32 %v3423, %v3728
        %v3730 = vpop.f32.mrf.mxu0
        %3731 = vmatprep.mubr.f32.mxu0 0.0
        %3732 = vmatmul.mubr.f32.gmra.mxu0 %v3514
        %v3733 = vpop.f32.mrf.mxu0
        %v3734 = vadd.f32 %v3423, %v3733
        %v3735 = vpop.f32.mrf.mxu0
        %3736 = vmatprep.mubr.f32.mxu0 0.0
        %3737 = vmatmul.mubr.f32.gmra.mxu0 %v3517
        %v3738 = vpop.f32.mrf.mxu0
        %v3739 = vadd.f32 %v3423, %v3738
        %v3740 = vpop.f32.mrf.mxu0
        %3741 = vmatprep.mubr.f32.mxu0 0.0
        %3742 = vmatmul.mubr.f32.gmra.mxu0 %v3520
        %v3743 = vpop.f32.mrf.mxu0
        %v3744 = vadd.f32 %v3423, %v3743
        %v3745 = vpop.f32.mrf.mxu0
        %3746 = vdwg.mxu0
        %v3747 = vmax.f32 %v3589, 0.0
        %v3748 = vmax.f32 %v3594, 0.0
        %v3749 = vmax.f32 %v3599, 0.0
        %v3750 = vmax.f32 %v3604, 0.0
        %v3751 = vmax.f32 %v3609, 0.0
        %v3752 = vmax.f32 %v3614, 0.0
        %v3753 = vmax.f32 %v3619, 0.0
        %v3754 = vmax.f32 %v3624, 0.0
        %v3755 = vmax.f32 %v3629, 0.0
        %v3756 = vmax.f32 %v3634, 0.0
        %v3757 = vmax.f32 %v3639, 0.0
        %v3758 = vmax.f32 %v3644, 0.0
        %v3759 = vmax.f32 %v3649, 0.0
        %v3760 = vmax.f32 %v3654, 0.0
        %v3761 = vmax.f32 %v3659, 0.0
        %v3762 = vmax.f32 %v3664, 0.0
        %v3763 = vmax.f32 %v3669, 0.0
        %v3764 = vmax.f32 %v3674, 0.0
        %v3765 = vmax.f32 %v3679, 0.0
        %v3766 = vmax.f32 %v3684, 0.0
        %v3767 = vmax.f32 %v3689, 0.0
        %v3768 = vmax.f32 %v3694, 0.0
        %v3769 = vmax.f32 %v3699, 0.0
        %v3770 = vmax.f32 %v3704, 0.0
        %v3771 = vmax.f32 %v3709, 0.0
        %v3772 = vmax.f32 %v3714, 0.0
        %v3773 = vmax.f32 %v3719, 0.0
        %v3774 = vmax.f32 %v3724, 0.0
        %v3775 = vmax.f32 %v3729, 0.0
        %v3776 = vmax.f32 %v3734, 0.0
        %v3777 = vmax.f32 %v3739, 0.0
        %v3778 = vmax.f32 %v3744, 0.0
        %v3795 = vrot.slane %v3749, 7
        %vm3796 = vcmask 1041409
        %v3797 = vsel %vm3796, %v3795, %v3747
        %v3798 = vrot.slane %v3751, 6
        %vm3799 = vcmask 1042434
        %v3800 = vsel %vm3799, %v3798, %v3797
        %v3801 = vrot.slane %v3753, 5
        %vm3802 = vcmask 1043459
        %v3803 = vsel %vm3802, %v3801, %v3800
        %v3804 = vrot.slane %v3755, 4
        %vm3805 = vcmask 1044484
        %v3806 = vsel %vm3805, %v3804, %v3803
        %v3807 = vrot.slane %v3757, 3
        %vm3808 = vcmask 1045509
        %v3809 = vsel %vm3808, %v3807, %v3806
        %v3810 = vrot.slane %v3759, 2
        %vm3811 = vcmask 1046534
        %v3812 = vsel %vm3811, %v3810, %v3809
        %v3813 = vrot.slane %v3761, 1
        %vm3814 = vcmask 1047559
        %v3815 = vsel %vm3814, %v3813, %v3812
        %v3816 = vrot.slane %v3765, 7
        %v3817 = vsel %vm3796, %v3816, %v3763
        %v3818 = vrot.slane %v3767, 6
        %v3819 = vsel %vm3799, %v3818, %v3817
        %v3820 = vrot.slane %v3769, 5
        %v3821 = vsel %vm3802, %v3820, %v3819
        %v3822 = vrot.slane %v3771, 4
        %v3823 = vsel %vm3805, %v3822, %v3821
        %v3824 = vrot.slane %v3773, 3
        %v3825 = vsel %vm3808, %v3824, %v3823
        %v3826 = vrot.slane %v3775, 2
        %v3827 = vsel %vm3811, %v3826, %v3825
        %v3828 = vrot.slane %v3777, 1
        %v3829 = vsel %vm3814, %v3828, %v3827
        %v3832 = vrot.slane %v3747, 1
        %v3833 = vsel %vm3796, %v3749, %v3832
        %v3834 = vrot.slane %v3751, 7
        %v3835 = vsel %vm3799, %v3834, %v3833
        %v3836 = vrot.slane %v3753, 6
        %v3837 = vsel %vm3802, %v3836, %v3835
        %v3838 = vrot.slane %v3755, 5
        %v3839 = vsel %vm3805, %v3838, %v3837
        %v3840 = vrot.slane %v3757, 4
        %v3841 = vsel %vm3808, %v3840, %v3839
        %v3842 = vrot.slane %v3759, 3
        %v3843 = vsel %vm3811, %v3842, %v3841
        %v3844 = vrot.slane %v3761, 2
        %v3845 = vsel %vm3814, %v3844, %v3843
        %v3846 = vrot.slane %v3763, 1
        %v3847 = vsel %vm3796, %v3765, %v3846
        %v3848 = vrot.slane %v3767, 7
        %v3849 = vsel %vm3799, %v3848, %v3847
        %v3850 = vrot.slane %v3769, 6
        %v3851 = vsel %vm3802, %v3850, %v3849
        %v3852 = vrot.slane %v3771, 5
        %v3853 = vsel %vm3805, %v3852, %v3851
        %v3854 = vrot.slane %v3773, 4
        %v3855 = vsel %vm3808, %v3854, %v3853
        %v3856 = vrot.slane %v3775, 3
        %v3857 = vsel %vm3811, %v3856, %v3855
        %v3858 = vrot.slane %v3777, 2
        %v3859 = vsel %vm3814, %v3858, %v3857
        %3860 = vrot.lane.b32.xlu0 %v3845, 8
        %v3861 = vpop.permute.xlu0 %3860
        %3862 = vrot.lane.b32.xlu0 %v3859, 8
        %v3863 = vpop.permute.xlu0 %3862
        %v3866 = vrot.slane %v3747, 2
        %v3867 = vrot.slane %v3749, 1
        %v3868 = vsel %vm3796, %v3867, %v3866
        %v3869 = vsel %vm3799, %v3751, %v3868
        %v3870 = vrot.slane %v3753, 7
        %v3871 = vsel %vm3802, %v3870, %v3869
        %v3872 = vrot.slane %v3755, 6
        %v3873 = vsel %vm3805, %v3872, %v3871
        %v3874 = vrot.slane %v3757, 5
        %v3875 = vsel %vm3808, %v3874, %v3873
        %v3876 = vrot.slane %v3759, 4
        %v3877 = vsel %vm3811, %v3876, %v3875
        %v3878 = vrot.slane %v3761, 3
        %v3879 = vsel %vm3814, %v3878, %v3877
        %v3880 = vrot.slane %v3763, 2
        %v3881 = vrot.slane %v3765, 1
        %v3882 = vsel %vm3796, %v3881, %v3880
        %v3883 = vsel %vm3799, %v3767, %v3882
        %v3884 = vrot.slane %v3769, 7
        %v3885 = vsel %vm3802, %v3884, %v3883
        %v3886 = vrot.slane %v3771, 6
        %v3887 = vsel %vm3805, %v3886, %v3885
        %v3888 = vrot.slane %v3773, 5
        %v3889 = vsel %vm3808, %v3888, %v3887
        %v3890 = vrot.slane %v3775, 4
        %v3891 = vsel %vm3811, %v3890, %v3889
        %v3892 = vrot.slane %v3777, 3
        %v3893 = vsel %vm3814, %v3892, %v3891
        %3894 = vrot.lane.b32.xlu0 %v3879, 16
        %v3895 = vpop.permute.xlu0 %3894
        %3896 = vrot.lane.b32.xlu0 %v3893, 16
        %v3897 = vpop.permute.xlu0 %3896
        %v3900 = vrot.slane %v3747, 3
        %v3901 = vrot.slane %v3749, 2
        %v3902 = vsel %vm3796, %v3901, %v3900
        %v3903 = vrot.slane %v3751, 1
        %v3904 = vsel %vm3799, %v3903, %v3902
        %v3905 = vsel %vm3802, %v3753, %v3904
        %v3906 = vrot.slane %v3755, 7
        %v3907 = vsel %vm3805, %v3906, %v3905
        %v3908 = vrot.slane %v3757, 6
        %v3909 = vsel %vm3808, %v3908, %v3907
        %v3910 = vrot.slane %v3759, 5
        %v3911 = vsel %vm3811, %v3910, %v3909
        %v3912 = vrot.slane %v3761, 4
        %v3913 = vsel %vm3814, %v3912, %v3911
        %v3914 = vrot.slane %v3763, 3
        %v3915 = vrot.slane %v3765, 2
        %v3916 = vsel %vm3796, %v3915, %v3914
        %v3917 = vrot.slane %v3767, 1
        %v3918 = vsel %vm3799, %v3917, %v3916
        %v3919 = vsel %vm3802, %v3769, %v3918
        %v3920 = vrot.slane %v3771, 7
        %v3921 = vsel %vm3805, %v3920, %v3919
        %v3922 = vrot.slane %v3773, 6
        %v3923 = vsel %vm3808, %v3922, %v3921
        %v3924 = vrot.slane %v3775, 5
        %v3925 = vsel %vm3811, %v3924, %v3923
        %v3926 = vrot.slane %v3777, 4
        %v3927 = vsel %vm3814, %v3926, %v3925
        %3928 = vrot.lane.b32.xlu0 %v3913, 24
        %v3929 = vpop.permute.xlu0 %3928
        %3930 = vrot.lane.b32.xlu0 %v3927, 24
        %v3931 = vpop.permute.xlu0 %3930
        %v3934 = vrot.slane %v3747, 4
        %v3935 = vrot.slane %v3749, 3
        %v3936 = vsel %vm3796, %v3935, %v3934
        %v3937 = vrot.slane %v3751, 2
        %v3938 = vsel %vm3799, %v3937, %v3936
        %v3939 = vrot.slane %v3753, 1
        %v3940 = vsel %vm3802, %v3939, %v3938
        %v3941 = vsel %vm3805, %v3755, %v3940
        %v3942 = vrot.slane %v3757, 7
        %v3943 = vsel %vm3808, %v3942, %v3941
        %v3944 = vrot.slane %v3759, 6
        %v3945 = vsel %vm3811, %v3944, %v3943
        %v3946 = vrot.slane %v3761, 5
        %v3947 = vsel %vm3814, %v3946, %v3945
        %v3948 = vrot.slane %v3763, 4
        %v3949 = vrot.slane %v3765, 3
        %v3950 = vsel %vm3796, %v3949, %v3948
        %v3951 = vrot.slane %v3767, 2
        %v3952 = vsel %vm3799, %v3951, %v3950
        %v3953 = vrot.slane %v3769, 1
        %v3954 = vsel %vm3802, %v3953, %v3952
        %v3955 = vsel %vm3805, %v3771, %v3954
        %v3956 = vrot.slane %v3773, 7
        %v3957 = vsel %vm3808, %v3956, %v3955
        %v3958 = vrot.slane %v3775, 6
        %v3959 = vsel %vm3811, %v3958, %v3957
        %v3960 = vrot.slane %v3777, 5
        %v3961 = vsel %vm3814, %v3960, %v3959
        %3962 = vrot.lane.b32.xlu0 %v3947, 32
        %v3963 = vpop.permute.xlu0 %3962
        %3964 = vrot.lane.b32.xlu0 %v3961, 32
        %v3965 = vpop.permute.xlu0 %3964
        %v3968 = vrot.slane %v3747, 5
        %v3969 = vrot.slane %v3749, 4
        %v3970 = vsel %vm3796, %v3969, %v3968
        %v3971 = vrot.slane %v3751, 3
        %v3972 = vsel %vm3799, %v3971, %v3970
        %v3973 = vrot.slane %v3753, 2
        %v3974 = vsel %vm3802, %v3973, %v3972
        %v3975 = vrot.slane %v3755, 1
        %v3976 = vsel %vm3805, %v3975, %v3974
        %v3977 = vsel %vm3808, %v3757, %v3976
        %v3978 = vrot.slane %v3759, 7
        %v3979 = vsel %vm3811, %v3978, %v3977
        %v3980 = vrot.slane %v3761, 6
        %v3981 = vsel %vm3814, %v3980, %v3979
        %v3982 = vrot.slane %v3763, 5
        %v3983 = vrot.slane %v3765, 4
        %v3984 = vsel %vm3796, %v3983, %v3982
        %v3985 = vrot.slane %v3767, 3
        %v3986 = vsel %vm3799, %v3985, %v3984
        %v3987 = vrot.slane %v3769, 2
        %v3988 = vsel %vm3802, %v3987, %v3986
        %v3989 = vrot.slane %v3771, 1
        %v3990 = vsel %vm3805, %v3989, %v3988
        %v3991 = vsel %vm3808, %v3773, %v3990
        %v3992 = vrot.slane %v3775, 7
        %v3993 = vsel %vm3811, %v3992, %v3991
        %v3994 = vrot.slane %v3777, 6
        %v3995 = vsel %vm3814, %v3994, %v3993
        %3996 = vrot.lane.b32.xlu0 %v3981, 40
        %v3997 = vpop.permute.xlu0 %3996
        %3998 = vrot.lane.b32.xlu0 %v3995, 40
        %v3999 = vpop.permute.xlu0 %3998
        %v4002 = vrot.slane %v3747, 6
        %v4003 = vrot.slane %v3749, 5
        %v4004 = vsel %vm3796, %v4003, %v4002
        %v4005 = vrot.slane %v3751, 4
        %v4006 = vsel %vm3799, %v4005, %v4004
        %v4007 = vrot.slane %v3753, 3
        %v4008 = vsel %vm3802, %v4007, %v4006
        %v4009 = vrot.slane %v3755, 2
        %v4010 = vsel %vm3805, %v4009, %v4008
        %v4011 = vrot.slane %v3757, 1
        %v4012 = vsel %vm3808, %v4011, %v4010
        %v4013 = vsel %vm3811, %v3759, %v4012
        %v4014 = vrot.slane %v3761, 7
        %v4015 = vsel %vm3814, %v4014, %v4013
        %v4016 = vrot.slane %v3763, 6
        %v4017 = vrot.slane %v3765, 5
        %v4018 = vsel %vm3796, %v4017, %v4016
        %v4019 = vrot.slane %v3767, 4
        %v4020 = vsel %vm3799, %v4019, %v4018
        %v4021 = vrot.slane %v3769, 3
        %v4022 = vsel %vm3802, %v4021, %v4020
        %v4023 = vrot.slane %v3771, 2
        %v4024 = vsel %vm3805, %v4023, %v4022
        %v4025 = vrot.slane %v3773, 1
        %v4026 = vsel %vm3808, %v4025, %v4024
        %v4027 = vsel %vm3811, %v3775, %v4026
        %v4028 = vrot.slane %v3777, 7
        %v4029 = vsel %vm3814, %v4028, %v4027
        %4030 = vrot.lane.b32.xlu0 %v4015, 48
        %v4031 = vpop.permute.xlu0 %4030
        %4032 = vrot.lane.b32.xlu0 %v4029, 48
        %v4033 = vpop.permute.xlu0 %4032
        %v4036 = vrot.slane %v3747, 7
        %v4037 = vrot.slane %v3749, 6
        %v4038 = vsel %vm3796, %v4037, %v4036
        %v4039 = vrot.slane %v3751, 5
        %v4040 = vsel %vm3799, %v4039, %v4038
        %v4041 = vrot.slane %v3753, 4
        %v4042 = vsel %vm3802, %v4041, %v4040
        %v4043 = vrot.slane %v3755, 3
        %v4044 = vsel %vm3805, %v4043, %v4042
        %v4045 = vrot.slane %v3757, 2
        %v4046 = vsel %vm3808, %v4045, %v4044
        %v4047 = vrot.slane %v3759, 1
        %v4048 = vsel %vm3811, %v4047, %v4046
        %v4049 = vsel %vm3814, %v3761, %v4048
        %v4050 = vrot.slane %v3763, 7
        %v4051 = vrot.slane %v3765, 6
        %v4052 = vsel %vm3796, %v4051, %v4050
        %v4053 = vrot.slane %v3767, 5
        %v4054 = vsel %vm3799, %v4053, %v4052
        %v4055 = vrot.slane %v3769, 4
        %v4056 = vsel %vm3802, %v4055, %v4054
        %v4057 = vrot.slane %v3771, 3
        %v4058 = vsel %vm3805, %v4057, %v4056
        %v4059 = vrot.slane %v3773, 2
        %v4060 = vsel %vm3808, %v4059, %v4058
        %v4061 = vrot.slane %v3775, 1
        %v4062 = vsel %vm3811, %v4061, %v4060
        %v4063 = vsel %vm3814, %v3777, %v4062
        %4064 = vrot.lane.b32.xlu0 %v4049, 56
        %v4065 = vpop.permute.xlu0 %4064
        %4066 = vrot.lane.b32.xlu0 %v4063, 56
        %v4067 = vpop.permute.xlu0 %4066
        %v4086 = vrot.slane %v3750, 7
        %v4087 = vsel %vm3796, %v4086, %v3748
        %v4088 = vrot.slane %v3752, 6
        %v4089 = vsel %vm3799, %v4088, %v4087
        %v4090 = vrot.slane %v3754, 5
        %v4091 = vsel %vm3802, %v4090, %v4089
        %v4092 = vrot.slane %v3756, 4
        %v4093 = vsel %vm3805, %v4092, %v4091
        %v4094 = vrot.slane %v3758, 3
        %v4095 = vsel %vm3808, %v4094, %v4093
        %v4096 = vrot.slane %v3760, 2
        %v4097 = vsel %vm3811, %v4096, %v4095
        %v4098 = vrot.slane %v3762, 1
        %v4099 = vsel %vm3814, %v4098, %v4097
        %v4100 = vrot.slane %v3766, 7
        %v4101 = vsel %vm3796, %v4100, %v3764
        %v4102 = vrot.slane %v3768, 6
        %v4103 = vsel %vm3799, %v4102, %v4101
        %v4104 = vrot.slane %v3770, 5
        %v4105 = vsel %vm3802, %v4104, %v4103
        %v4106 = vrot.slane %v3772, 4
        %v4107 = vsel %vm3805, %v4106, %v4105
        %v4108 = vrot.slane %v3774, 3
        %v4109 = vsel %vm3808, %v4108, %v4107
        %v4110 = vrot.slane %v3776, 2
        %v4111 = vsel %vm3811, %v4110, %v4109
        %v4112 = vrot.slane %v3778, 1
        %v4113 = vsel %vm3814, %v4112, %v4111
        %4114 = vrot.lane.b32.xlu0 %v4099, 64
        %v4115 = vpop.permute.xlu0 %4114
        %4116 = vrot.lane.b32.xlu0 %v4113, 64
        %v4117 = vpop.permute.xlu0 %4116
        %v4120 = vrot.slane %v3748, 1
        %v4121 = vsel %vm3796, %v3750, %v4120
        %v4122 = vrot.slane %v3752, 7
        %v4123 = vsel %vm3799, %v4122, %v4121
        %v4124 = vrot.slane %v3754, 6
        %v4125 = vsel %vm3802, %v4124, %v4123
        %v4126 = vrot.slane %v3756, 5
        %v4127 = vsel %vm3805, %v4126, %v4125
        %v4128 = vrot.slane %v3758, 4
        %v4129 = vsel %vm3808, %v4128, %v4127
        %v4130 = vrot.slane %v3760, 3
        %v4131 = vsel %vm3811, %v4130, %v4129
        %v4132 = vrot.slane %v3762, 2
        %v4133 = vsel %vm3814, %v4132, %v4131
        %v4134 = vrot.slane %v3764, 1
        %v4135 = vsel %vm3796, %v3766, %v4134
        %v4136 = vrot.slane %v3768, 7
        %v4137 = vsel %vm3799, %v4136, %v4135
        %v4138 = vrot.slane %v3770, 6
        %v4139 = vsel %vm3802, %v4138, %v4137
        %v4140 = vrot.slane %v3772, 5
        %v4141 = vsel %vm3805, %v4140, %v4139
        %v4142 = vrot.slane %v3774, 4
        %v4143 = vsel %vm3808, %v4142, %v4141
        %v4144 = vrot.slane %v3776, 3
        %v4145 = vsel %vm3811, %v4144, %v4143
        %v4146 = vrot.slane %v3778, 2
        %v4147 = vsel %vm3814, %v4146, %v4145
        %4148 = vrot.lane.b32.xlu0 %v4133, 72
        %v4149 = vpop.permute.xlu0 %4148
        %4150 = vrot.lane.b32.xlu0 %v4147, 72
        %v4151 = vpop.permute.xlu0 %4150
        %v4154 = vrot.slane %v3748, 2
        %v4155 = vrot.slane %v3750, 1
        %v4156 = vsel %vm3796, %v4155, %v4154
        %v4157 = vsel %vm3799, %v3752, %v4156
        %v4158 = vrot.slane %v3754, 7
        %v4159 = vsel %vm3802, %v4158, %v4157
        %v4160 = vrot.slane %v3756, 6
        %v4161 = vsel %vm3805, %v4160, %v4159
        %v4162 = vrot.slane %v3758, 5
        %v4163 = vsel %vm3808, %v4162, %v4161
        %v4164 = vrot.slane %v3760, 4
        %v4165 = vsel %vm3811, %v4164, %v4163
        %v4166 = vrot.slane %v3762, 3
        %v4167 = vsel %vm3814, %v4166, %v4165
        %v4168 = vrot.slane %v3764, 2
        %v4169 = vrot.slane %v3766, 1
        %v4170 = vsel %vm3796, %v4169, %v4168
        %v4171 = vsel %vm3799, %v3768, %v4170
        %v4172 = vrot.slane %v3770, 7
        %v4173 = vsel %vm3802, %v4172, %v4171
        %v4174 = vrot.slane %v3772, 6
        %v4175 = vsel %vm3805, %v4174, %v4173
        %v4176 = vrot.slane %v3774, 5
        %v4177 = vsel %vm3808, %v4176, %v4175
        %v4178 = vrot.slane %v3776, 4
        %v4179 = vsel %vm3811, %v4178, %v4177
        %v4180 = vrot.slane %v3778, 3
        %v4181 = vsel %vm3814, %v4180, %v4179
        %4182 = vrot.lane.b32.xlu0 %v4167, 80
        %v4183 = vpop.permute.xlu0 %4182
        %4184 = vrot.lane.b32.xlu0 %v4181, 80
        %v4185 = vpop.permute.xlu0 %4184
        %v4188 = vrot.slane %v3748, 3
        %v4189 = vrot.slane %v3750, 2
        %v4190 = vsel %vm3796, %v4189, %v4188
        %v4191 = vrot.slane %v3752, 1
        %v4192 = vsel %vm3799, %v4191, %v4190
        %v4193 = vsel %vm3802, %v3754, %v4192
        %v4194 = vrot.slane %v3756, 7
        %v4195 = vsel %vm3805, %v4194, %v4193
        %v4196 = vrot.slane %v3758, 6
        %v4197 = vsel %vm3808, %v4196, %v4195
        %v4198 = vrot.slane %v3760, 5
        %v4199 = vsel %vm3811, %v4198, %v4197
        %v4200 = vrot.slane %v3762, 4
        %v4201 = vsel %vm3814, %v4200, %v4199
        %v4202 = vrot.slane %v3764, 3
        %v4203 = vrot.slane %v3766, 2
        %v4204 = vsel %vm3796, %v4203, %v4202
        %v4205 = vrot.slane %v3768, 1
        %v4206 = vsel %vm3799, %v4205, %v4204
        %v4207 = vsel %vm3802, %v3770, %v4206
        %v4208 = vrot.slane %v3772, 7
        %v4209 = vsel %vm3805, %v4208, %v4207
        %v4210 = vrot.slane %v3774, 6
        %v4211 = vsel %vm3808, %v4210, %v4209
        %v4212 = vrot.slane %v3776, 5
        %v4213 = vsel %vm3811, %v4212, %v4211
        %v4214 = vrot.slane %v3778, 4
        %v4215 = vsel %vm3814, %v4214, %v4213
        %4216 = vrot.lane.b32.xlu0 %v4201, 88
        %v4217 = vpop.permute.xlu0 %4216
        %4218 = vrot.lane.b32.xlu0 %v4215, 88
        %v4219 = vpop.permute.xlu0 %4218
        %v4222 = vrot.slane %v3748, 4
        %v4223 = vrot.slane %v3750, 3
        %v4224 = vsel %vm3796, %v4223, %v4222
        %v4225 = vrot.slane %v3752, 2
        %v4226 = vsel %vm3799, %v4225, %v4224
        %v4227 = vrot.slane %v3754, 1
        %v4228 = vsel %vm3802, %v4227, %v4226
        %v4229 = vsel %vm3805, %v3756, %v4228
        %v4230 = vrot.slane %v3758, 7
        %v4231 = vsel %vm3808, %v4230, %v4229
        %v4232 = vrot.slane %v3760, 6
        %v4233 = vsel %vm3811, %v4232, %v4231
        %v4234 = vrot.slane %v3762, 5
        %v4235 = vsel %vm3814, %v4234, %v4233
        %v4236 = vrot.slane %v3764, 4
        %v4237 = vrot.slane %v3766, 3
        %v4238 = vsel %vm3796, %v4237, %v4236
        %v4239 = vrot.slane %v3768, 2
        %v4240 = vsel %vm3799, %v4239, %v4238
        %v4241 = vrot.slane %v3770, 1
        %v4242 = vsel %vm3802, %v4241, %v4240
        %v4243 = vsel %vm3805, %v3772, %v4242
        %v4244 = vrot.slane %v3774, 7
        %v4245 = vsel %vm3808, %v4244, %v4243
        %v4246 = vrot.slane %v3776, 6
        %v4247 = vsel %vm3811, %v4246, %v4245
        %v4248 = vrot.slane %v3778, 5
        %v4249 = vsel %vm3814, %v4248, %v4247
        %4250 = vrot.lane.b32.xlu0 %v4235, 96
        %v4251 = vpop.permute.xlu0 %4250
        %4252 = vrot.lane.b32.xlu0 %v4249, 96
        %v4253 = vpop.permute.xlu0 %4252
        %v4256 = vrot.slane %v3748, 5
        %v4257 = vrot.slane %v3750, 4
        %v4258 = vsel %vm3796, %v4257, %v4256
        %v4259 = vrot.slane %v3752, 3
        %v4260 = vsel %vm3799, %v4259, %v4258
        %v4261 = vrot.slane %v3754, 2
        %v4262 = vsel %vm3802, %v4261, %v4260
        %v4263 = vrot.slane %v3756, 1
        %v4264 = vsel %vm3805, %v4263, %v4262
        %v4265 = vsel %vm3808, %v3758, %v4264
        %v4266 = vrot.slane %v3760, 7
        %v4267 = vsel %vm3811, %v4266, %v4265
        %v4268 = vrot.slane %v3762, 6
        %v4269 = vsel %vm3814, %v4268, %v4267
        %v4270 = vrot.slane %v3764, 5
        %v4271 = vrot.slane %v3766, 4
        %v4272 = vsel %vm3796, %v4271, %v4270
        %v4273 = vrot.slane %v3768, 3
        %v4274 = vsel %vm3799, %v4273, %v4272
        %v4275 = vrot.slane %v3770, 2
        %v4276 = vsel %vm3802, %v4275, %v4274
        %v4277 = vrot.slane %v3772, 1
        %v4278 = vsel %vm3805, %v4277, %v4276
        %v4279 = vsel %vm3808, %v3774, %v4278
        %v4280 = vrot.slane %v3776, 7
        %v4281 = vsel %vm3811, %v4280, %v4279
        %v4282 = vrot.slane %v3778, 6
        %v4283 = vsel %vm3814, %v4282, %v4281
        %4284 = vrot.lane.b32.xlu0 %v4269, 104
        %v4285 = vpop.permute.xlu0 %4284
        %4286 = vrot.lane.b32.xlu0 %v4283, 104
        %v4287 = vpop.permute.xlu0 %4286
        %v4290 = vrot.slane %v3748, 6
        %v4291 = vrot.slane %v3750, 5
        %v4292 = vsel %vm3796, %v4291, %v4290
        %v4293 = vrot.slane %v3752, 4
        %v4294 = vsel %vm3799, %v4293, %v4292
        %v4295 = vrot.slane %v3754, 3
        %v4296 = vsel %vm3802, %v4295, %v4294
        %v4297 = vrot.slane %v3756, 2
        %v4298 = vsel %vm3805, %v4297, %v4296
        %v4299 = vrot.slane %v3758, 1
        %v4300 = vsel %vm3808, %v4299, %v4298
        %v4301 = vsel %vm3811, %v3760, %v4300
        %v4302 = vrot.slane %v3762, 7
        %v4303 = vsel %vm3814, %v4302, %v4301
        %v4304 = vrot.slane %v3764, 6
        %v4305 = vrot.slane %v3766, 5
        %v4306 = vsel %vm3796, %v4305, %v4304
        %v4307 = vrot.slane %v3768, 4
        %v4308 = vsel %vm3799, %v4307, %v4306
        %v4309 = vrot.slane %v3770, 3
        %v4310 = vsel %vm3802, %v4309, %v4308
        %v4311 = vrot.slane %v3772, 2
        %v4312 = vsel %vm3805, %v4311, %v4310
        %v4313 = vrot.slane %v3774, 1
        %v4314 = vsel %vm3808, %v4313, %v4312
        %v4315 = vsel %vm3811, %v3776, %v4314
        %v4316 = vrot.slane %v3778, 7
        %v4317 = vsel %vm3814, %v4316, %v4315
        %4318 = vrot.lane.b32.xlu0 %v4303, 112
        %v4319 = vpop.permute.xlu0 %4318
        %4320 = vrot.lane.b32.xlu0 %v4317, 112
        %v4321 = vpop.permute.xlu0 %4320
        %v4324 = vrot.slane %v3748, 7
        %v4325 = vrot.slane %v3750, 6
        %v4326 = vsel %vm3796, %v4325, %v4324
        %v4327 = vrot.slane %v3752, 5
        %v4328 = vsel %vm3799, %v4327, %v4326
        %v4329 = vrot.slane %v3754, 4
        %v4330 = vsel %vm3802, %v4329, %v4328
        %v4331 = vrot.slane %v3756, 3
        %v4332 = vsel %vm3805, %v4331, %v4330
        %v4333 = vrot.slane %v3758, 2
        %v4334 = vsel %vm3808, %v4333, %v4332
        %v4335 = vrot.slane %v3760, 1
        %v4336 = vsel %vm3811, %v4335, %v4334
        %v4337 = vsel %vm3814, %v3762, %v4336
        %v4338 = vrot.slane %v3764, 7
        %v4339 = vrot.slane %v3766, 6
        %v4340 = vsel %vm3796, %v4339, %v4338
        %v4341 = vrot.slane %v3768, 5
        %v4342 = vsel %vm3799, %v4341, %v4340
        %v4343 = vrot.slane %v3770, 4
        %v4344 = vsel %vm3802, %v4343, %v4342
        %v4345 = vrot.slane %v3772, 3
        %v4346 = vsel %vm3805, %v4345, %v4344
        %v4347 = vrot.slane %v3774, 2
        %v4348 = vsel %vm3808, %v4347, %v4346
        %v4349 = vrot.slane %v3776, 1
        %v4350 = vsel %vm3811, %v4349, %v4348
        %v4351 = vsel %vm3814, %v3778, %v4350
        %4352 = vrot.lane.b32.xlu0 %v4337, 120
        %v4353 = vpop.permute.xlu0 %4352
        %4354 = vrot.lane.b32.xlu0 %v4351, 120
        %v4355 = vpop.permute.xlu0 %4354
        %v4358 = vsel %vm1429, %v3815, %v3861
        %v4359 = vsel %vm1429, %v3829, %v3863
        %v4360 = vsel %vm1495, %v4358, %v3895
        %v4361 = vsel %vm1495, %v4359, %v3897
        %v4362 = vsel %vm1561, %v4360, %v3929
        %v4363 = vsel %vm1561, %v4361, %v3931
        %v4364 = vsel %vm1627, %v4362, %v3963
        %v4365 = vsel %vm1627, %v4363, %v3965
        %v4366 = vsel %vm3277, %v4364, %v3997
        %v4367 = vsel %vm3277, %v4365, %v3999
        %v4368 = vsel %vm3310, %v4366, %v4031
        %v4369 = vsel %vm3310, %v4367, %v4033
        %v4370 = vsel %vm3343, %v4368, %v4065
        %v4371 = vsel %vm3343, %v4369, %v4067
        %v4372 = vsel %vm3376, %v4370, %v4115
        %v4373 = vsel %vm3376, %v4371, %v4117
        %v4374 = vsel %vm3425, %v4372, %v4149
        %v4375 = vsel %vm3425, %v4373, %v4151
        %vm4376 = vcmask 654336
        %v4377 = vsel %vm4376, %v4374, %v4183
        %v4378 = vsel %vm4376, %v4375, %v4185
        %vm4379 = vcmask 719872
        %v4380 = vsel %vm4379, %v4377, %v4217
        %v4381 = vsel %vm4379, %v4378, %v4219
        %vm4382 = vcmask 785408
        %v4383 = vsel %vm4382, %v4380, %v4251
        %v4384 = vsel %vm4382, %v4381, %v4253
        %vm4385 = vcmask 850944
        %v4386 = vsel %vm4385, %v4383, %v4285
        %v4387 = vsel %vm4385, %v4384, %v4287
        %vm4388 = vcmask 916480
        %v4389 = vsel %vm4388, %v4386, %v4319
        %v4390 = vsel %vm4388, %v4387, %v4321
        %vm4391 = vcmask 982016
        %v4392 = vsel %vm4391, %v4389, %v4353
        %v4393 = vsel %vm4391, %v4390, %v4355
        %4394 = vst [vmem:[%s217] sm:$0xff] %v4392
        %4395 = vst [vmem:[%s217 + $0x8] sm:$0xff] %v4393
        %s4396 = sand.u32 %s137, 1
        %s4397 = scalar_lea.sflag [#allocation3], %s4396
        %s4398 = sand.u32 %s137, 1
        %s4399 = smul.addr %s4398, 16
        %s4400 = scalar_lea.vmem [#allocation2], %s4399
        // Predicated region
        $region41: #{tpu_custom_call.1} parent=39 // pred_check
          %p4401 = pneg %p147
        $region42: #{tpu_custom_call.1} parent=39 // pred_check_branch
          %4403 = sbr.rel (%p4401) target = $region44
        $region43: #{tpu_custom_call.1} parent=39 // pred_region
          %s4405 = ssub.s32 256, 256
          %4406 = vsyncadd %s4397, %s4405
          %s4407 = smul.addr %s19, 2
          %s4408 = smul.addr %s4407, 128
          %s4409 = scalar_lea.hbm %s5, %s4408
          %s4410 = sshll.u32 %s4400, 4
          %s4411 = int_to_ptr.vmem [resolvable:$true] %s4410
          %4416 = dma.vmem_to_hbm [thread:$0]  %s4411, 256, %s4409, %s4397, 128, 128, 8
        $region44: #{tpu_custom_call.1} parent=39 // pred_fallthru
          _
      $region40: #{tpu_custom_call.1} parent=5 // pred_fallthru
        _
      %p4417 = scmp.le.s32.totalorder 2, %s14
      // Predicated region
      $region45: #{tpu_custom_call.1} parent=5 // pred_check
        %p4418 = pneg %p4417
      $region46: #{tpu_custom_call.1} parent=5 // pred_check_branch
        %4420 = sbr.rel (%p4418) target = $region48
      $region47: #{tpu_custom_call.1} parent=5 // pred_region
        %s4421 = ssub.s32 %s14, 2
        // Predicated region
        $region49: #{tpu_custom_call.1} parent=47 // pred_check
          %p4422 = pneg %p153
        $region50: #{tpu_custom_call.1} parent=47 // pred_check_branch
          %4424 = sbr.rel (%p4422) target = $region52
        $region51: #{tpu_custom_call.1} parent=47 // pred_region
          %s4425 = sand.u32 %s138, 1
          %s4426 = scalar_lea.sflag [#allocation3], %s4425
          %s4427 = sand.u32 %s138, 1
          %s4428 = smul.addr %s4427, 16
          %s4429 = scalar_lea.vmem [#allocation2], %s4428
          %4430 = dma.done %s4426, 256
        $region52: #{tpu_custom_call.1} parent=47 // pred_fallthru
          _
      $region48: #{tpu_custom_call.1} parent=5 // pred_fallthru
        _
    $region6: #{tpu_custom_call.1} parent=1 // loop_footer
      %s18 = sadd.s32 1, %s14
    $region7: #{tpu_custom_call.1} parent=1 // loop_footer_branch
      %13 = sbr.rel target = $region3
    $region8: #{tpu_custom_call.1} parent=1 // loop_exit
      _
    %4431 = vsyncpa [#allocation3], 1
    %s4432 = scalar_lea.sflag [#allocation3], 1
    %4433 = vsyncpa %s4432, 1

</llo_original>
